<compile_context>
chip_gen: v7x
topology: tpu7x:2x2x1
jax: 0.10.0
libtpu: 0.0.40
codegen_flags: <defaults>
</compile_context>

<pallas_src>
import math

import jax
import jax.numpy as jnp
import numpy as np
from jax import lax
from jax.experimental import pallas as pl
from jax.experimental.pallas import tpu as pltpu

_EPS = 1e-8
_NEG_SLOPE = 0.2
_LANE = 128
_DT = jnp.bfloat16           # inter-layer activation / MXU operand dtype
_VMEM_LIMIT = 32 * 1024 * 1024


def _rup(x, m=_LANE):
    return ((x + m - 1) // m) * m


def _compiler_params():
    return pltpu.CompilerParams(dimension_semantics=("parallel",),
                                vmem_limit_bytes=_VMEM_LIMIT)


# ----------------------------------------------------------------------------
# In-kernel helpers
# ----------------------------------------------------------------------------
def _epilogue(acc, bias, inv_c):
    """bias -> PixelNorm over the *real* channel count -> LeakyReLU (f32)."""
    y = acc + bias                                        # (R, Cpad) + (1, Cpad)
    ms = jnp.sum(y * y, axis=-1, keepdims=True) * jnp.float32(inv_c)
    y = y * lax.rsqrt(ms + jnp.float32(_EPS))
    return jnp.maximum(y, jnp.float32(_NEG_SLOPE) * y)    # LeakyReLU(0.2)


def _upsample_sel(hi_rows, wp, pad, h_lo, w_lo, dtype):
    """0/1 matrix S (hi_rows, h_lo*w_lo): S[r, q] = 1 iff padded high-res plane
    row r (r = y*wp + x) is the nearest-upsampled copy of low-res pixel q."""
    r = lax.broadcasted_iota(jnp.int32, (hi_rows, h_lo * w_lo), 0)
    q = lax.broadcasted_iota(jnp.int32, (hi_rows, h_lo * w_lo), 1)
    y = r // wp - pad
    x = r % wp - pad
    valid = (y >= 0) & (y < 2 * h_lo) & (x >= 0) & (x < 2 * w_lo)
    q_src = (y // 2) * w_lo + (x // 2)
    return jnp.where(valid & (q == q_src), 1.0, 0.0).astype(dtype)


# ----------------------------------------------------------------------------
# Fused per-block kernel: [upsample] -> conv0 -> PN/LReLU -> conv1 -> PN/LReLU
# ----------------------------------------------------------------------------
def _make_block_kernel(hin, win, cin_p, k0, p0, c0, c0_p, k1, p1, c1, c1_p,
                       upsample):
    h0 = 2 * hin if upsample else hin
    w0 = 2 * win if upsample else win
    hp0, wp0 = h0 + 2 * p0, w0 + 2 * p0
    ho0, wo0 = h0 + 2 * p0 - k0 + 1, w0 + 2 * p0 - k0 + 1
    r0 = (ho0 - 1) * wp0 + wo0
    hp1, wp1 = ho0 + 2 * p1, wo0 + 2 * p1
    ho1, wo1 = ho0 + 2 * p1 - k1 + 1, wo0 + 2 * p1 - k1 + 1
    r1 = (ho1 - 1) * wp1 + wo1
    inv0, inv1 = 1.0 / c0, 1.0 / c1

    def kernel(x_ref, w0_ref, b0_ref, w1_ref, b1_ref, o_ref,
               pad0_ref, pad1_ref):
        # -- stage 0: (optionally upsampled) input -> zero-padded plane slab --
        if upsample:
            sel = _upsample_sel(hp0 * wp0, wp0, p0, hin, win, _DT)
            plane = jnp.dot(sel, x_ref[0], preferred_element_type=jnp.float32)
            pad0_ref[...] = plane.astype(pad0_ref.dtype)
        else:
            pad0_ref[...] = jnp.zeros_like(pad0_ref)
            for i in range(hin):
                d = (i + p0) * wp0 + p0
                pad0_ref[d:d + win, :] = x_ref[0, i * win:(i + 1) * win, :]

        # -- conv0: accumulate the k0*k0 shifted row windows on the MXU -------
        acc = jnp.zeros((r0, c0_p), jnp.float32)
        for ky in range(k0):
            for kx in range(k0):
                s = ky * wp0 + kx
                acc = acc + jnp.dot(pad0_ref[s:s + r0, :],
                                    w0_ref[ky * k0 + kx],
                                    preferred_element_type=jnp.float32)
        y0 = _epilogue(acc, b0_ref[...], inv0)

        # -- handoff: keep valid columns, re-embed into conv1's padded plane --
        pad1_ref[...] = jnp.zeros_like(pad1_ref)
        for h in range(ho0):
            d = (h + p1) * wp1 + p1
            pad1_ref[d:d + wo0, :] = (
                y0[h * wp0:h * wp0 + wo0, :].astype(pad1_ref.dtype))

        # -- conv1 -------------------------------------------------------------
        acc = jnp.zeros((r1, c1_p), jnp.float32)
        for ky in range(k1):
            for kx in range(k1):
                s = ky * wp1 + kx
                acc = acc + jnp.dot(pad1_ref[s:s + r1, :],
                                    w1_ref[ky * k1 + kx],
                                    preferred_element_type=jnp.float32)
        y1 = _epilogue(acc, b1_ref[...], inv1)

        # -- write the valid output pixels (lane-dense 128-wide stores) -------
        for h in range(ho1):
            o_ref[0, h * wo1:(h + 1) * wo1, :] = (
                y1[h * wp1:h * wp1 + wo1, :].astype(o_ref.dtype))

    geom = dict(hp0=hp0, wp0=wp0, r0=r0, hp1=hp1, wp1=wp1, r1=r1,
                ho=ho1, wo=wo1)
    return kernel, geom


# ----------------------------------------------------------------------------
# toRGB kernels (1x1 conv, RGB lane-padded 3 -> 128 for dense stores)
# ----------------------------------------------------------------------------
def _torgb_kernel(x_ref, w_ref, b_ref, o_ref):
    y = jnp.dot(x_ref[0], w_ref[...], preferred_element_type=jnp.float32)
    o_ref[0] = y + b_ref[...]


def _make_torgb_blend_kernel(h_lo, w_lo):
    hi_h, hi_w = 2 * h_lo, 2 * w_lo

    def kernel(x_ref, p_ref, w_ref, b_ref, o_ref):
        # nearest-upsample the previous block's activation in-kernel
        sel = _upsample_sel(hi_h * hi_w, hi_w, 0, h_lo, w_lo, _DT)
        p_up = jnp.dot(sel, p_ref[0], preferred_element_type=jnp.float32)
        # one dot against the alpha-folded stacked weights [Wx ; Wp]
        lhs = jnp.concatenate([x_ref[0], p_up.astype(_DT)], axis=1)
        y = jnp.dot(lhs, w_ref[...], preferred_element_type=jnp.float32)
        o_ref[0] = y + b_ref[...]

    return kernel


# ----------------------------------------------------------------------------
# Host-side parameter setup (deterministic synthetic, PyTorch-like ranges)
# ----------------------------------------------------------------------------
def _init_conv(key, cin, cout, k, scale):
    kw, kb = jax.random.split(key)
    fan_in = cin * k * k
    bound = 1.0 / np.sqrt(fan_in)
    w = jax.random.uniform(kw, (cout, cin, k, k), jnp.float32, -bound, bound)
    b = jax.random.uniform(kb, (cout,), jnp.float32, -bound, bound)
    cin_p, cout_p = _rup(cin), _rup(cout)
    # tap layout (ky*k + kx, cin, cout); WeightScaling folded into w only.
    wt = jnp.transpose(w, (2, 3, 1, 0)).reshape(k * k, cin, cout)
    wt = wt * jnp.float32(scale)
    wt_pad = jnp.zeros((k * k, cin_p, cout_p), jnp.float32)
    wt_pad = wt_pad.at[:, :cin, :cout].set(wt)
    b_pad = jnp.zeros((1, cout_p), jnp.float32).at[0, :cout].set(b)
    return wt_pad.astype(_DT), b_pad


def _init_torgb(key, cin):
    kw, kb = jax.random.split(key)
    bound = 1.0 / np.sqrt(cin)
    w = jax.random.uniform(kw, (3, cin, 1, 1), jnp.float32, -bound, bound)
    b = jax.random.uniform(kb, (3,), jnp.float32, -bound, bound)
    cin_p = _rup(cin)
    w_mat = jnp.transpose(w, (2, 3, 1, 0)).reshape(cin, 3)
    w_pad = jnp.zeros((cin_p, _LANE), jnp.float32).at[:cin, :3].set(w_mat)
    b_pad = jnp.zeros((1, _LANE), jnp.float32).at[0, :3].set(b)
    return w_pad, b_pad           # kept f32: alpha fold is done in f32


# ----------------------------------------------------------------------------
# Generator
# ----------------------------------------------------------------------------
class GeneratorPallas:
    max_channels = 512

    def __init__(self, final_size=16, key=None):
        self.final_size = final_size
        self.num_blocks = int(math.log(final_size, 2) - 1)
        self.num_channels = 2 ** (self.num_blocks - 1 + 4)
        if key is None:
            key = jax.random.PRNGKey(0)
        gain = np.sqrt(2)

        self.blocks = []
        self.torgb = []
        for n in range(self.num_blocks):
            key, kc0, kc1, kt = jax.random.split(key, 4)
            if n == 0:
                ch = min(int(2 ** (self.num_blocks - n + 4 - 1)),
                         self.max_channels)
                cin, c0, c1 = ch, ch, ch
                kk0, pp0 = 4, 3                  # conv_0_0, no WeightScaling
                scale0 = 1.0
                hin = win = 1
                upsample = False
            else:
                cin = min(int(2 ** (self.num_blocks - n + 5 - 1)),
                          self.max_channels)
                c0 = c1 = min(int(2 ** (self.num_blocks - n + 4 - 1)),
                              self.max_channels)
                kk0, pp0 = 3, 1
                scale0 = gain / np.sqrt(3 * 3 * cin)
                hin = win = 2 ** (n + 1)
                upsample = True
            scale1 = gain / np.sqrt(3 * 3 * c0)
            w0, b0 = _init_conv(kc0, cin, c0, kk0, scale0)
            w1, b1 = _init_conv(kc1, c0, c1, 3, scale1)
            kernel, geom = _make_block_kernel(
                hin, win, _rup(cin), kk0, pp0, c0, _rup(c0), 3, 1, c1,
                _rup(c1), upsample)
            self.blocks.append(dict(
                kernel=kernel, geom=geom, hin=hin, win=win,
                cin=cin, c0=c0, c1=c1,
                cin_p=_rup(cin), c0_p=_rup(c0), c1_p=_rup(c1),
                k0=kk0, k1=3, upsample=upsample,
                w0=w0, b0=b0, w1=w1, b1=b1))
            wr, br = _init_torgb(kt, c1)
            self.torgb.append(dict(w=wr, b=br, cin=c1, cin_p=_rup(c1)))

    # -------------------- pallas_call wrappers --------------------
    def _block_call(self, x, blk, n):
        g = blk['geom']
        cin_p, c0_p, c1_p = blk['cin_p'], blk['c0_p'], blk['c1_p']
        k0, k1 = blk['k0'], blk['k1']
        hwin = blk['hin'] * blk['win']
        hwout = g['ho'] * g['wo']
        flops = 2 * n * (k0 * k0 * g['r0'] * cin_p * c0_p
                         + k1 * k1 * g['r1'] * c0_p * c1_p)
        if blk['upsample']:
            flops += 2 * n * g['hp0'] * g['wp0'] * hwin * cin_p
        bytes_accessed = (n * (hwin * cin_p + hwout * c1_p) * 2
                          + (k0 * k0 * cin_p * c0_p
                             + k1 * k1 * c0_p * c1_p) * 2
                          + (c0_p + c1_p) * 4)
        cost = pl.CostEstimate(flops=int(flops),
                               transcendentals=int(n * (g['r0'] + g['r1'])),
                               bytes_accessed=int(bytes_accessed))
        return pl.pallas_call(
            blk['kernel'],
            out_shape=jax.ShapeDtypeStruct((n, hwout, c1_p), _DT),
            grid_spec=pltpu.PrefetchScalarGridSpec(
                num_scalar_prefetch=0,
                grid=(n,),
                in_specs=[
                    pl.BlockSpec((1, hwin, cin_p), lambda i: (i, 0, 0)),
                    pl.BlockSpec((k0 * k0, cin_p, c0_p), lambda i: (0, 0, 0)),
                    pl.BlockSpec((1, c0_p), lambda i: (0, 0)),
                    pl.BlockSpec((k1 * k1, c0_p, c1_p), lambda i: (0, 0, 0)),
                    pl.BlockSpec((1, c1_p), lambda i: (0, 0)),
                ],
                out_specs=pl.BlockSpec((1, hwout, c1_p), lambda i: (i, 0, 0)),
                scratch_shapes=[
                    pltpu.VMEM((g['hp0'] * g['wp0'], cin_p), _DT),
                    pltpu.VMEM((g['hp1'] * g['wp1'], c0_p), _DT),
                ],
            ),
            compiler_params=_compiler_params(),
            cost_estimate=cost,
        )(x, blk['w0'], blk['b0'], blk['w1'], blk['b1'])

    def _torgb_call(self, x, w_pad, b_pad, n, hw, cin_p):
        cost = pl.CostEstimate(
            flops=int(2 * n * hw * cin_p * _LANE),
            transcendentals=0,
            bytes_accessed=int(n * hw * (cin_p * 2 + _LANE * 4)
                               + cin_p * _LANE * 2 + _LANE * 4))
        return pl.pallas_call(
            _torgb_kernel,
            out_shape=jax.ShapeDtypeStruct((n, hw, _LANE), jnp.float32),
            grid_spec=pltpu.PrefetchScalarGridSpec(
                num_scalar_prefetch=0,
                grid=(n,),
                in_specs=[
                    pl.BlockSpec((1, hw, cin_p), lambda i: (i, 0, 0)),
                    pl.BlockSpec((cin_p, _LANE), lambda i: (0, 0)),
                    pl.BlockSpec((1, _LANE), lambda i: (0, 0)),
                ],
                out_specs=pl.BlockSpec((1, hw, _LANE), lambda i: (i, 0, 0)),
            ),
            compiler_params=_compiler_params(),
            cost_estimate=cost,
        )(x, w_pad.astype(_DT), b_pad)

    def _torgb_blend_call(self, x, prev, wx, bx, wp, bp, alpha, n,
                          h_lo, w_lo, cx_p, cp_p):
        hw = 4 * h_lo * w_lo
        hw_lo = h_lo * w_lo
        a = jnp.float32(alpha)
        # fold alpha in f32, cast to bf16 once
        wcat = jnp.concatenate([wx * a, wp * (jnp.float32(1.0) - a)],
                               axis=0).astype(_DT)
        bcat = a * bx + (jnp.float32(1.0) - a) * bp
        kernel = _make_torgb_blend_kernel(h_lo, w_lo)
        cost = pl.CostEstimate(
            flops=int(2 * n * hw * (cx_p + cp_p) * _LANE
                      + 2 * n * hw * hw_lo * cp_p),
            transcendentals=0,
            bytes_accessed=int(n * (hw * cx_p + hw_lo * cp_p) * 2
                               + n * hw * _LANE * 4
                               + (cx_p + cp_p) * _LANE * 2 + _LANE * 4))
        return pl.pallas_call(
            kernel,
            out_shape=jax.ShapeDtypeStruct((n, hw, _LANE), jnp.float32),
            grid_spec=pltpu.PrefetchScalarGridSpec(
                num_scalar_prefetch=0,
                grid=(n,),
                in_specs=[
                    pl.BlockSpec((1, hw, cx_p), lambda i: (i, 0, 0)),
                    pl.BlockSpec((1, hw_lo, cp_p), lambda i: (i, 0, 0)),
                    pl.BlockSpec((cx_p + cp_p, _LANE), lambda i: (0, 0)),
                    pl.BlockSpec((1, _LANE), lambda i: (0, 0)),
                ],
                out_specs=pl.BlockSpec((1, hw, _LANE), lambda i: (i, 0, 0)),
            ),
            compiler_params=_compiler_params(),
            cost_estimate=cost,
        )(x, prev, wcat, bcat)

    # -------------------- forward --------------------
    def forward(self, latent_nchw, index, alpha):
        n, c = latent_nchw.shape[0], latent_nchw.shape[1]
        cin_p = self.blocks[0]['cin_p']
        # (N, C, 1, 1) -> lane-padded (N, 1, Cpad) bf16 slab
        x = latent_nchw.reshape(n, c)
        x = jnp.pad(x, ((0, 0), (0, cin_p - c))).astype(_DT)
        x = x.reshape(n, 1, cin_p)

        prev_x = x
        for i in range(index + 1):
            prev_x = x
            x = self._block_call(x, self.blocks[i], n)

        g = self.blocks[index]['geom']
        ho, wo = g['ho'], g['wo']
        if index > 0:
            h_lo = self.blocks[index]['hin']
            w_lo = self.blocks[index]['win']
            t_hi = self.torgb[index]
            t_lo = self.torgb[index - 1]
            out = self._torgb_blend_call(
                x, prev_x, t_hi['w'], t_hi['b'], t_lo['w'], t_lo['b'],
                alpha, n, h_lo, w_lo, t_hi['cin_p'], t_lo['cin_p'])
        else:
            t = self.torgb[0]
            out = self._torgb_call(x, t['w'], t['b'], n, ho * wo, t['cin_p'])

        img = out[:, :, :3].reshape(n, ho, wo, 3)
        return jnp.transpose(img, (0, 3, 1, 2))        # NHWC -> NCHW


if __name__ == "__main__":
    key = jax.random.PRNGKey(0)
    k_params, k_latent = jax.random.split(key)

    # Small config: final_size=16 -> num_blocks=3, channels 64 -> 32 -> 16.
    gen = GeneratorPallas(final_size=16, key=k_params)

    # latent: (N, C, 1, 1); block 0's 4x4 conv (padding=3) turns it into 4x4.
    latent = jax.random.normal(k_latent, (2, gen.num_channels, 1, 1),
                               jnp.float32)

    out_blend = gen.forward(latent, index=2, alpha=0.3)   # -> (2, 3, 16, 16)
    out_base = gen.forward(latent, index=0, alpha=1.0)    # -> (2, 3, 4, 4)

    jax.block_until_ready(out_blend)
    jax.block_until_ready(out_base)

    assert out_blend.shape == (2, 3, 16, 16), out_blend.shape
    assert out_base.shape == (2, 3, 4, 4), out_base.shape
    assert bool(jnp.all(jnp.isfinite(out_blend)))
    assert bool(jnp.all(jnp.isfinite(out_base)))

    print("KERNEL_OK")
</pallas_src>

<mosaic_0001>
module attributes {stable_mosaic.version = 11 : i64} {
  func.func @kernel(%arg0: i32, %arg1: memref<1x1x128xbf16, #tpu.memory_space<vmem>>, %arg2: memref<16x128x128xbf16, #tpu.memory_space<vmem>>, %arg3: memref<1x128xf32, #tpu.memory_space<vmem>>, %arg4: memref<9x128x128xbf16, #tpu.memory_space<vmem>>, %arg5: memref<1x128xf32, #tpu.memory_space<vmem>>, %arg6: memref<1x16x128xbf16, #tpu.memory_space<vmem>>, %arg7: memref<49x128xbf16, #tpu.memory_space<vmem>>, %arg8: memref<36x128xbf16, #tpu.memory_space<vmem>>) attributes {dimension_semantics = [#tpu.dimension_semantics<parallel>], iteration_bounds = array<i64: 2>, scalar_prefetch = 0 : i64, scratch_operands = 2 : i64, tpu.core_type = #tpu.core_type<tc>, window_params = [{transform_indices = @transform_0, window_bounds = array<i64: 1, 1, 128>}, {pipeline_mode = #tpu.pipeline_mode<synchronous>, transform_indices = @transform_1, window_bounds = array<i64: 16, 128, 128>}, {pipeline_mode = #tpu.pipeline_mode<synchronous>, transform_indices = @transform_2, window_bounds = array<i64: 1, 128>}, {pipeline_mode = #tpu.pipeline_mode<synchronous>, transform_indices = @transform_3, window_bounds = array<i64: 9, 128, 128>}, {pipeline_mode = #tpu.pipeline_mode<synchronous>, transform_indices = @transform_4, window_bounds = array<i64: 1, 128>}, {transform_indices = @transform_5, window_bounds = array<i64: 1, 16, 128>}]} {
    %cst = arith.constant 0.000000e+00 : bf16
    %0 = vector.broadcast %cst : bf16 to vector<49x128xbf16>
    %c0 = arith.constant 0 : index
    %c0_0 = arith.constant 0 : index
    %1 = vector.load %arg7[%c0, %c0_0] : memref<49x128xbf16, #tpu.memory_space<vmem>>, vector<49x128xbf16>
    tpu.vector_store %arg7[%c0, %c0_0], %0 {strides = array<i32>} : memref<49x128xbf16, #tpu.memory_space<vmem>>, vector<49x128xbf16>,
    %c0_1 = arith.constant 0 : index
    %c0_2 = arith.constant 0 : index
    %c0_3 = arith.constant 0 : index
    %2 = vector.load %arg1[%c0_1, %c0_2, %c0_3] : memref<1x1x128xbf16, #tpu.memory_space<vmem>>, vector<1x1x128xbf16>
    %3 = vector.shape_cast %2 : vector<1x1x128xbf16> to vector<1x128xbf16>
    %c24 = arith.constant 24 : index
    %c0_4 = arith.constant 0 : index
    %4 = vector.load %arg7[%c24, %c0_4] : memref<49x128xbf16, #tpu.memory_space<vmem>>, vector<1x128xbf16>
    tpu.vector_store %arg7[%c24, %c0_4], %3 {strides = array<i32>} : memref<49x128xbf16, #tpu.memory_space<vmem>>, vector<1x128xbf16>,
    %cst_5 = arith.constant 0.000000e+00 : f32
    %5 = vector.broadcast %cst_5 : f32 to vector<25x128xf32>
    %c0_6 = arith.constant 0 : index
    %c0_7 = arith.constant 0 : index
    %6 = vector.load %arg7[%c0_6, %c0_7] : memref<49x128xbf16, #tpu.memory_space<vmem>>, vector<25x128xbf16>
    %c0_8 = arith.constant 0 : index
    %c0_9 = arith.constant 0 : index
    %c0_10 = arith.constant 0 : index
    %7 = vector.load %arg2[%c0_8, %c0_9, %c0_10] : memref<16x128x128xbf16, #tpu.memory_space<vmem>>, vector<1x128x128xbf16>
    %8 = vector.shape_cast %7 : vector<1x128x128xbf16> to vector<128x128xbf16>
    %cst_11 = arith.constant dense<0.000000e+00> : vector<25x128xf32>
    %9 = tpu.matmul %6, %8, %cst_11 {dimension_numbers = #tpu.dot_dimension_numbers<[1], [0], [0], [1], [0, 0, 1, 1], [], []>} : vector<25x128xbf16>, vector<128x128xbf16>, vector<25x128xf32> -> vector<25x128xf32>
    %10 = arith.addf %5, %9 : vector<25x128xf32>
    %c1 = arith.constant 1 : index
    %c0_12 = arith.constant 0 : index
    %11 = vector.load %arg7[%c1, %c0_12] : memref<49x128xbf16, #tpu.memory_space<vmem>>, vector<25x128xbf16>
    %c1_13 = arith.constant 1 : index
    %c0_14 = arith.constant 0 : index
    %c0_15 = arith.constant 0 : index
    %12 = vector.load %arg2[%c1_13, %c0_14, %c0_15] : memref<16x128x128xbf16, #tpu.memory_space<vmem>>, vector<1x128x128xbf16>
    %13 = vector.shape_cast %12 : vector<1x128x128xbf16> to vector<128x128xbf16>
    %cst_16 = arith.constant dense<0.000000e+00> : vector<25x128xf32>
    %14 = tpu.matmul %11, %13, %cst_16 {dimension_numbers = #tpu.dot_dimension_numbers<[1], [0], [0], [1], [0, 0, 1, 1], [], []>} : vector<25x128xbf16>, vector<128x128xbf16>, vector<25x128xf32> -> vector<25x128xf32>
    %15 = arith.addf %10, %14 : vector<25x128xf32>
    %c2 = arith.constant 2 : index
    %c0_17 = arith.constant 0 : index
    %16 = vector.load %arg7[%c2, %c0_17] : memref<49x128xbf16, #tpu.memory_space<vmem>>, vector<25x128xbf16>
    %c2_18 = arith.constant 2 : index
    %c0_19 = arith.constant 0 : index
    %c0_20 = arith.constant 0 : index
    %17 = vector.load %arg2[%c2_18, %c0_19, %c0_20] : memref<16x128x128xbf16, #tpu.memory_space<vmem>>, vector<1x128x128xbf16>
    %18 = vector.shape_cast %17 : vector<1x128x128xbf16> to vector<128x128xbf16>
    %cst_21 = arith.constant dense<0.000000e+00> : vector<25x128xf32>
    %19 = tpu.matmul %16, %18, %cst_21 {dimension_numbers = #tpu.dot_dimension_numbers<[1], [0], [0], [1], [0, 0, 1, 1], [], []>} : vector<25x128xbf16>, vector<128x128xbf16>, vector<25x128xf32> -> vector<25x128xf32>
    %20 = arith.addf %15, %19 : vector<25x128xf32>
    %c3 = arith.constant 3 : index
    %c0_22 = arith.constant 0 : index
    %21 = vector.load %arg7[%c3, %c0_22] : memref<49x128xbf16, #tpu.memory_space<vmem>>, vector<25x128xbf16>
    %c3_23 = arith.constant 3 : index
    %c0_24 = arith.constant 0 : index
    %c0_25 = arith.constant 0 : index
    %22 = vector.load %arg2[%c3_23, %c0_24, %c0_25] : memref<16x128x128xbf16, #tpu.memory_space<vmem>>, vector<1x128x128xbf16>
    %23 = vector.shape_cast %22 : vector<1x128x128xbf16> to vector<128x128xbf16>
    %cst_26 = arith.constant dense<0.000000e+00> : vector<25x128xf32>
    %24 = tpu.matmul %21, %23, %cst_26 {dimension_numbers = #tpu.dot_dimension_numbers<[1], [0], [0], [1], [0, 0, 1, 1], [], []>} : vector<25x128xbf16>, vector<128x128xbf16>, vector<25x128xf32> -> vector<25x128xf32>
    %25 = arith.addf %20, %24 : vector<25x128xf32>
    %c7 = arith.constant 7 : index
    %c0_27 = arith.constant 0 : index
    %26 = vector.load %arg7[%c7, %c0_27] : memref<49x128xbf16, #tpu.memory_space<vmem>>, vector<25x128xbf16>
    %c4 = arith.constant 4 : index
    %c0_28 = arith.constant 0 : index
    %c0_29 = arith.constant 0 : index
    %27 = vector.load %arg2[%c4, %c0_28, %c0_29] : memref<16x128x128xbf16, #tpu.memory_space<vmem>>, vector<1x128x128xbf16>
    %28 = vector.shape_cast %27 : vector<1x128x128xbf16> to vector<128x128xbf16>
    %cst_30 = arith.constant dense<0.000000e+00> : vector<25x128xf32>
    %29 = tpu.matmul %26, %28, %cst_30 {dimension_numbers = #tpu.dot_dimension_numbers<[1], [0], [0], [1], [0, 0, 1, 1], [], []>} : vector<25x128xbf16>, vector<128x128xbf16>, vector<25x128xf32> -> vector<25x128xf32>
    %30 = arith.addf %25, %29 : vector<25x128xf32>
    %c8 = arith.constant 8 : index
    %c0_31 = arith.constant 0 : index
    %31 = vector.load %arg7[%c8, %c0_31] : memref<49x128xbf16, #tpu.memory_space<vmem>>, vector<25x128xbf16>
    %c5 = arith.constant 5 : index
    %c0_32 = arith.constant 0 : index
    %c0_33 = arith.constant 0 : index
    %32 = vector.load %arg2[%c5, %c0_32, %c0_33] : memref<16x128x128xbf16, #tpu.memory_space<vmem>>, vector<1x128x128xbf16>
    %33 = vector.shape_cast %32 : vector<1x128x128xbf16> to vector<128x128xbf16>
    %cst_34 = arith.constant dense<0.000000e+00> : vector<25x128xf32>
    %34 = tpu.matmul %31, %33, %cst_34 {dimension_numbers = #tpu.dot_dimension_numbers<[1], [0], [0], [1], [0, 0, 1, 1], [], []>} : vector<25x128xbf16>, vector<128x128xbf16>, vector<25x128xf32> -> vector<25x128xf32>
    %35 = arith.addf %30, %34 : vector<25x128xf32>
    %c9 = arith.constant 9 : index
    %c0_35 = arith.constant 0 : index
    %36 = vector.load %arg7[%c9, %c0_35] : memref<49x128xbf16, #tpu.memory_space<vmem>>, vector<25x128xbf16>
    %c6 = arith.constant 6 : index
    %c0_36 = arith.constant 0 : index
    %c0_37 = arith.constant 0 : index
    %37 = vector.load %arg2[%c6, %c0_36, %c0_37] : memref<16x128x128xbf16, #tpu.memory_space<vmem>>, vector<1x128x128xbf16>
    %38 = vector.shape_cast %37 : vector<1x128x128xbf16> to vector<128x128xbf16>
    %cst_38 = arith.constant dense<0.000000e+00> : vector<25x128xf32>
    %39 = tpu.matmul %36, %38, %cst_38 {dimension_numbers = #tpu.dot_dimension_numbers<[1], [0], [0], [1], [0, 0, 1, 1], [], []>} : vector<25x128xbf16>, vector<128x128xbf16>, vector<25x128xf32> -> vector<25x128xf32>
    %40 = arith.addf %35, %39 : vector<25x128xf32>
    %c10 = arith.constant 10 : index
    %c0_39 = arith.constant 0 : index
    %41 = vector.load %arg7[%c10, %c0_39] : memref<49x128xbf16, #tpu.memory_space<vmem>>, vector<25x128xbf16>
    %c7_40 = arith.constant 7 : index
    %c0_41 = arith.constant 0 : index
    %c0_42 = arith.constant 0 : index
    %42 = vector.load %arg2[%c7_40, %c0_41, %c0_42] : memref<16x128x128xbf16, #tpu.memory_space<vmem>>, vector<1x128x128xbf16>
    %43 = vector.shape_cast %42 : vector<1x128x128xbf16> to vector<128x128xbf16>
    %cst_43 = arith.constant dense<0.000000e+00> : vector<25x128xf32>
    %44 = tpu.matmul %41, %43, %cst_43 {dimension_numbers = #tpu.dot_dimension_numbers<[1], [0], [0], [1], [0, 0, 1, 1], [], []>} : vector<25x128xbf16>, vector<128x128xbf16>, vector<25x128xf32> -> vector<25x128xf32>
    %45 = arith.addf %40, %44 : vector<25x128xf32>
    %c14 = arith.constant 14 : index
    %c0_44 = arith.constant 0 : index
    %46 = vector.load %arg7[%c14, %c0_44] : memref<49x128xbf16, #tpu.memory_space<vmem>>, vector<25x128xbf16>
    %c8_45 = arith.constant 8 : index
    %c0_46 = arith.constant 0 : index
    %c0_47 = arith.constant 0 : index
    %47 = vector.load %arg2[%c8_45, %c0_46, %c0_47] : memref<16x128x128xbf16, #tpu.memory_space<vmem>>, vector<1x128x128xbf16>
    %48 = vector.shape_cast %47 : vector<1x128x128xbf16> to vector<128x128xbf16>
    %cst_48 = arith.constant dense<0.000000e+00> : vector<25x128xf32>
    %49 = tpu.matmul %46, %48, %cst_48 {dimension_numbers = #tpu.dot_dimension_numbers<[1], [0], [0], [1], [0, 0, 1, 1], [], []>} : vector<25x128xbf16>, vector<128x128xbf16>, vector<25x128xf32> -> vector<25x128xf32>
    %50 = arith.addf %45, %49 : vector<25x128xf32>
    %c15 = arith.constant 15 : index
    %c0_49 = arith.constant 0 : index
    %51 = vector.load %arg7[%c15, %c0_49] : memref<49x128xbf16, #tpu.memory_space<vmem>>, vector<25x128xbf16>
    %c9_50 = arith.constant 9 : index
    %c0_51 = arith.constant 0 : index
    %c0_52 = arith.constant 0 : index
    %52 = vector.load %arg2[%c9_50, %c0_51, %c0_52] : memref<16x128x128xbf16, #tpu.memory_space<vmem>>, vector<1x128x128xbf16>
    %53 = vector.shape_cast %52 : vector<1x128x128xbf16> to vector<128x128xbf16>
    %cst_53 = arith.constant dense<0.000000e+00> : vector<25x128xf32>
    %54 = tpu.matmul %51, %53, %cst_53 {dimension_numbers = #tpu.dot_dimension_numbers<[1], [0], [0], [1], [0, 0, 1, 1], [], []>} : vector<25x128xbf16>, vector<128x128xbf16>, vector<25x128xf32> -> vector<25x128xf32>
    %55 = arith.addf %50, %54 : vector<25x128xf32>
    %c16 = arith.constant 16 : index
    %c0_54 = arith.constant 0 : index
    %56 = vector.load %arg7[%c16, %c0_54] : memref<49x128xbf16, #tpu.memory_space<vmem>>, vector<25x128xbf16>
    %c10_55 = arith.constant 10 : index
    %c0_56 = arith.constant 0 : index
    %c0_57 = arith.constant 0 : index
    %57 = vector.load %arg2[%c10_55, %c0_56, %c0_57] : memref<16x128x128xbf16, #tpu.memory_space<vmem>>, vector<1x128x128xbf16>
    %58 = vector.shape_cast %57 : vector<1x128x128xbf16> to vector<128x128xbf16>
    %cst_58 = arith.constant dense<0.000000e+00> : vector<25x128xf32>
    %59 = tpu.matmul %56, %58, %cst_58 {dimension_numbers = #tpu.dot_dimension_numbers<[1], [0], [0], [1], [0, 0, 1, 1], [], []>} : vector<25x128xbf16>, vector<128x128xbf16>, vector<25x128xf32> -> vector<25x128xf32>
    %60 = arith.addf %55, %59 : vector<25x128xf32>
    %c17 = arith.constant 17 : index
    %c0_59 = arith.constant 0 : index
    %61 = vector.load %arg7[%c17, %c0_59] : memref<49x128xbf16, #tpu.memory_space<vmem>>, vector<25x128xbf16>
    %c11 = arith.constant 11 : index
    %c0_60 = arith.constant 0 : index
    %c0_61 = arith.constant 0 : index
    %62 = vector.load %arg2[%c11, %c0_60, %c0_61] : memref<16x128x128xbf16, #tpu.memory_space<vmem>>, vector<1x128x128xbf16>
    %63 = vector.shape_cast %62 : vector<1x128x128xbf16> to vector<128x128xbf16>
    %cst_62 = arith.constant dense<0.000000e+00> : vector<25x128xf32>
    %64 = tpu.matmul %61, %63, %cst_62 {dimension_numbers = #tpu.dot_dimension_numbers<[1], [0], [0], [1], [0, 0, 1, 1], [], []>} : vector<25x128xbf16>, vector<128x128xbf16>, vector<25x128xf32> -> vector<25x128xf32>
    %65 = arith.addf %60, %64 : vector<25x128xf32>
    %c21 = arith.constant 21 : index
    %c0_63 = arith.constant 0 : index
    %66 = vector.load %arg7[%c21, %c0_63] : memref<49x128xbf16, #tpu.memory_space<vmem>>, vector<25x128xbf16>
    %c12 = arith.constant 12 : index
    %c0_64 = arith.constant 0 : index
    %c0_65 = arith.constant 0 : index
    %67 = vector.load %arg2[%c12, %c0_64, %c0_65] : memref<16x128x128xbf16, #tpu.memory_space<vmem>>, vector<1x128x128xbf16>
    %68 = vector.shape_cast %67 : vector<1x128x128xbf16> to vector<128x128xbf16>
    %cst_66 = arith.constant dense<0.000000e+00> : vector<25x128xf32>
    %69 = tpu.matmul %66, %68, %cst_66 {dimension_numbers = #tpu.dot_dimension_numbers<[1], [0], [0], [1], [0, 0, 1, 1], [], []>} : vector<25x128xbf16>, vector<128x128xbf16>, vector<25x128xf32> -> vector<25x128xf32>
    %70 = arith.addf %65, %69 : vector<25x128xf32>
    %c22 = arith.constant 22 : index
    %c0_67 = arith.constant 0 : index
    %71 = vector.load %arg7[%c22, %c0_67] : memref<49x128xbf16, #tpu.memory_space<vmem>>, vector<25x128xbf16>
    %c13 = arith.constant 13 : index
    %c0_68 = arith.constant 0 : index
    %c0_69 = arith.constant 0 : index
    %72 = vector.load %arg2[%c13, %c0_68, %c0_69] : memref<16x128x128xbf16, #tpu.memory_space<vmem>>, vector<1x128x128xbf16>
    %73 = vector.shape_cast %72 : vector<1x128x128xbf16> to vector<128x128xbf16>
    %cst_70 = arith.constant dense<0.000000e+00> : vector<25x128xf32>
    %74 = tpu.matmul %71, %73, %cst_70 {dimension_numbers = #tpu.dot_dimension_numbers<[1], [0], [0], [1], [0, 0, 1, 1], [], []>} : vector<25x128xbf16>, vector<128x128xbf16>, vector<25x128xf32> -> vector<25x128xf32>
    %75 = arith.addf %70, %74 : vector<25x128xf32>
    %c23 = arith.constant 23 : index
    %c0_71 = arith.constant 0 : index
    %76 = vector.load %arg7[%c23, %c0_71] : memref<49x128xbf16, #tpu.memory_space<vmem>>, vector<25x128xbf16>
    %c14_72 = arith.constant 14 : index
    %c0_73 = arith.constant 0 : index
    %c0_74 = arith.constant 0 : index
    %77 = vector.load %arg2[%c14_72, %c0_73, %c0_74] : memref<16x128x128xbf16, #tpu.memory_space<vmem>>, vector<1x128x128xbf16>
    %78 = vector.shape_cast %77 : vector<1x128x128xbf16> to vector<128x128xbf16>
    %cst_75 = arith.constant dense<0.000000e+00> : vector<25x128xf32>
    %79 = tpu.matmul %76, %78, %cst_75 {dimension_numbers = #tpu.dot_dimension_numbers<[1], [0], [0], [1], [0, 0, 1, 1], [], []>} : vector<25x128xbf16>, vector<128x128xbf16>, vector<25x128xf32> -> vector<25x128xf32>
    %80 = arith.addf %75, %79 : vector<25x128xf32>
    %c24_76 = arith.constant 24 : index
    %c0_77 = arith.constant 0 : index
    %81 = vector.load %arg7[%c24_76, %c0_77] : memref<49x128xbf16, #tpu.memory_space<vmem>>, vector<25x128xbf16>
    %c15_78 = arith.constant 15 : index
    %c0_79 = arith.constant 0 : index
    %c0_80 = arith.constant 0 : index
    %82 = vector.load %arg2[%c15_78, %c0_79, %c0_80] : memref<16x128x128xbf16, #tpu.memory_space<vmem>>, vector<1x128x128xbf16>
    %83 = vector.shape_cast %82 : vector<1x128x128xbf16> to vector<128x128xbf16>
    %cst_81 = arith.constant dense<0.000000e+00> : vector<25x128xf32>
    %84 = tpu.matmul %81, %83, %cst_81 {dimension_numbers = #tpu.dot_dimension_numbers<[1], [0], [0], [1], [0, 0, 1, 1], [], []>} : vector<25x128xbf16>, vector<128x128xbf16>, vector<25x128xf32> -> vector<25x128xf32>
    %85 = arith.addf %80, %84 : vector<25x128xf32>
    %c0_82 = arith.constant 0 : index
    %c0_83 = arith.constant 0 : index
    %86 = vector.load %arg3[%c0_82, %c0_83] : memref<1x128xf32, #tpu.memory_space<vmem>>, vector<1x128xf32>
    %87 = vector.broadcast %86 : vector<1x128xf32> to vector<25x128xf32>
    %88 = arith.addf %85, %87 : vector<25x128xf32>
    %89 = arith.mulf %88, %88 : vector<25x128xf32>
    %cst_84 = arith.constant dense<0.000000e+00> : vector<25xf32>
    %90 = vector.multi_reduction <add>, %89, %cst_84 [1] : vector<25x128xf32> to vector<25xf32>
    %91 = vector.shape_cast %90 : vector<25xf32> to vector<25x1xf32>
    %cst_85 = arith.constant 1.562500e-02 : f32
    %92 = vector.broadcast %cst_85 : f32 to vector<25x1xf32>
    %93 = arith.mulf %91, %92 : vector<25x1xf32>
    %cst_86 = arith.constant 9.99999993E-9 : f32
    %94 = vector.broadcast %cst_86 : f32 to vector<25x1xf32>
    %95 = arith.addf %93, %94 : vector<25x1xf32>
    %96 = math.rsqrt %95 : vector<25x1xf32>
    %97 = vector.broadcast %96 : vector<25x1xf32> to vector<25x128xf32>
    %98 = arith.mulf %88, %97 : vector<25x128xf32>
    %cst_87 = arith.constant 2.000000e-01 : f32
    %99 = vector.broadcast %cst_87 : f32 to vector<25x128xf32>
    %100 = arith.mulf %99, %98 : vector<25x128xf32>
    %101 = arith.maximumf %98, %100 : vector<25x128xf32>
    %cst_88 = arith.constant 0.000000e+00 : bf16
    %102 = vector.broadcast %cst_88 : bf16 to vector<36x128xbf16>
    %c0_89 = arith.constant 0 : index
    %c0_90 = arith.constant 0 : index
    %103 = vector.load %arg8[%c0_89, %c0_90] : memref<36x128xbf16, #tpu.memory_space<vmem>>, vector<36x128xbf16>
    tpu.vector_store %arg8[%c0_89, %c0_90], %102 {strides = array<i32>} : memref<36x128xbf16, #tpu.memory_space<vmem>>, vector<36x128xbf16>,
    %104 = vector.extract_strided_slice %101 {offsets = [0, 0], sizes = [4, 128], strides = [1, 1]} : vector<25x128xf32> to vector<4x128xf32>
    %105 = arith.truncf %104 : vector<4x128xf32> to vector<4x128xbf16>
    %c7_91 = arith.constant 7 : index
    %c0_92 = arith.constant 0 : index
    %106 = vector.load %arg8[%c7_91, %c0_92] : memref<36x128xbf16, #tpu.memory_space<vmem>>, vector<4x128xbf16>
    tpu.vector_store %arg8[%c7_91, %c0_92], %105 {strides = array<i32>} : memref<36x128xbf16, #tpu.memory_space<vmem>>, vector<4x128xbf16>,
    %107 = vector.extract_strided_slice %101 {offsets = [7, 0], sizes = [4, 128], strides = [1, 1]} : vector<25x128xf32> to vector<4x128xf32>
    %108 = arith.truncf %107 : vector<4x128xf32> to vector<4x128xbf16>
    %c13_93 = arith.constant 13 : index
    %c0_94 = arith.constant 0 : index
    %109 = vector.load %arg8[%c13_93, %c0_94] : memref<36x128xbf16, #tpu.memory_space<vmem>>, vector<4x128xbf16>
    tpu.vector_store %arg8[%c13_93, %c0_94], %108 {strides = array<i32>} : memref<36x128xbf16, #tpu.memory_space<vmem>>, vector<4x128xbf16>,
    %110 = vector.extract_strided_slice %101 {offsets = [14, 0], sizes = [4, 128], strides = [1, 1]} : vector<25x128xf32> to vector<4x128xf32>
    %111 = arith.truncf %110 : vector<4x128xf32> to vector<4x128xbf16>
    %c19 = arith.constant 19 : index
    %c0_95 = arith.constant 0 : index
    %112 = vector.load %arg8[%c19, %c0_95] : memref<36x128xbf16, #tpu.memory_space<vmem>>, vector<4x128xbf16>
    tpu.vector_store %arg8[%c19, %c0_95], %111 {strides = array<i32>} : memref<36x128xbf16, #tpu.memory_space<vmem>>, vector<4x128xbf16>,
    %113 = vector.extract_strided_slice %101 {offsets = [21, 0], sizes = [4, 128], strides = [1, 1]} : vector<25x128xf32> to vector<4x128xf32>
    %114 = arith.truncf %113 : vector<4x128xf32> to vector<4x128xbf16>
    %c25 = arith.constant 25 : index
    %c0_96 = arith.constant 0 : index
    %115 = vector.load %arg8[%c25, %c0_96] : memref<36x128xbf16, #tpu.memory_space<vmem>>, vector<4x128xbf16>
    tpu.vector_store %arg8[%c25, %c0_96], %114 {strides = array<i32>} : memref<36x128xbf16, #tpu.memory_space<vmem>>, vector<4x128xbf16>,
    %cst_97 = arith.constant 0.000000e+00 : f32
    %116 = vector.broadcast %cst_97 : f32 to vector<22x128xf32>
    %c0_98 = arith.constant 0 : index
    %c0_99 = arith.constant 0 : index
    %117 = vector.load %arg8[%c0_98, %c0_99] : memref<36x128xbf16, #tpu.memory_space<vmem>>, vector<22x128xbf16>
    %c0_100 = arith.constant 0 : index
    %c0_101 = arith.constant 0 : index
    %c0_102 = arith.constant 0 : index
    %118 = vector.load %arg4[%c0_100, %c0_101, %c0_102] : memref<9x128x128xbf16, #tpu.memory_space<vmem>>, vector<1x128x128xbf16>
    %119 = vector.shape_cast %118 : vector<1x128x128xbf16> to vector<128x128xbf16>
    %cst_103 = arith.constant dense<0.000000e+00> : vector<22x128xf32>
    %120 = tpu.matmul %117, %119, %cst_103 {dimension_numbers = #tpu.dot_dimension_numbers<[1], [0], [0], [1], [0, 0, 1, 1], [], []>} : vector<22x128xbf16>, vector<128x128xbf16>, vector<22x128xf32> -> vector<22x128xf32>
    %121 = arith.addf %116, %120 : vector<22x128xf32>
    %c1_104 = arith.constant 1 : index
    %c0_105 = arith.constant 0 : index
    %122 = vector.load %arg8[%c1_104, %c0_105] : memref<36x128xbf16, #tpu.memory_space<vmem>>, vector<22x128xbf16>
    %c1_106 = arith.constant 1 : index
    %c0_107 = arith.constant 0 : index
    %c0_108 = arith.constant 0 : index
    %123 = vector.load %arg4[%c1_106, %c0_107, %c0_108] : memref<9x128x128xbf16, #tpu.memory_space<vmem>>, vector<1x128x128xbf16>
    %124 = vector.shape_cast %123 : vector<1x128x128xbf16> to vector<128x128xbf16>
    %cst_109 = arith.constant dense<0.000000e+00> : vector<22x128xf32>
    %125 = tpu.matmul %122, %124, %cst_109 {dimension_numbers = #tpu.dot_dimension_numbers<[1], [0], [0], [1], [0, 0, 1, 1], [], []>} : vector<22x128xbf16>, vector<128x128xbf16>, vector<22x128xf32> -> vector<22x128xf32>
    %126 = arith.addf %121, %125 : vector<22x128xf32>
    %c2_110 = arith.constant 2 : index
    %c0_111 = arith.constant 0 : index
    %127 = vector.load %arg8[%c2_110, %c0_111] : memref<36x128xbf16, #tpu.memory_space<vmem>>, vector<22x128xbf16>
    %c2_112 = arith.constant 2 : index
    %c0_113 = arith.constant 0 : index
    %c0_114 = arith.constant 0 : index
    %128 = vector.load %arg4[%c2_112, %c0_113, %c0_114] : memref<9x128x128xbf16, #tpu.memory_space<vmem>>, vector<1x128x128xbf16>
    %129 = vector.shape_cast %128 : vector<1x128x128xbf16> to vector<128x128xbf16>
    %cst_115 = arith.constant dense<0.000000e+00> : vector<22x128xf32>
    %130 = tpu.matmul %127, %129, %cst_115 {dimension_numbers = #tpu.dot_dimension_numbers<[1], [0], [0], [1], [0, 0, 1, 1], [], []>} : vector<22x128xbf16>, vector<128x128xbf16>, vector<22x128xf32> -> vector<22x128xf32>
    %131 = arith.addf %126, %130 : vector<22x128xf32>
    %c6_116 = arith.constant 6 : index
    %c0_117 = arith.constant 0 : index
    %132 = vector.load %arg8[%c6_116, %c0_117] : memref<36x128xbf16, #tpu.memory_space<vmem>>, vector<22x128xbf16>
    %c3_118 = arith.constant 3 : index
    %c0_119 = arith.constant 0 : index
    %c0_120 = arith.constant 0 : index
    %133 = vector.load %arg4[%c3_118, %c0_119, %c0_120] : memref<9x128x128xbf16, #tpu.memory_space<vmem>>, vector<1x128x128xbf16>
    %134 = vector.shape_cast %133 : vector<1x128x128xbf16> to vector<128x128xbf16>
    %cst_121 = arith.constant dense<0.000000e+00> : vector<22x128xf32>
    %135 = tpu.matmul %132, %134, %cst_121 {dimension_numbers = #tpu.dot_dimension_numbers<[1], [0], [0], [1], [0, 0, 1, 1], [], []>} : vector<22x128xbf16>, vector<128x128xbf16>, vector<22x128xf32> -> vector<22x128xf32>
    %136 = arith.addf %131, %135 : vector<22x128xf32>
    %c7_122 = arith.constant 7 : index
    %c0_123 = arith.constant 0 : index
    %137 = vector.load %arg8[%c7_122, %c0_123] : memref<36x128xbf16, #tpu.memory_space<vmem>>, vector<22x128xbf16>
    %c4_124 = arith.constant 4 : index
    %c0_125 = arith.constant 0 : index
    %c0_126 = arith.constant 0 : index
    %138 = vector.load %arg4[%c4_124, %c0_125, %c0_126] : memref<9x128x128xbf16, #tpu.memory_space<vmem>>, vector<1x128x128xbf16>
    %139 = vector.shape_cast %138 : vector<1x128x128xbf16> to vector<128x128xbf16>
    %cst_127 = arith.constant dense<0.000000e+00> : vector<22x128xf32>
    %140 = tpu.matmul %137, %139, %cst_127 {dimension_numbers = #tpu.dot_dimension_numbers<[1], [0], [0], [1], [0, 0, 1, 1], [], []>} : vector<22x128xbf16>, vector<128x128xbf16>, vector<22x128xf32> -> vector<22x128xf32>
    %141 = arith.addf %136, %140 : vector<22x128xf32>
    %c8_128 = arith.constant 8 : index
    %c0_129 = arith.constant 0 : index
    %142 = vector.load %arg8[%c8_128, %c0_129] : memref<36x128xbf16, #tpu.memory_space<vmem>>, vector<22x128xbf16>
    %c5_130 = arith.constant 5 : index
    %c0_131 = arith.constant 0 : index
    %c0_132 = arith.constant 0 : index
    %143 = vector.load %arg4[%c5_130, %c0_131, %c0_132] : memref<9x128x128xbf16, #tpu.memory_space<vmem>>, vector<1x128x128xbf16>
    %144 = vector.shape_cast %143 : vector<1x128x128xbf16> to vector<128x128xbf16>
    %cst_133 = arith.constant dense<0.000000e+00> : vector<22x128xf32>
    %145 = tpu.matmul %142, %144, %cst_133 {dimension_numbers = #tpu.dot_dimension_numbers<[1], [0], [0], [1], [0, 0, 1, 1], [], []>} : vector<22x128xbf16>, vector<128x128xbf16>, vector<22x128xf32> -> vector<22x128xf32>
    %146 = arith.addf %141, %145 : vector<22x128xf32>
    %c12_134 = arith.constant 12 : index
    %c0_135 = arith.constant 0 : index
    %147 = vector.load %arg8[%c12_134, %c0_135] : memref<36x128xbf16, #tpu.memory_space<vmem>>, vector<22x128xbf16>
    %c6_136 = arith.constant 6 : index
    %c0_137 = arith.constant 0 : index
    %c0_138 = arith.constant 0 : index
    %148 = vector.load %arg4[%c6_136, %c0_137, %c0_138] : memref<9x128x128xbf16, #tpu.memory_space<vmem>>, vector<1x128x128xbf16>
    %149 = vector.shape_cast %148 : vector<1x128x128xbf16> to vector<128x128xbf16>
    %cst_139 = arith.constant dense<0.000000e+00> : vector<22x128xf32>
    %150 = tpu.matmul %147, %149, %cst_139 {dimension_numbers = #tpu.dot_dimension_numbers<[1], [0], [0], [1], [0, 0, 1, 1], [], []>} : vector<22x128xbf16>, vector<128x128xbf16>, vector<22x128xf32> -> vector<22x128xf32>
    %151 = arith.addf %146, %150 : vector<22x128xf32>
    %c13_140 = arith.constant 13 : index
    %c0_141 = arith.constant 0 : index
    %152 = vector.load %arg8[%c13_140, %c0_141] : memref<36x128xbf16, #tpu.memory_space<vmem>>, vector<22x128xbf16>
    %c7_142 = arith.constant 7 : index
    %c0_143 = arith.constant 0 : index
    %c0_144 = arith.constant 0 : index
    %153 = vector.load %arg4[%c7_142, %c0_143, %c0_144] : memref<9x128x128xbf16, #tpu.memory_space<vmem>>, vector<1x128x128xbf16>
    %154 = vector.shape_cast %153 : vector<1x128x128xbf16> to vector<128x128xbf16>
    %cst_145 = arith.constant dense<0.000000e+00> : vector<22x128xf32>
    %155 = tpu.matmul %152, %154, %cst_145 {dimension_numbers = #tpu.dot_dimension_numbers<[1], [0], [0], [1], [0, 0, 1, 1], [], []>} : vector<22x128xbf16>, vector<128x128xbf16>, vector<22x128xf32> -> vector<22x128xf32>
    %156 = arith.addf %151, %155 : vector<22x128xf32>
    %c14_146 = arith.constant 14 : index
    %c0_147 = arith.constant 0 : index
    %157 = vector.load %arg8[%c14_146, %c0_147] : memref<36x128xbf16, #tpu.memory_space<vmem>>, vector<22x128xbf16>
    %c8_148 = arith.constant 8 : index
    %c0_149 = arith.constant 0 : index
    %c0_150 = arith.constant 0 : index
    %158 = vector.load %arg4[%c8_148, %c0_149, %c0_150] : memref<9x128x128xbf16, #tpu.memory_space<vmem>>, vector<1x128x128xbf16>
    %159 = vector.shape_cast %158 : vector<1x128x128xbf16> to vector<128x128xbf16>
    %cst_151 = arith.constant dense<0.000000e+00> : vector<22x128xf32>
    %160 = tpu.matmul %157, %159, %cst_151 {dimension_numbers = #tpu.dot_dimension_numbers<[1], [0], [0], [1], [0, 0, 1, 1], [], []>} : vector<22x128xbf16>, vector<128x128xbf16>, vector<22x128xf32> -> vector<22x128xf32>
    %161 = arith.addf %156, %160 : vector<22x128xf32>
    %c0_152 = arith.constant 0 : index
    %c0_153 = arith.constant 0 : index
    %162 = vector.load %arg5[%c0_152, %c0_153] : memref<1x128xf32, #tpu.memory_space<vmem>>, vector<1x128xf32>
    %163 = vector.broadcast %162 : vector<1x128xf32> to vector<22x128xf32>
    %164 = arith.addf %161, %163 : vector<22x128xf32>
    %165 = arith.mulf %164, %164 : vector<22x128xf32>
    %cst_154 = arith.constant dense<0.000000e+00> : vector<22xf32>
    %166 = vector.multi_reduction <add>, %165, %cst_154 [1] : vector<22x128xf32> to vector<22xf32>
    %167 = vector.shape_cast %166 : vector<22xf32> to vector<22x1xf32>
    %cst_155 = arith.constant 1.562500e-02 : f32
    %168 = vector.broadcast %cst_155 : f32 to vector<22x1xf32>
    %169 = arith.mulf %167, %168 : vector<22x1xf32>
    %cst_156 = arith.constant 9.99999993E-9 : f32
    %170 = vector.broadcast %cst_156 : f32 to vector<22x1xf32>
    %171 = arith.addf %169, %170 : vector<22x1xf32>
    %172 = math.rsqrt %171 : vector<22x1xf32>
    %173 = vector.broadcast %172 : vector<22x1xf32> to vector<22x128xf32>
    %174 = arith.mulf %164, %173 : vector<22x128xf32>
    %cst_157 = arith.constant 2.000000e-01 : f32
    %175 = vector.broadcast %cst_157 : f32 to vector<22x128xf32>
    %176 = arith.mulf %175, %174 : vector<22x128xf32>
    %177 = arith.maximumf %174, %176 : vector<22x128xf32>
    %178 = vector.extract_strided_slice %177 {offsets = [0, 0], sizes = [4, 128], strides = [1, 1]} : vector<22x128xf32> to vector<4x128xf32>
    %179 = arith.truncf %178 : vector<4x128xf32> to vector<4x128xbf16>
    %c0_158 = arith.constant 0 : index
    %c0_159 = arith.constant 0 : index
    %c0_160 = arith.constant 0 : index
    %180 = vector.load %arg6[%c0_158, %c0_159, %c0_160] : memref<1x16x128xbf16, #tpu.memory_space<vmem>>, vector<1x4x128xbf16>
    %181 = vector.shape_cast %180 : vector<1x4x128xbf16> to vector<4x128xbf16>
    %182 = vector.shape_cast %179 : vector<4x128xbf16> to vector<1x4x128xbf16>
    tpu.vector_store %arg6[%c0_158, %c0_159, %c0_160], %182 {strides = array<i32>} : memref<1x16x128xbf16, #tpu.memory_space<vmem>>, vector<1x4x128xbf16>,
    %183 = vector.extract_strided_slice %177 {offsets = [6, 0], sizes = [4, 128], strides = [1, 1]} : vector<22x128xf32> to vector<4x128xf32>
    %184 = arith.truncf %183 : vector<4x128xf32> to vector<4x128xbf16>
    %c0_161 = arith.constant 0 : index
    %c4_162 = arith.constant 4 : index
    %c0_163 = arith.constant 0 : index
    %185 = vector.load %arg6[%c0_161, %c4_162, %c0_163] : memref<1x16x128xbf16, #tpu.memory_space<vmem>>, vector<1x4x128xbf16>
    %186 = vector.shape_cast %185 : vector<1x4x128xbf16> to vector<4x128xbf16>
    %187 = vector.shape_cast %184 : vector<4x128xbf16> to vector<1x4x128xbf16>
    tpu.vector_store %arg6[%c0_161, %c4_162, %c0_163], %187 {strides = array<i32>} : memref<1x16x128xbf16, #tpu.memory_space<vmem>>, vector<1x4x128xbf16>,
    %188 = vector.extract_strided_slice %177 {offsets = [12, 0], sizes = [4, 128], strides = [1, 1]} : vector<22x128xf32> to vector<4x128xf32>
    %189 = arith.truncf %188 : vector<4x128xf32> to vector<4x128xbf16>
    %c0_164 = arith.constant 0 : index
    %c8_165 = arith.constant 8 : index
    %c0_166 = arith.constant 0 : index
    %190 = vector.load %arg6[%c0_164, %c8_165, %c0_166] : memref<1x16x128xbf16, #tpu.memory_space<vmem>>, vector<1x4x128xbf16>
    %191 = vector.shape_cast %190 : vector<1x4x128xbf16> to vector<4x128xbf16>
    %192 = vector.shape_cast %189 : vector<4x128xbf16> to vector<1x4x128xbf16>
    tpu.vector_store %arg6[%c0_164, %c8_165, %c0_166], %192 {strides = array<i32>} : memref<1x16x128xbf16, #tpu.memory_space<vmem>>, vector<1x4x128xbf16>,
    %193 = vector.extract_strided_slice %177 {offsets = [18, 0], sizes = [4, 128], strides = [1, 1]} : vector<22x128xf32> to vector<4x128xf32>
    %194 = arith.truncf %193 : vector<4x128xf32> to vector<4x128xbf16>
    %c0_167 = arith.constant 0 : index
    %c12_168 = arith.constant 12 : index
    %c0_169 = arith.constant 0 : index
    %195 = vector.load %arg6[%c0_167, %c12_168, %c0_169] : memref<1x16x128xbf16, #tpu.memory_space<vmem>>, vector<1x4x128xbf16>
    %196 = vector.shape_cast %195 : vector<1x4x128xbf16> to vector<4x128xbf16>
    %197 = vector.shape_cast %194 : vector<4x128xbf16> to vector<1x4x128xbf16>
    tpu.vector_store %arg6[%c0_167, %c12_168, %c0_169], %197 {strides = array<i32>} : memref<1x16x128xbf16, #tpu.memory_space<vmem>>, vector<1x4x128xbf16>,
    return
  }
  func.func @transform_0(%arg0: i32) -> (i32, i32, i32) {
    %c0_i32 = arith.constant 0 : i32
    %c0_i32_0 = arith.constant 0 : i32
    %c0_i32_1 = arith.constant 0 : i32
    return %arg0, %c0_i32, %c0_i32_0 : i32, i32, i32
  }
  func.func @transform_1(%arg0: i32) -> (i32, i32, i32) {
    %c0_i32 = arith.constant 0 : i32
    %c0_i32_0 = arith.constant 0 : i32
    %c0_i32_1 = arith.constant 0 : i32
    %c0_i32_2 = arith.constant 0 : i32
    return %c0_i32, %c0_i32_0, %c0_i32_1 : i32, i32, i32
  }
  func.func @transform_2(%arg0: i32) -> (i32, i32) {
    %c0_i32 = arith.constant 0 : i32
    %c0_i32_0 = arith.constant 0 : i32
    %c0_i32_1 = arith.constant 0 : i32
    return %c0_i32, %c0_i32_0 : i32, i32
  }
  func.func @transform_3(%arg0: i32) -> (i32, i32, i32) {
    %c0_i32 = arith.constant 0 : i32
    %c0_i32_0 = arith.constant 0 : i32
    %c0_i32_1 = arith.constant 0 : i32
    %c0_i32_2 = arith.constant 0 : i32
    return %c0_i32, %c0_i32_0, %c0_i32_1 : i32, i32, i32
  }
  func.func @transform_4(%arg0: i32) -> (i32, i32) {
    %c0_i32 = arith.constant 0 : i32
    %c0_i32_0 = arith.constant 0 : i32
    %c0_i32_1 = arith.constant 0 : i32
    return %c0_i32, %c0_i32_0 : i32, i32
  }
  func.func @transform_5(%arg0: i32) -> (i32, i32, i32) {
    %c0_i32 = arith.constant 0 : i32
    %c0_i32_0 = arith.constant 0 : i32
    %c0_i32_1 = arith.constant 0 : i32
    return %arg0, %c0_i32, %c0_i32_0 : i32, i32, i32
  }
}

</mosaic_0001>

<llo_original>
// kernel: tpu_custom_call.1
$region0: #{tpu_custom_call.1}
  #allocation0 [shape = 'u32[]', space=smem, size = 0x4, offset = 0x4, fixed_abs, tag = 'smem constant byte address 0x4 - core index']
  #allocation1 [shape = 'u32[144,128]{1,0:T(1,128)}', space=vmem, size = 0x12000, scoped, tag = 'internal scratch']
  #allocation2 [shape = 'bf16[49,128]{1,0:T(8,128)(2,1)}', space=vmem, size = 0x3800, scoped, tag = 'scratch operand']
  #allocation3 [shape = 'bf16[36,128]{1,0:T(8,128)(2,1)}', space=vmem, size = 0x2800, scoped, tag = 'scratch operand']
  %s0 = inlined_call_operand.vmem [shape: bf16[2,1,128], index: 0, kind: input, shape index: {}]
  %s1 = inlined_call_operand.hbm [shape: bf16[16,128,128], index: 1, kind: input, shape index: {}]
  %s2 = inlined_call_operand.vmem [shape: f32[1,128], index: 2, kind: input, shape index: {}]
  %s3 = inlined_call_operand.hbm [shape: bf16[9,128,128], index: 3, kind: input, shape index: {}]
  %s4 = inlined_call_operand.vmem [shape: f32[1,128], index: 4, kind: input, shape index: {}]
  %s5 = inlined_call_operand.hbm [shape: bf16[2,16,128], index: 5, kind: output, shape index: {}]
  %s6 = sld [smem:[#allocation0]]
  $region61: #{tpu_custom_call.1} parent=0
    _
  %s8 = ssub.s32 1, %s6
  %s9 = scalar_select 0, %s8, %s6
  $region1: #{tpu_custom_call.1} parent=0
    #allocation4 [shape = 'u8[524288]{0}', space=vmem, size = 0x80000, scoped, tag = 'input window, operand 1, single buffered']
    #allocation5 [shape = 's32[2]{0}', space=sflag, size = 0x8, scoped, tag = 'scoped memory for tpu_custom_call.1']
    #allocation6 [shape = 's32[2]{0}', space=sflag, size = 0x8, scoped, tag = 'scoped memory for tpu_custom_call.1']
    #allocation7 [shape = 'u8[294912]{0}', space=vmem, size = 0x48000, scoped, tag = 'input window, operand 3, single buffered']
    #allocation8 [shape = 's32[1]{0}', space=sflag, size = 0x4, scoped, tag = 'scoped memory for tpu_custom_call.1']
    #allocation9 [shape = 'u8[8192]{0}', space=vmem, size = 0x2000, scoped, tag = 'output window, operand 0']
    %10 = vsyncpa [#allocation5], 0
    %11 = vsyncpa [#allocation8], 0
    %12 = vsyncpa [#allocation6], 0
    %s13 = scalar_lea.sflag [#allocation6], 1
    %14 = vsyncpa %s13, 0
    loop: start=0, step=1, limit=4
    $region2: #{tpu_custom_call.1} parent=1 // loop_pre_header
      _
    $region3: #{tpu_custom_call.1} parent=1 // loop_header
      %s16 = sphi 0, %s20
      %p17 = scmp.ge.s32.totalorder %s16, 4
      %s26 = sphi 0, %s28
      %s29 = sphi 0, %s26
      %s30 = sphi 0, %s29
      %s46 = sphi 0, %s30
      %s50 = sphi 0, %s50
      %s52 = sphi 0, %s50
      %s53 = sphi 0, %s52
      %s67 = sphi 0, %s53
      %s71 = sphi 0, %s71
      %s73 = sphi 0, %s71
      %s74 = sphi 0, %s73
      %s88 = sphi 0, %s74
      %s92 = sphi 0, %s92
      %s94 = sphi 0, %s92
      %s95 = sphi 0, %s94
      %s109 = sphi 0, %s95
      %s113 = sphi 0, %s113
      %s115 = sphi 0, %s113
      %s116 = sphi 0, %s115
      %s130 = sphi 0, %s116
      %s136 = sphi 0, %s138
      %s139 = sphi 0, %s136
      %s140 = sphi 0, %s139
      %s156 = sphi 0, %s140
    $region4: #{tpu_custom_call.1} parent=1 // loop_header_branch
      %19 = sbr.rel (%p17) target = $region8
    $region5: #{tpu_custom_call.1} parent=1 // loop_body
      %s21 = ssub.s32 %s16, 1
      %s22 = ssub.s32 %s16, 2
      %s23 = sadd.s32 %s16, 1
      %s24 = ssub.s32 %s16, %s23
      %p25 = scmp.eq.s32.totalorder %s24, 0
      %s27 = sadd.s32 %s26, 1
      %s28 = scalar_select %p25, %s26, %s27
      %p31 = pneg %p25
      %p32 = scmp.eq.s32.totalorder %s16, 1
      %p33 = por %p31, %p32
      %p34 = scmp.ne.s32.totalorder %s26, %s29
      %p35 = scmp.eq.s32.totalorder %s16, 0
      %p36 = por %p34, %p35
      %p37 = scmp.ne.s32.totalorder %s26, %s29
      %p38 = scmp.eq.s32.totalorder %s21, 1
      %p39 = por %p37, %p38
      %p40 = scmp.ne.s32.totalorder %s29, %s30
      %p41 = scmp.eq.s32.totalorder %s21, 0
      %p42 = por %p40, %p41
      %p43 = scmp.ne.s32.totalorder %s29, %s30
      %p44 = scmp.eq.s32.totalorder %s22, 1
      %p45 = por %p43, %p44
      %p47 = scmp.ne.s32.totalorder %s30, %s46
      %p48 = scmp.eq.s32.totalorder %s22, 0
      %p49 = por %p47, %p48
      %s51 = sadd.s32 %s50, 1
      %p54 = scmp.eq.s32.totalorder %s16, 1
      %p55 = scmp.ne.s32.totalorder %s50, %s52
      %p56 = scmp.eq.s32.totalorder %s16, 0
      %p57 = por %p55, %p56
      %p58 = scmp.ne.s32.totalorder %s50, %s52
      %p59 = scmp.eq.s32.totalorder %s21, 1
      %p60 = por %p58, %p59
      %p61 = scmp.ne.s32.totalorder %s52, %s53
      %p62 = scmp.eq.s32.totalorder %s21, 0
      %p63 = por %p61, %p62
      %p64 = scmp.ne.s32.totalorder %s52, %s53
      %p65 = scmp.eq.s32.totalorder %s22, 1
      %p66 = por %p64, %p65
      %p68 = scmp.ne.s32.totalorder %s53, %s67
      %p69 = scmp.eq.s32.totalorder %s22, 0
      %p70 = por %p68, %p69
      %s72 = sadd.s32 %s71, 1
      %p75 = scmp.eq.s32.totalorder %s16, 1
      %p76 = scmp.ne.s32.totalorder %s71, %s73
      %p77 = scmp.eq.s32.totalorder %s16, 0
      %p78 = por %p76, %p77
      %p79 = scmp.ne.s32.totalorder %s71, %s73
      %p80 = scmp.eq.s32.totalorder %s21, 1
      %p81 = por %p79, %p80
      %p82 = scmp.ne.s32.totalorder %s73, %s74
      %p83 = scmp.eq.s32.totalorder %s21, 0
      %p84 = por %p82, %p83
      %p85 = scmp.ne.s32.totalorder %s73, %s74
      %p86 = scmp.eq.s32.totalorder %s22, 1
      %p87 = por %p85, %p86
      %p89 = scmp.ne.s32.totalorder %s74, %s88
      %p90 = scmp.eq.s32.totalorder %s22, 0
      %p91 = por %p89, %p90
      %s93 = sadd.s32 %s92, 1
      %p96 = scmp.eq.s32.totalorder %s16, 1
      %p97 = scmp.ne.s32.totalorder %s92, %s94
      %p98 = scmp.eq.s32.totalorder %s16, 0
      %p99 = por %p97, %p98
      %p100 = scmp.ne.s32.totalorder %s92, %s94
      %p101 = scmp.eq.s32.totalorder %s21, 1
      %p102 = por %p100, %p101
      %p103 = scmp.ne.s32.totalorder %s94, %s95
      %p104 = scmp.eq.s32.totalorder %s21, 0
      %p105 = por %p103, %p104
      %p106 = scmp.ne.s32.totalorder %s94, %s95
      %p107 = scmp.eq.s32.totalorder %s22, 1
      %p108 = por %p106, %p107
      %p110 = scmp.ne.s32.totalorder %s95, %s109
      %p111 = scmp.eq.s32.totalorder %s22, 0
      %p112 = por %p110, %p111
      %s114 = sadd.s32 %s113, 1
      %p117 = scmp.eq.s32.totalorder %s16, 1
      %p118 = scmp.ne.s32.totalorder %s113, %s115
      %p119 = scmp.eq.s32.totalorder %s16, 0
      %p120 = por %p118, %p119
      %p121 = scmp.ne.s32.totalorder %s113, %s115
      %p122 = scmp.eq.s32.totalorder %s21, 1
      %p123 = por %p121, %p122
      %p124 = scmp.ne.s32.totalorder %s115, %s116
      %p125 = scmp.eq.s32.totalorder %s21, 0
      %p126 = por %p124, %p125
      %p127 = scmp.ne.s32.totalorder %s115, %s116
      %p128 = scmp.eq.s32.totalorder %s22, 1
      %p129 = por %p127, %p128
      %p131 = scmp.ne.s32.totalorder %s116, %s130
      %p132 = scmp.eq.s32.totalorder %s22, 0
      %p133 = por %p131, %p132
      %s134 = ssub.s32 %s16, %s23
      %p135 = scmp.eq.s32.totalorder %s134, 0
      %s137 = sadd.s32 %s136, 1
      %s138 = scalar_select %p135, %s136, %s137
      %p141 = pneg %p135
      %p142 = scmp.eq.s32.totalorder %s16, 1
      %p143 = por %p141, %p142
      %p144 = scmp.ne.s32.totalorder %s136, %s139
      %p145 = scmp.eq.s32.totalorder %s16, 0
      %p146 = por %p144, %p145
      %p147 = scmp.ne.s32.totalorder %s136, %s139
      %p148 = scmp.eq.s32.totalorder %s21, 1
      %p149 = por %p147, %p148
      %p150 = scmp.ne.s32.totalorder %s139, %s140
      %p151 = scmp.eq.s32.totalorder %s21, 0
      %p152 = por %p150, %p151
      %p153 = scmp.ne.s32.totalorder %s139, %s140
      %p154 = scmp.eq.s32.totalorder %s22, 1
      %p155 = por %p153, %p154
      %p157 = scmp.ne.s32.totalorder %s140, %s156
      %p158 = scmp.eq.s32.totalorder %s22, 0
      %p159 = por %p157, %p158
      %p160 = scmp.le.s32.totalorder 1, %s16
      %p161 = scmp.lt.s32.totalorder %s16, 3
      %p162 = pnand %p160, %p161
      %p163 = pneg %p162
      // Predicated region
      $region9: #{tpu_custom_call.1} parent=5 // pred_check
        _
      $region10: #{tpu_custom_call.1} parent=5 // pred_check_branch
        %165 = sbr.rel (%p162) target = $region12
      $region11: #{tpu_custom_call.1} parent=5 // pred_region
        %s166 = ssub.s32 %s16, 1
        // Predicated region
        $region13: #{tpu_custom_call.1} parent=11 // pred_check
          %p167 = pneg %p63
        $region14: #{tpu_custom_call.1} parent=11 // pred_check_branch
          %169 = sbr.rel (%p167) target = $region16
        $region15: #{tpu_custom_call.1} parent=11 // pred_region
          %s171 = ssub.s32 16384, 16384
          %172 = vsyncadd [#allocation5], %s171
          %s173 = sshll.u32 [#allocation4], 4
          %s174 = int_to_ptr.vmem [resolvable:$true] %s173
          %179 = dma.hbm_to_vmem [thread:$0]  %s1, 16384, %s174, [#allocation5], 64, 64, 4
        $region16: #{tpu_custom_call.1} parent=11 // pred_fallthru
          _
        // Predicated region
        $region17: #{tpu_custom_call.1} parent=11 // pred_check
          %p180 = pneg %p84
        $region18: #{tpu_custom_call.1} parent=11 // pred_check_branch
          %182 = sbr.rel (%p180) target = $region20
        $region19: #{tpu_custom_call.1} parent=11 // pred_region
          _
        $region20: #{tpu_custom_call.1} parent=11 // pred_fallthru
          _
        // Predicated region
        $region21: #{tpu_custom_call.1} parent=11 // pred_check
          %p183 = pneg %p105
        $region22: #{tpu_custom_call.1} parent=11 // pred_check_branch
          %185 = sbr.rel (%p183) target = $region24
        $region23: #{tpu_custom_call.1} parent=11 // pred_region
          %s187 = ssub.s32 9216, 9216
          %188 = vsyncadd [#allocation8], %s187
          %s189 = sshll.u32 [#allocation7], 4
          %s190 = int_to_ptr.vmem [resolvable:$true] %s189
          %195 = dma.hbm_to_vmem [thread:$0]  %s3, 9216, %s190, [#allocation8], 64, 64, 4
        $region24: #{tpu_custom_call.1} parent=11 // pred_fallthru
          _
        // Predicated region
        $region25: #{tpu_custom_call.1} parent=11 // pred_check
          %p196 = pneg %p126
        $region26: #{tpu_custom_call.1} parent=11 // pred_check_branch
          %198 = sbr.rel (%p196) target = $region28
        $region27: #{tpu_custom_call.1} parent=11 // pred_region
          _
        $region28: #{tpu_custom_call.1} parent=11 // pred_fallthru
          _
      $region12: #{tpu_custom_call.1} parent=5 // pred_fallthru
        _
      %p199 = scmp.lt.s32.totalorder %s16, 2
      // Predicated region
      $region29: #{tpu_custom_call.1} parent=5 // pred_check
        %p200 = pneg %p199
      $region30: #{tpu_custom_call.1} parent=5 // pred_check_branch
        %202 = sbr.rel (%p200) target = $region32
      $region31: #{tpu_custom_call.1} parent=5 // pred_region
        // Predicated region
        $region33: #{tpu_custom_call.1} parent=31 // pred_check
          %p203 = pneg %p36
        $region34: #{tpu_custom_call.1} parent=31 // pred_check_branch
          %205 = sbr.rel (%p203) target = $region36
        $region35: #{tpu_custom_call.1} parent=31 // pred_region
          %p206 = scmp.lt.s32.totalorder %s16, 1
          %s207 = scalar_select %p206, %s16, 1
          %s208 = scalar_lea.vmem %s0, %s207
        $region36: #{tpu_custom_call.1} parent=31 // pred_fallthru
          _
      $region32: #{tpu_custom_call.1} parent=5 // pred_fallthru
        _
      %p209 = scmp.le.s32.totalorder 1, %s16
      %p210 = scmp.lt.s32.totalorder %s16, 3
      %p211 = pnand %p209, %p210
      %p212 = pneg %p211
      // Predicated region
      $region37: #{tpu_custom_call.1} parent=5 // pred_check
        _
      $region38: #{tpu_custom_call.1} parent=5 // pred_check_branch
        %214 = sbr.rel (%p211) target = $region40
      $region39: #{tpu_custom_call.1} parent=5 // pred_region
        %s215 = ssub.s32 %s16, 1
        // Predicated region
        $region41: #{tpu_custom_call.1} parent=39 // pred_check
          %p216 = pneg %p63
        $region42: #{tpu_custom_call.1} parent=39 // pred_check_branch
          %218 = sbr.rel (%p216) target = $region44
        $region43: #{tpu_custom_call.1} parent=39 // pred_region
          %219 = dma.done [#allocation5], 16384
        $region44: #{tpu_custom_call.1} parent=39 // pred_fallthru
          _
        // Predicated region
        $region45: #{tpu_custom_call.1} parent=39 // pred_check
          %p220 = pneg %p105
        $region46: #{tpu_custom_call.1} parent=39 // pred_check_branch
          %222 = sbr.rel (%p220) target = $region48
        $region47: #{tpu_custom_call.1} parent=39 // pred_region
          %223 = dma.done [#allocation8], 9216
        $region48: #{tpu_custom_call.1} parent=39 // pred_fallthru
          _
        %p224 = scmp.lt.s32.totalorder %s21, 1
        %s225 = scalar_select %p224, %s21, 1
        %s226 = scalar_lea.vmem %s0, %s225
        %p227 = pneg %p42
        %p228 = pneg %p39
        %p229 = pneg %p63
        %p230 = pneg %p60
        %p231 = pneg %p84
        %p232 = pneg %p81
        %p233 = pneg %p105
        %p234 = pneg %p102
        %p235 = pneg %p126
        %p236 = pneg %p123
        %p237 = pneg %p152
        %p238 = pneg %p149
        %s239 = sand.u32 %s139, 1
        %s240 = scalar_lea.sflag [#allocation6], %s239
        %s241 = sand.u32 %s139, 1
        %s242 = smul.addr %s241, 8
        %s243 = scalar_lea.vmem [#allocation9], %s242
        %p244 = scmp.lt.s32.totalorder %s21, 1
        %s245 = scalar_select %p244, %s21, 1
        %s246 = scalar_lea.vmem %s0, %s245
        %248 = vst [vmem:[#allocation2] sm:$0xf] 0
        %249 = vst [vmem:[#allocation2 + $0x4] sm:$0xf] 0
        %250 = vst [vmem:[#allocation2 + $0x8] sm:$0xf] 0
        %251 = vst [vmem:[#allocation2 + $0xc] sm:$0xf] 0
        %252 = vst [vmem:[#allocation2 + $0x10] sm:$0xf] 0
        %253 = vst [vmem:[#allocation2 + $0x14] sm:$0xf] 0
        %vm254 = vcmask 1040384
        %vm255 = vsmask.f32 256
        %vm256 = vmand %vm254, %vm255
        %v257 = vld [vmem:[#allocation2 + $0x18] sm:$0x1]
        %v258 = vsel %vm256, 0, %v257
        %259 = vst [vmem:[#allocation2 + $0x18] sm:$0x1] %v258
        %v260 = vld [vmem:[%s246] sm:$0x1]
        %v261 = vld [vmem:[#allocation2 + $0xc] sm:$0x1]
        %v262 = vsel %vm256, %v260, %v261
        %263 = vst [vmem:[#allocation2 + $0xc] sm:$0x1] %v262
        %v264 = vld [vmem:[#allocation2] sm:$0xf]
        %v265 = vld [vmem:[#allocation2 + $0x4] sm:$0xf]
        %v266 = vld [vmem:[#allocation2 + $0x8] sm:$0xf]
        %v267 = vld [vmem:[#allocation2 + $0xc] sm:$0x1]
        %v268 = vld [vmem:[#allocation4] sm:$0xf]
        %v269 = vld [vmem:[#allocation4 + $0x4] sm:$0xf]
        %v270 = vld [vmem:[#allocation4 + $0x8] sm:$0xf]
        %v271 = vld [vmem:[#allocation4 + $0xc] sm:$0xf]
        %v272 = vld [vmem:[#allocation4 + $0x10] sm:$0xf]
        %v273 = vld [vmem:[#allocation4 + $0x14] sm:$0xf]
        %v274 = vld [vmem:[#allocation4 + $0x18] sm:$0xf]
        %v275 = vld [vmem:[#allocation4 + $0x1c] sm:$0xf]
        %v276 = vld [vmem:[#allocation4 + $0x20] sm:$0xf]
        %v277 = vld [vmem:[#allocation4 + $0x24] sm:$0xf]
        %v278 = vld [vmem:[#allocation4 + $0x28] sm:$0xf]
        %v279 = vld [vmem:[#allocation4 + $0x2c] sm:$0xf]
        %v280 = vld [vmem:[#allocation4 + $0x30] sm:$0xf]
        %v281 = vld [vmem:[#allocation4 + $0x34] sm:$0xf]
        %v282 = vld [vmem:[#allocation4 + $0x38] sm:$0xf]
        %v283 = vld [vmem:[#allocation4 + $0x3c] sm:$0xf]
        %s284 = scalar_lea.vmem [#allocation4], 64
        %v285 = vld [vmem:[%s284] sm:$0xf]
        %v286 = vld [vmem:[%s284 + $0x4] sm:$0xf]
        %v287 = vld [vmem:[%s284 + $0x8] sm:$0xf]
        %v288 = vld [vmem:[%s284 + $0xc] sm:$0xf]
        %v289 = vld [vmem:[%s284 + $0x10] sm:$0xf]
        %v290 = vld [vmem:[%s284 + $0x14] sm:$0xf]
        %v291 = vld [vmem:[%s284 + $0x18] sm:$0xf]
        %v292 = vld [vmem:[%s284 + $0x1c] sm:$0xf]
        %v293 = vld [vmem:[%s284 + $0x20] sm:$0xf]
        %v294 = vld [vmem:[%s284 + $0x24] sm:$0xf]
        %v295 = vld [vmem:[%s284 + $0x28] sm:$0xf]
        %v296 = vld [vmem:[%s284 + $0x2c] sm:$0xf]
        %v297 = vld [vmem:[%s284 + $0x30] sm:$0xf]
        %v298 = vld [vmem:[%s284 + $0x34] sm:$0xf]
        %v299 = vld [vmem:[%s284 + $0x38] sm:$0xf]
        %v300 = vld [vmem:[%s284 + $0x3c] sm:$0xf]
        %v305 = vunpack.c.l.b16 %v264
        %v306 = vunpack.c.l.b16 %v265
        %v307 = vunpack.c.l.b16 %v266
        %v308 = vunpack.c.l.b16 %v267
        %v309 = vpack.c.b16 %v306, %v305
        %v310 = vpack.c.b16 %v308, %v307
        %vm311 = vsmask.f32 7424
        %v313 = vshrl.u32 %v309, 16
        %v315 = vshll.u32 %v309, 16
        %v317 = vrot.slane %v315, 1
        %v318 = vor.u32 %v313, %v317
        %v320 = vshll.u32 %v310, 16
        %v322 = vrot.slane %v320, 1
        %v323 = vsel %vm311, %v318, %v322
        %v324 = vshrl.u32 %v310, 16
        %v326 = vor.u32 %v324, %v322
        %v345 = vunpack.c.l.b16 %v285
        %v346 = vunpack.c.l.b16 %v286
        %v347 = vunpack.c.l.b16 %v287
        %v348 = vunpack.c.l.b16 %v288
        %v349 = vunpack.c.l.b16 %v289
        %v350 = vunpack.c.l.b16 %v290
        %v351 = vunpack.c.l.b16 %v291
        %v352 = vunpack.c.l.b16 %v292
        %v353 = vunpack.c.l.b16 %v293
        %v354 = vunpack.c.l.b16 %v294
        %v355 = vunpack.c.l.b16 %v295
        %v356 = vunpack.c.l.b16 %v296
        %v357 = vunpack.c.l.b16 %v297
        %v358 = vunpack.c.l.b16 %v298
        %v359 = vunpack.c.l.b16 %v299
        %v360 = vunpack.c.l.b16 %v300
        %v361 = vpack.c.b16 %v346, %v345
        %v362 = vpack.c.b16 %v348, %v347
        %v363 = vpack.c.b16 %v350, %v349
        %v364 = vpack.c.b16 %v352, %v351
        %v365 = vpack.c.b16 %v354, %v353
        %v366 = vpack.c.b16 %v356, %v355
        %v367 = vpack.c.b16 %v358, %v357
        %v368 = vpack.c.b16 %v360, %v359
        %377 = vmatprep.subr.bf16.mxu0 0
        %378 = vmatpush1.bf16.msra.mxu0 %v361
        %379 = vmatprep.subr.bf16.mxu0 0
        %380 = vmatpush1.bf16.msra.mxu0 %v362
        %381 = vmatprep.subr.bf16.mxu0 0
        %382 = vmatpush1.bf16.msra.mxu0 %v363
        %383 = vmatprep.subr.bf16.mxu0 0
        %384 = vmatpush1.bf16.msra.mxu0 %v364
        %385 = vmatprep.subr.bf16.mxu0 0
        %386 = vmatpush1.bf16.msra.mxu0 %v365
        %387 = vmatprep.subr.bf16.mxu0 0
        %388 = vmatpush1.bf16.msra.mxu0 %v366
        %389 = vmatprep.subr.bf16.mxu0 0
        %390 = vmatpush1.bf16.msra.mxu0 %v367
        %391 = vmatprep.subr.bf16.mxu0 0
        %392 = vmatpush1.bf16.msra.mxu0 %v368
        %393 = vmatprep.subr.bf16.mxu0 0
        %394 = vmatpush1.bf16.msra.mxu0 0
        %395 = vmatprep.subr.bf16.mxu0 0
        %396 = vmatpush1.bf16.msra.mxu0 0
        %397 = vmatprep.subr.bf16.mxu0 0
        %398 = vmatpush1.bf16.msra.mxu0 0
        %399 = vmatprep.subr.bf16.mxu0 0
        %400 = vmatpush1.bf16.msra.mxu0 0
        %401 = vmatprep.subr.bf16.mxu0 0
        %402 = vmatpush1.bf16.msra.mxu0 0
        %403 = vmatprep.subr.bf16.mxu0 0
        %404 = vmatpush1.bf16.msra.mxu0 0
        %405 = vmatprep.subr.bf16.mxu0 0
        %406 = vmatpush1.bf16.msra.mxu0 0
        %407 = vmatprep.subr.bf16.mxu0 0
        %408 = vmatpush1.bf16.msra.mxu0 0
        %409 = vmatprep.mubr.bf16.mxu0 0
        %410 = vmatmul.mubr.bf16.gmra.mrb[0].mxu0 %v323
        %v411 = vpop.f32.mrb[0].mxu0
        %v412 = vadd.f32 0.0, %v411
        %v413 = vpop.f32.mrb[0].mxu0
        %v414 = vpop.f32.mrb[0].mxu0
        %v415 = vadd.f32 0.0, %v414
        %v416 = vpop.f32.mrb[0].mxu0
        %417 = vmatprep.mubr.bf16.mxu0 0
        %418 = vmatmul.mubr.bf16.gmra.mrb[0].mxu0 %v326
        %v419 = vpop.f32.mrb[0].mxu0
        %v420 = vadd.f32 0.0, %v419
        %v421 = vpop.f32.mrb[0].mxu0
        %v422 = vpop.f32.mrb[0].mxu0
        %v423 = vadd.f32 0.0, %v422
        %v424 = vpop.f32.mrb[0].mxu0
        %425 = vdwg.mxu0
        %v444 = vunpack.c.l.b16 %v268
        %v445 = vunpack.c.l.b16 %v269
        %v446 = vunpack.c.l.b16 %v270
        %v447 = vunpack.c.l.b16 %v271
        %v448 = vunpack.c.l.b16 %v272
        %v449 = vunpack.c.l.b16 %v273
        %v450 = vunpack.c.l.b16 %v274
        %v451 = vunpack.c.l.b16 %v275
        %v452 = vunpack.c.l.b16 %v276
        %v453 = vunpack.c.l.b16 %v277
        %v454 = vunpack.c.l.b16 %v278
        %v455 = vunpack.c.l.b16 %v279
        %v456 = vunpack.c.l.b16 %v280
        %v457 = vunpack.c.l.b16 %v281
        %v458 = vunpack.c.l.b16 %v282
        %v459 = vunpack.c.l.b16 %v283
        %v460 = vpack.c.b16 %v445, %v444
        %v461 = vpack.c.b16 %v447, %v446
        %v462 = vpack.c.b16 %v449, %v448
        %v463 = vpack.c.b16 %v451, %v450
        %v464 = vpack.c.b16 %v453, %v452
        %v465 = vpack.c.b16 %v455, %v454
        %v466 = vpack.c.b16 %v457, %v456
        %v467 = vpack.c.b16 %v459, %v458
        %476 = vmatprep.subr.bf16.mxu0 0
        %477 = vmatpush1.bf16.msra.mxu0 %v460
        %478 = vmatprep.subr.bf16.mxu0 0
        %479 = vmatpush1.bf16.msra.mxu0 %v461
        %480 = vmatprep.subr.bf16.mxu0 0
        %481 = vmatpush1.bf16.msra.mxu0 %v462
        %482 = vmatprep.subr.bf16.mxu0 0
        %483 = vmatpush1.bf16.msra.mxu0 %v463
        %484 = vmatprep.subr.bf16.mxu0 0
        %485 = vmatpush1.bf16.msra.mxu0 %v464
        %486 = vmatprep.subr.bf16.mxu0 0
        %487 = vmatpush1.bf16.msra.mxu0 %v465
        %488 = vmatprep.subr.bf16.mxu0 0
        %489 = vmatpush1.bf16.msra.mxu0 %v466
        %490 = vmatprep.subr.bf16.mxu0 0
        %491 = vmatpush1.bf16.msra.mxu0 %v467
        %492 = vmatprep.subr.bf16.mxu0 0
        %493 = vmatpush1.bf16.msra.mxu0 0
        %494 = vmatprep.subr.bf16.mxu0 0
        %495 = vmatpush1.bf16.msra.mxu0 0
        %496 = vmatprep.subr.bf16.mxu0 0
        %497 = vmatpush1.bf16.msra.mxu0 0
        %498 = vmatprep.subr.bf16.mxu0 0
        %499 = vmatpush1.bf16.msra.mxu0 0
        %500 = vmatprep.subr.bf16.mxu0 0
        %501 = vmatpush1.bf16.msra.mxu0 0
        %502 = vmatprep.subr.bf16.mxu0 0
        %503 = vmatpush1.bf16.msra.mxu0 0
        %504 = vmatprep.subr.bf16.mxu0 0
        %505 = vmatpush1.bf16.msra.mxu0 0
        %506 = vmatprep.subr.bf16.mxu0 0
        %507 = vmatpush1.bf16.msra.mxu0 0
        %508 = vmatprep.mubr.bf16.mxu0 0
        %509 = vmatmul.mubr.bf16.gmra.mrb[0].mxu0 %v309
        %v510 = vpop.f32.mrb[0].mxu0
        %v511 = vadd.f32 %v412, %v510
        %v512 = vpop.f32.mrb[0].mxu0
        %v513 = vpop.f32.mrb[0].mxu0
        %v514 = vadd.f32 %v415, %v513
        %v515 = vpop.f32.mrb[0].mxu0
        %516 = vmatprep.mubr.bf16.mxu0 0
        %517 = vmatmul.mubr.bf16.gmra.mrb[0].mxu0 %v310
        %v518 = vpop.f32.mrb[0].mxu0
        %v519 = vadd.f32 %v420, %v518
        %v520 = vpop.f32.mrb[0].mxu0
        %v521 = vpop.f32.mrb[0].mxu0
        %v522 = vadd.f32 %v423, %v521
        %v523 = vpop.f32.mrb[0].mxu0
        %524 = vdwg.mxu0
        %v525 = vld [vmem:[#allocation2] sm:$0xe]
        %v526 = vld [vmem:[#allocation2 + $0xc] sm:$0x3]
        %s527 = scalar_lea.vmem [#allocation4], 128
        %v528 = vld [vmem:[%s527] sm:$0xf]
        %v529 = vld [vmem:[%s527 + $0x4] sm:$0xf]
        %v530 = vld [vmem:[%s527 + $0x8] sm:$0xf]
        %v531 = vld [vmem:[%s527 + $0xc] sm:$0xf]
        %v532 = vld [vmem:[%s527 + $0x10] sm:$0xf]
        %v533 = vld [vmem:[%s527 + $0x14] sm:$0xf]
        %v534 = vld [vmem:[%s527 + $0x18] sm:$0xf]
        %v535 = vld [vmem:[%s527 + $0x1c] sm:$0xf]
        %v536 = vld [vmem:[%s527 + $0x20] sm:$0xf]
        %v537 = vld [vmem:[%s527 + $0x24] sm:$0xf]
        %v538 = vld [vmem:[%s527 + $0x28] sm:$0xf]
        %v539 = vld [vmem:[%s527 + $0x2c] sm:$0xf]
        %v540 = vld [vmem:[%s527 + $0x30] sm:$0xf]
        %v541 = vld [vmem:[%s527 + $0x34] sm:$0xf]
        %v542 = vld [vmem:[%s527 + $0x38] sm:$0xf]
        %v543 = vld [vmem:[%s527 + $0x3c] sm:$0xf]
        %v546 = vunpack.c.l.b16 %v525
        %v547 = vunpack.c.l.b16 %v526
        %v548 = vpack.c.b16 %v306, %v546
        %v549 = vpack.c.b16 %v547, %v307
        %vm550 = vcmask 1046528
        %v551 = vrot.slane %v548, 1
        %v552 = vrot.slane %v549, 1
        %v553 = vsel %vm550, %v551, %v552
        %v572 = vunpack.c.l.b16 %v528
        %v573 = vunpack.c.l.b16 %v529
        %v574 = vunpack.c.l.b16 %v530
        %v575 = vunpack.c.l.b16 %v531
        %v576 = vunpack.c.l.b16 %v532
        %v577 = vunpack.c.l.b16 %v533
        %v578 = vunpack.c.l.b16 %v534
        %v579 = vunpack.c.l.b16 %v535
        %v580 = vunpack.c.l.b16 %v536
        %v581 = vunpack.c.l.b16 %v537
        %v582 = vunpack.c.l.b16 %v538
        %v583 = vunpack.c.l.b16 %v539
        %v584 = vunpack.c.l.b16 %v540
        %v585 = vunpack.c.l.b16 %v541
        %v586 = vunpack.c.l.b16 %v542
        %v587 = vunpack.c.l.b16 %v543
        %v588 = vpack.c.b16 %v573, %v572
        %v589 = vpack.c.b16 %v575, %v574
        %v590 = vpack.c.b16 %v577, %v576
        %v591 = vpack.c.b16 %v579, %v578
        %v592 = vpack.c.b16 %v581, %v580
        %v593 = vpack.c.b16 %v583, %v582
        %v594 = vpack.c.b16 %v585, %v584
        %v595 = vpack.c.b16 %v587, %v586
        %604 = vmatprep.subr.bf16.mxu0 0
        %605 = vmatpush1.bf16.msra.mxu0 %v588
        %606 = vmatprep.subr.bf16.mxu0 0
        %607 = vmatpush1.bf16.msra.mxu0 %v589
        %608 = vmatprep.subr.bf16.mxu0 0
        %609 = vmatpush1.bf16.msra.mxu0 %v590
        %610 = vmatprep.subr.bf16.mxu0 0
        %611 = vmatpush1.bf16.msra.mxu0 %v591
        %612 = vmatprep.subr.bf16.mxu0 0
        %613 = vmatpush1.bf16.msra.mxu0 %v592
        %614 = vmatprep.subr.bf16.mxu0 0
        %615 = vmatpush1.bf16.msra.mxu0 %v593
        %616 = vmatprep.subr.bf16.mxu0 0
        %617 = vmatpush1.bf16.msra.mxu0 %v594
        %618 = vmatprep.subr.bf16.mxu0 0
        %619 = vmatpush1.bf16.msra.mxu0 %v595
        %620 = vmatprep.subr.bf16.mxu0 0
        %621 = vmatpush1.bf16.msra.mxu0 0
        %622 = vmatprep.subr.bf16.mxu0 0
        %623 = vmatpush1.bf16.msra.mxu0 0
        %624 = vmatprep.subr.bf16.mxu0 0
        %625 = vmatpush1.bf16.msra.mxu0 0
        %626 = vmatprep.subr.bf16.mxu0 0
        %627 = vmatpush1.bf16.msra.mxu0 0
        %628 = vmatprep.subr.bf16.mxu0 0
        %629 = vmatpush1.bf16.msra.mxu0 0
        %630 = vmatprep.subr.bf16.mxu0 0
        %631 = vmatpush1.bf16.msra.mxu0 0
        %632 = vmatprep.subr.bf16.mxu0 0
        %633 = vmatpush1.bf16.msra.mxu0 0
        %634 = vmatprep.subr.bf16.mxu0 0
        %635 = vmatpush1.bf16.msra.mxu0 0
        %636 = vmatprep.mubr.bf16.mxu0 0
        %637 = vmatmul.mubr.bf16.gmra.mrb[0].mxu0 %v553
        %v638 = vpop.f32.mrb[0].mxu0
        %v639 = vadd.f32 0.0, %v638
        %v640 = vpop.f32.mrb[0].mxu0
        %v641 = vpop.f32.mrb[0].mxu0
        %v642 = vadd.f32 0.0, %v641
        %v643 = vpop.f32.mrb[0].mxu0
        %644 = vmatprep.mubr.bf16.mxu0 0
        %645 = vmatmul.mubr.bf16.gmra.mrb[0].mxu0 %v552
        %v646 = vpop.f32.mrb[0].mxu0
        %v647 = vadd.f32 0.0, %v646
        %v648 = vpop.f32.mrb[0].mxu0
        %v649 = vpop.f32.mrb[0].mxu0
        %v650 = vadd.f32 0.0, %v649
        %v651 = vpop.f32.mrb[0].mxu0
        %652 = vdwg.mxu0
        %v653 = vadd.f32 %v511, %v639
        %v654 = vadd.f32 %v514, %v642
        %v655 = vadd.f32 %v519, %v647
        %v656 = vadd.f32 %v522, %v650
        %s657 = scalar_lea.vmem [#allocation4], 192
        %v658 = vld [vmem:[%s657] sm:$0xf]
        %v659 = vld [vmem:[%s657 + $0x4] sm:$0xf]
        %v660 = vld [vmem:[%s657 + $0x8] sm:$0xf]
        %v661 = vld [vmem:[%s657 + $0xc] sm:$0xf]
        %v662 = vld [vmem:[%s657 + $0x10] sm:$0xf]
        %v663 = vld [vmem:[%s657 + $0x14] sm:$0xf]
        %v664 = vld [vmem:[%s657 + $0x18] sm:$0xf]
        %v665 = vld [vmem:[%s657 + $0x1c] sm:$0xf]
        %v666 = vld [vmem:[%s657 + $0x20] sm:$0xf]
        %v667 = vld [vmem:[%s657 + $0x24] sm:$0xf]
        %v668 = vld [vmem:[%s657 + $0x28] sm:$0xf]
        %v669 = vld [vmem:[%s657 + $0x2c] sm:$0xf]
        %v670 = vld [vmem:[%s657 + $0x30] sm:$0xf]
        %v671 = vld [vmem:[%s657 + $0x34] sm:$0xf]
        %v672 = vld [vmem:[%s657 + $0x38] sm:$0xf]
        %v673 = vld [vmem:[%s657 + $0x3c] sm:$0xf]
        %vm674 = vsmask.f32 6400
        %v676 = vshrl.u32 %v548, 16
        %v678 = vrot.slane %v676, 1
        %v679 = vshll.u32 %v548, 16
        %v681 = vrot.slane %v679, 2
        %v682 = vor.u32 %v678, %v681
        %v684 = vshrl.u32 %v549, 16
        %v686 = vrot.slane %v684, 1
        %v687 = vshll.u32 %v549, 16
        %v689 = vrot.slane %v687, 2
        %v690 = vor.u32 %v686, %v689
        %v691 = vsel %vm674, %v682, %v690
        %v710 = vunpack.c.l.b16 %v658
        %v711 = vunpack.c.l.b16 %v659
        %v712 = vunpack.c.l.b16 %v660
        %v713 = vunpack.c.l.b16 %v661
        %v714 = vunpack.c.l.b16 %v662
        %v715 = vunpack.c.l.b16 %v663
        %v716 = vunpack.c.l.b16 %v664
        %v717 = vunpack.c.l.b16 %v665
        %v718 = vunpack.c.l.b16 %v666
        %v719 = vunpack.c.l.b16 %v667
        %v720 = vunpack.c.l.b16 %v668
        %v721 = vunpack.c.l.b16 %v669
        %v722 = vunpack.c.l.b16 %v670
        %v723 = vunpack.c.l.b16 %v671
        %v724 = vunpack.c.l.b16 %v672
        %v725 = vunpack.c.l.b16 %v673
        %v726 = vpack.c.b16 %v711, %v710
        %v727 = vpack.c.b16 %v713, %v712
        %v728 = vpack.c.b16 %v715, %v714
        %v729 = vpack.c.b16 %v717, %v716
        %v730 = vpack.c.b16 %v719, %v718
        %v731 = vpack.c.b16 %v721, %v720
        %v732 = vpack.c.b16 %v723, %v722
        %v733 = vpack.c.b16 %v725, %v724
        %742 = vmatprep.subr.bf16.mxu0 0
        %743 = vmatpush1.bf16.msra.mxu0 %v726
        %744 = vmatprep.subr.bf16.mxu0 0
        %745 = vmatpush1.bf16.msra.mxu0 %v727
        %746 = vmatprep.subr.bf16.mxu0 0
        %747 = vmatpush1.bf16.msra.mxu0 %v728
        %748 = vmatprep.subr.bf16.mxu0 0
        %749 = vmatpush1.bf16.msra.mxu0 %v729
        %750 = vmatprep.subr.bf16.mxu0 0
        %751 = vmatpush1.bf16.msra.mxu0 %v730
        %752 = vmatprep.subr.bf16.mxu0 0
        %753 = vmatpush1.bf16.msra.mxu0 %v731
        %754 = vmatprep.subr.bf16.mxu0 0
        %755 = vmatpush1.bf16.msra.mxu0 %v732
        %756 = vmatprep.subr.bf16.mxu0 0
        %757 = vmatpush1.bf16.msra.mxu0 %v733
        %758 = vmatprep.subr.bf16.mxu0 0
        %759 = vmatpush1.bf16.msra.mxu0 0
        %760 = vmatprep.subr.bf16.mxu0 0
        %761 = vmatpush1.bf16.msra.mxu0 0
        %762 = vmatprep.subr.bf16.mxu0 0
        %763 = vmatpush1.bf16.msra.mxu0 0
        %764 = vmatprep.subr.bf16.mxu0 0
        %765 = vmatpush1.bf16.msra.mxu0 0
        %766 = vmatprep.subr.bf16.mxu0 0
        %767 = vmatpush1.bf16.msra.mxu0 0
        %768 = vmatprep.subr.bf16.mxu0 0
        %769 = vmatpush1.bf16.msra.mxu0 0
        %770 = vmatprep.subr.bf16.mxu0 0
        %771 = vmatpush1.bf16.msra.mxu0 0
        %772 = vmatprep.subr.bf16.mxu0 0
        %773 = vmatpush1.bf16.msra.mxu0 0
        %774 = vmatprep.mubr.bf16.mxu0 0
        %775 = vmatmul.mubr.bf16.gmra.mrb[0].mxu0 %v691
        %v776 = vpop.f32.mrb[0].mxu0
        %v777 = vadd.f32 0.0, %v776
        %v778 = vpop.f32.mrb[0].mxu0
        %v779 = vpop.f32.mrb[0].mxu0
        %v780 = vadd.f32 0.0, %v779
        %v781 = vpop.f32.mrb[0].mxu0
        %782 = vmatprep.mubr.bf16.mxu0 0
        %783 = vmatmul.mubr.bf16.gmra.mrb[0].mxu0 %v690
        %v784 = vpop.f32.mrb[0].mxu0
        %v785 = vadd.f32 0.0, %v784
        %v786 = vpop.f32.mrb[0].mxu0
        %v787 = vpop.f32.mrb[0].mxu0
        %v788 = vadd.f32 0.0, %v787
        %v789 = vpop.f32.mrb[0].mxu0
        %790 = vdwg.mxu0
        %v791 = vadd.f32 %v653, %v777
        %v792 = vadd.f32 %v654, %v780
        %v793 = vadd.f32 %v655, %v785
        %v794 = vadd.f32 %v656, %v788
        %v795 = vld [vmem:[#allocation2] sm:$0x8]
        %v796 = vld [vmem:[#allocation2 + $0xc] sm:$0xf]
        %s797 = scalar_lea.vmem [#allocation4], 256
        %v798 = vld [vmem:[%s797] sm:$0xf]
        %v799 = vld [vmem:[%s797 + $0x4] sm:$0xf]
        %v800 = vld [vmem:[%s797 + $0x8] sm:$0xf]
        %v801 = vld [vmem:[%s797 + $0xc] sm:$0xf]
        %v802 = vld [vmem:[%s797 + $0x10] sm:$0xf]
        %v803 = vld [vmem:[%s797 + $0x14] sm:$0xf]
        %v804 = vld [vmem:[%s797 + $0x18] sm:$0xf]
        %v805 = vld [vmem:[%s797 + $0x1c] sm:$0xf]
        %v806 = vld [vmem:[%s797 + $0x20] sm:$0xf]
        %v807 = vld [vmem:[%s797 + $0x24] sm:$0xf]
        %v808 = vld [vmem:[%s797 + $0x28] sm:$0xf]
        %v809 = vld [vmem:[%s797 + $0x2c] sm:$0xf]
        %v810 = vld [vmem:[%s797 + $0x30] sm:$0xf]
        %v811 = vld [vmem:[%s797 + $0x34] sm:$0xf]
        %v812 = vld [vmem:[%s797 + $0x38] sm:$0xf]
        %v813 = vld [vmem:[%s797 + $0x3c] sm:$0xf]
        %v816 = vunpack.c.l.b16 %v795
        %v817 = vunpack.c.l.b16 %v796
        %v818 = vpack.c.b16 %v306, %v816
        %v819 = vpack.c.b16 %v817, %v307
        %vm820 = vsmask.f32 4352
        %v822 = vshrl.u32 %v818, 16
        %v824 = vrot.slane %v822, 3
        %v825 = vshll.u32 %v818, 16
        %v827 = vrot.slane %v825, 4
        %v828 = vor.u32 %v824, %v827
        %v830 = vshrl.u32 %v819, 16
        %v832 = vrot.slane %v830, 3
        %v833 = vshll.u32 %v819, 16
        %v835 = vrot.slane %v833, 4
        %v836 = vor.u32 %v832, %v835
        %v837 = vsel %vm820, %v828, %v836
        %v856 = vunpack.c.l.b16 %v798
        %v857 = vunpack.c.l.b16 %v799
        %v858 = vunpack.c.l.b16 %v800
        %v859 = vunpack.c.l.b16 %v801
        %v860 = vunpack.c.l.b16 %v802
        %v861 = vunpack.c.l.b16 %v803
        %v862 = vunpack.c.l.b16 %v804
        %v863 = vunpack.c.l.b16 %v805
        %v864 = vunpack.c.l.b16 %v806
        %v865 = vunpack.c.l.b16 %v807
        %v866 = vunpack.c.l.b16 %v808
        %v867 = vunpack.c.l.b16 %v809
        %v868 = vunpack.c.l.b16 %v810
        %v869 = vunpack.c.l.b16 %v811
        %v870 = vunpack.c.l.b16 %v812
        %v871 = vunpack.c.l.b16 %v813
        %v872 = vpack.c.b16 %v857, %v856
        %v873 = vpack.c.b16 %v859, %v858
        %v874 = vpack.c.b16 %v861, %v860
        %v875 = vpack.c.b16 %v863, %v862
        %v876 = vpack.c.b16 %v865, %v864
        %v877 = vpack.c.b16 %v867, %v866
        %v878 = vpack.c.b16 %v869, %v868
        %v879 = vpack.c.b16 %v871, %v870
        %888 = vmatprep.subr.bf16.mxu0 0
        %889 = vmatpush1.bf16.msra.mxu0 %v872
        %890 = vmatprep.subr.bf16.mxu0 0
        %891 = vmatpush1.bf16.msra.mxu0 %v873
        %892 = vmatprep.subr.bf16.mxu0 0
        %893 = vmatpush1.bf16.msra.mxu0 %v874
        %894 = vmatprep.subr.bf16.mxu0 0
        %895 = vmatpush1.bf16.msra.mxu0 %v875
        %896 = vmatprep.subr.bf16.mxu0 0
        %897 = vmatpush1.bf16.msra.mxu0 %v876
        %898 = vmatprep.subr.bf16.mxu0 0
        %899 = vmatpush1.bf16.msra.mxu0 %v877
        %900 = vmatprep.subr.bf16.mxu0 0
        %901 = vmatpush1.bf16.msra.mxu0 %v878
        %902 = vmatprep.subr.bf16.mxu0 0
        %903 = vmatpush1.bf16.msra.mxu0 %v879
        %904 = vmatprep.subr.bf16.mxu0 0
        %905 = vmatpush1.bf16.msra.mxu0 0
        %906 = vmatprep.subr.bf16.mxu0 0
        %907 = vmatpush1.bf16.msra.mxu0 0
        %908 = vmatprep.subr.bf16.mxu0 0
        %909 = vmatpush1.bf16.msra.mxu0 0
        %910 = vmatprep.subr.bf16.mxu0 0
        %911 = vmatpush1.bf16.msra.mxu0 0
        %912 = vmatprep.subr.bf16.mxu0 0
        %913 = vmatpush1.bf16.msra.mxu0 0
        %914 = vmatprep.subr.bf16.mxu0 0
        %915 = vmatpush1.bf16.msra.mxu0 0
        %916 = vmatprep.subr.bf16.mxu0 0
        %917 = vmatpush1.bf16.msra.mxu0 0
        %918 = vmatprep.subr.bf16.mxu0 0
        %919 = vmatpush1.bf16.msra.mxu0 0
        %920 = vmatprep.mubr.bf16.mxu0 0
        %921 = vmatmul.mubr.bf16.gmra.mrb[0].mxu0 %v837
        %v922 = vpop.f32.mrb[0].mxu0
        %v923 = vadd.f32 0.0, %v922
        %v924 = vpop.f32.mrb[0].mxu0
        %v925 = vpop.f32.mrb[0].mxu0
        %v926 = vadd.f32 0.0, %v925
        %v927 = vpop.f32.mrb[0].mxu0
        %928 = vmatprep.mubr.bf16.mxu0 0
        %929 = vmatmul.mubr.bf16.gmra.mrb[0].mxu0 %v836
        %v930 = vpop.f32.mrb[0].mxu0
        %v931 = vadd.f32 0.0, %v930
        %v932 = vpop.f32.mrb[0].mxu0
        %v933 = vpop.f32.mrb[0].mxu0
        %v934 = vadd.f32 0.0, %v933
        %v935 = vpop.f32.mrb[0].mxu0
        %936 = vdwg.mxu0
        %v937 = vadd.f32 %v791, %v923
        %v938 = vadd.f32 %v792, %v926
        %v939 = vadd.f32 %v793, %v931
        %v940 = vadd.f32 %v794, %v934
        %v941 = vld [vmem:[#allocation2 + $0x4] sm:$0xf]
        %v942 = vld [vmem:[#allocation2 + $0x8] sm:$0xf]
        %v943 = vld [vmem:[#allocation2 + $0xc] sm:$0xf]
        %v944 = vld [vmem:[#allocation2 + $0x10] sm:$0x1]
        %s945 = scalar_lea.vmem [#allocation4], 320
        %v946 = vld [vmem:[%s945] sm:$0xf]
        %v947 = vld [vmem:[%s945 + $0x4] sm:$0xf]
        %v948 = vld [vmem:[%s945 + $0x8] sm:$0xf]
        %v949 = vld [vmem:[%s945 + $0xc] sm:$0xf]
        %v950 = vld [vmem:[%s945 + $0x10] sm:$0xf]
        %v951 = vld [vmem:[%s945 + $0x14] sm:$0xf]
        %v952 = vld [vmem:[%s945 + $0x18] sm:$0xf]
        %v953 = vld [vmem:[%s945 + $0x1c] sm:$0xf]
        %v954 = vld [vmem:[%s945 + $0x20] sm:$0xf]
        %v955 = vld [vmem:[%s945 + $0x24] sm:$0xf]
        %v956 = vld [vmem:[%s945 + $0x28] sm:$0xf]
        %v957 = vld [vmem:[%s945 + $0x2c] sm:$0xf]
        %v958 = vld [vmem:[%s945 + $0x30] sm:$0xf]
        %v959 = vld [vmem:[%s945 + $0x34] sm:$0xf]
        %v960 = vld [vmem:[%s945 + $0x38] sm:$0xf]
        %v961 = vld [vmem:[%s945 + $0x3c] sm:$0xf]
        %v966 = vunpack.c.l.b16 %v941
        %v967 = vunpack.c.l.b16 %v942
        %v968 = vunpack.c.l.b16 %v943
        %v969 = vunpack.c.l.b16 %v944
        %v970 = vpack.c.b16 %v967, %v966
        %v971 = vpack.c.b16 %v969, %v968
        %v990 = vunpack.c.l.b16 %v946
        %v991 = vunpack.c.l.b16 %v947
        %v992 = vunpack.c.l.b16 %v948
        %v993 = vunpack.c.l.b16 %v949
        %v994 = vunpack.c.l.b16 %v950
        %v995 = vunpack.c.l.b16 %v951
        %v996 = vunpack.c.l.b16 %v952
        %v997 = vunpack.c.l.b16 %v953
        %v998 = vunpack.c.l.b16 %v954
        %v999 = vunpack.c.l.b16 %v955
        %v1000 = vunpack.c.l.b16 %v956
        %v1001 = vunpack.c.l.b16 %v957
        %v1002 = vunpack.c.l.b16 %v958
        %v1003 = vunpack.c.l.b16 %v959
        %v1004 = vunpack.c.l.b16 %v960
        %v1005 = vunpack.c.l.b16 %v961
        %v1006 = vpack.c.b16 %v991, %v990
        %v1007 = vpack.c.b16 %v993, %v992
        %v1008 = vpack.c.b16 %v995, %v994
        %v1009 = vpack.c.b16 %v997, %v996
        %v1010 = vpack.c.b16 %v999, %v998
        %v1011 = vpack.c.b16 %v1001, %v1000
        %v1012 = vpack.c.b16 %v1003, %v1002
        %v1013 = vpack.c.b16 %v1005, %v1004
        %1022 = vmatprep.subr.bf16.mxu0 0
        %1023 = vmatpush1.bf16.msra.mxu0 %v1006
        %1024 = vmatprep.subr.bf16.mxu0 0
        %1025 = vmatpush1.bf16.msra.mxu0 %v1007
        %1026 = vmatprep.subr.bf16.mxu0 0
        %1027 = vmatpush1.bf16.msra.mxu0 %v1008
        %1028 = vmatprep.subr.bf16.mxu0 0
        %1029 = vmatpush1.bf16.msra.mxu0 %v1009
        %1030 = vmatprep.subr.bf16.mxu0 0
        %1031 = vmatpush1.bf16.msra.mxu0 %v1010
        %1032 = vmatprep.subr.bf16.mxu0 0
        %1033 = vmatpush1.bf16.msra.mxu0 %v1011
        %1034 = vmatprep.subr.bf16.mxu0 0
        %1035 = vmatpush1.bf16.msra.mxu0 %v1012
        %1036 = vmatprep.subr.bf16.mxu0 0
        %1037 = vmatpush1.bf16.msra.mxu0 %v1013
        %1038 = vmatprep.subr.bf16.mxu0 0
        %1039 = vmatpush1.bf16.msra.mxu0 0
        %1040 = vmatprep.subr.bf16.mxu0 0
        %1041 = vmatpush1.bf16.msra.mxu0 0
        %1042 = vmatprep.subr.bf16.mxu0 0
        %1043 = vmatpush1.bf16.msra.mxu0 0
        %1044 = vmatprep.subr.bf16.mxu0 0
        %1045 = vmatpush1.bf16.msra.mxu0 0
        %1046 = vmatprep.subr.bf16.mxu0 0
        %1047 = vmatpush1.bf16.msra.mxu0 0
        %1048 = vmatprep.subr.bf16.mxu0 0
        %1049 = vmatpush1.bf16.msra.mxu0 0
        %1050 = vmatprep.subr.bf16.mxu0 0
        %1051 = vmatpush1.bf16.msra.mxu0 0
        %1052 = vmatprep.subr.bf16.mxu0 0
        %1053 = vmatpush1.bf16.msra.mxu0 0
        %1054 = vmatprep.mubr.bf16.mxu0 0
        %1055 = vmatmul.mubr.bf16.gmra.mrb[0].mxu0 %v970
        %v1056 = vpop.f32.mrb[0].mxu0
        %v1057 = vadd.f32 0.0, %v1056
        %v1058 = vpop.f32.mrb[0].mxu0
        %v1059 = vpop.f32.mrb[0].mxu0
        %v1060 = vadd.f32 0.0, %v1059
        %v1061 = vpop.f32.mrb[0].mxu0
        %1062 = vmatprep.mubr.bf16.mxu0 0
        %1063 = vmatmul.mubr.bf16.gmra.mrb[0].mxu0 %v971
        %v1064 = vpop.f32.mrb[0].mxu0
        %v1065 = vadd.f32 0.0, %v1064
        %v1066 = vpop.f32.mrb[0].mxu0
        %v1067 = vpop.f32.mrb[0].mxu0
        %v1068 = vadd.f32 0.0, %v1067
        %v1069 = vpop.f32.mrb[0].mxu0
        %1070 = vdwg.mxu0
        %v1071 = vadd.f32 %v937, %v1057
        %v1072 = vadd.f32 %v938, %v1060
        %v1073 = vadd.f32 %v939, %v1065
        %v1074 = vadd.f32 %v940, %v1068
        %s1075 = scalar_lea.vmem [#allocation4], 384
        %v1076 = vld [vmem:[%s1075] sm:$0xf]
        %v1077 = vld [vmem:[%s1075 + $0x4] sm:$0xf]
        %v1078 = vld [vmem:[%s1075 + $0x8] sm:$0xf]
        %v1079 = vld [vmem:[%s1075 + $0xc] sm:$0xf]
        %v1080 = vld [vmem:[%s1075 + $0x10] sm:$0xf]
        %v1081 = vld [vmem:[%s1075 + $0x14] sm:$0xf]
        %v1082 = vld [vmem:[%s1075 + $0x18] sm:$0xf]
        %v1083 = vld [vmem:[%s1075 + $0x1c] sm:$0xf]
        %v1084 = vld [vmem:[%s1075 + $0x20] sm:$0xf]
        %v1085 = vld [vmem:[%s1075 + $0x24] sm:$0xf]
        %v1086 = vld [vmem:[%s1075 + $0x28] sm:$0xf]
        %v1087 = vld [vmem:[%s1075 + $0x2c] sm:$0xf]
        %v1088 = vld [vmem:[%s1075 + $0x30] sm:$0xf]
        %v1089 = vld [vmem:[%s1075 + $0x34] sm:$0xf]
        %v1090 = vld [vmem:[%s1075 + $0x38] sm:$0xf]
        %v1091 = vld [vmem:[%s1075 + $0x3c] sm:$0xf]
        %v1093 = vshrl.u32 %v970, 16
        %v1095 = vshll.u32 %v970, 16
        %v1097 = vrot.slane %v1095, 1
        %v1098 = vor.u32 %v1093, %v1097
        %v1100 = vshll.u32 %v971, 16
        %v1102 = vrot.slane %v1100, 1
        %v1103 = vsel %vm311, %v1098, %v1102
        %v1104 = vshrl.u32 %v971, 16
        %v1106 = vor.u32 %v1104, %v1102
        %v1125 = vunpack.c.l.b16 %v1076
        %v1126 = vunpack.c.l.b16 %v1077
        %v1127 = vunpack.c.l.b16 %v1078
        %v1128 = vunpack.c.l.b16 %v1079
        %v1129 = vunpack.c.l.b16 %v1080
        %v1130 = vunpack.c.l.b16 %v1081
        %v1131 = vunpack.c.l.b16 %v1082
        %v1132 = vunpack.c.l.b16 %v1083
        %v1133 = vunpack.c.l.b16 %v1084
        %v1134 = vunpack.c.l.b16 %v1085
        %v1135 = vunpack.c.l.b16 %v1086
        %v1136 = vunpack.c.l.b16 %v1087
        %v1137 = vunpack.c.l.b16 %v1088
        %v1138 = vunpack.c.l.b16 %v1089
        %v1139 = vunpack.c.l.b16 %v1090
        %v1140 = vunpack.c.l.b16 %v1091
        %v1141 = vpack.c.b16 %v1126, %v1125
        %v1142 = vpack.c.b16 %v1128, %v1127
        %v1143 = vpack.c.b16 %v1130, %v1129
        %v1144 = vpack.c.b16 %v1132, %v1131
        %v1145 = vpack.c.b16 %v1134, %v1133
        %v1146 = vpack.c.b16 %v1136, %v1135
        %v1147 = vpack.c.b16 %v1138, %v1137
        %v1148 = vpack.c.b16 %v1140, %v1139
        %1157 = vmatprep.subr.bf16.mxu0 0
        %1158 = vmatpush1.bf16.msra.mxu0 %v1141
        %1159 = vmatprep.subr.bf16.mxu0 0
        %1160 = vmatpush1.bf16.msra.mxu0 %v1142
        %1161 = vmatprep.subr.bf16.mxu0 0
        %1162 = vmatpush1.bf16.msra.mxu0 %v1143
        %1163 = vmatprep.subr.bf16.mxu0 0
        %1164 = vmatpush1.bf16.msra.mxu0 %v1144
        %1165 = vmatprep.subr.bf16.mxu0 0
        %1166 = vmatpush1.bf16.msra.mxu0 %v1145
        %1167 = vmatprep.subr.bf16.mxu0 0
        %1168 = vmatpush1.bf16.msra.mxu0 %v1146
        %1169 = vmatprep.subr.bf16.mxu0 0
        %1170 = vmatpush1.bf16.msra.mxu0 %v1147
        %1171 = vmatprep.subr.bf16.mxu0 0
        %1172 = vmatpush1.bf16.msra.mxu0 %v1148
        %1173 = vmatprep.subr.bf16.mxu0 0
        %1174 = vmatpush1.bf16.msra.mxu0 0
        %1175 = vmatprep.subr.bf16.mxu0 0
        %1176 = vmatpush1.bf16.msra.mxu0 0
        %1177 = vmatprep.subr.bf16.mxu0 0
        %1178 = vmatpush1.bf16.msra.mxu0 0
        %1179 = vmatprep.subr.bf16.mxu0 0
        %1180 = vmatpush1.bf16.msra.mxu0 0
        %1181 = vmatprep.subr.bf16.mxu0 0
        %1182 = vmatpush1.bf16.msra.mxu0 0
        %1183 = vmatprep.subr.bf16.mxu0 0
        %1184 = vmatpush1.bf16.msra.mxu0 0
        %1185 = vmatprep.subr.bf16.mxu0 0
        %1186 = vmatpush1.bf16.msra.mxu0 0
        %1187 = vmatprep.subr.bf16.mxu0 0
        %1188 = vmatpush1.bf16.msra.mxu0 0
        %1189 = vmatprep.mubr.bf16.mxu0 0
        %1190 = vmatmul.mubr.bf16.gmra.mrb[0].mxu0 %v1103
        %v1191 = vpop.f32.mrb[0].mxu0
        %v1192 = vadd.f32 0.0, %v1191
        %v1193 = vpop.f32.mrb[0].mxu0
        %v1194 = vpop.f32.mrb[0].mxu0
        %v1195 = vadd.f32 0.0, %v1194
        %v1196 = vpop.f32.mrb[0].mxu0
        %1197 = vmatprep.mubr.bf16.mxu0 0
        %1198 = vmatmul.mubr.bf16.gmra.mrb[0].mxu0 %v1106
        %v1199 = vpop.f32.mrb[0].mxu0
        %v1200 = vadd.f32 0.0, %v1199
        %v1201 = vpop.f32.mrb[0].mxu0
        %v1202 = vpop.f32.mrb[0].mxu0
        %v1203 = vadd.f32 0.0, %v1202
        %v1204 = vpop.f32.mrb[0].mxu0
        %1205 = vdwg.mxu0
        %v1206 = vadd.f32 %v1071, %v1192
        %v1207 = vadd.f32 %v1072, %v1195
        %v1208 = vadd.f32 %v1073, %v1200
        %v1209 = vadd.f32 %v1074, %v1203
        %v1210 = vld [vmem:[#allocation2 + $0x4] sm:$0xe]
        %v1211 = vld [vmem:[#allocation2 + $0x10] sm:$0x3]
        %s1212 = scalar_lea.vmem [#allocation4], 448
        %v1213 = vld [vmem:[%s1212] sm:$0xf]
        %v1214 = vld [vmem:[%s1212 + $0x4] sm:$0xf]
        %v1215 = vld [vmem:[%s1212 + $0x8] sm:$0xf]
        %v1216 = vld [vmem:[%s1212 + $0xc] sm:$0xf]
        %v1217 = vld [vmem:[%s1212 + $0x10] sm:$0xf]
        %v1218 = vld [vmem:[%s1212 + $0x14] sm:$0xf]
        %v1219 = vld [vmem:[%s1212 + $0x18] sm:$0xf]
        %v1220 = vld [vmem:[%s1212 + $0x1c] sm:$0xf]
        %v1221 = vld [vmem:[%s1212 + $0x20] sm:$0xf]
        %v1222 = vld [vmem:[%s1212 + $0x24] sm:$0xf]
        %v1223 = vld [vmem:[%s1212 + $0x28] sm:$0xf]
        %v1224 = vld [vmem:[%s1212 + $0x2c] sm:$0xf]
        %v1225 = vld [vmem:[%s1212 + $0x30] sm:$0xf]
        %v1226 = vld [vmem:[%s1212 + $0x34] sm:$0xf]
        %v1227 = vld [vmem:[%s1212 + $0x38] sm:$0xf]
        %v1228 = vld [vmem:[%s1212 + $0x3c] sm:$0xf]
        %v1231 = vunpack.c.l.b16 %v1210
        %v1232 = vunpack.c.l.b16 %v1211
        %v1233 = vpack.c.b16 %v967, %v1231
        %v1234 = vpack.c.b16 %v1232, %v968
        %v1235 = vrot.slane %v1233, 1
        %v1236 = vrot.slane %v1234, 1
        %v1237 = vsel %vm550, %v1235, %v1236
        %v1256 = vunpack.c.l.b16 %v1213
        %v1257 = vunpack.c.l.b16 %v1214
        %v1258 = vunpack.c.l.b16 %v1215
        %v1259 = vunpack.c.l.b16 %v1216
        %v1260 = vunpack.c.l.b16 %v1217
        %v1261 = vunpack.c.l.b16 %v1218
        %v1262 = vunpack.c.l.b16 %v1219
        %v1263 = vunpack.c.l.b16 %v1220
        %v1264 = vunpack.c.l.b16 %v1221
        %v1265 = vunpack.c.l.b16 %v1222
        %v1266 = vunpack.c.l.b16 %v1223
        %v1267 = vunpack.c.l.b16 %v1224
        %v1268 = vunpack.c.l.b16 %v1225
        %v1269 = vunpack.c.l.b16 %v1226
        %v1270 = vunpack.c.l.b16 %v1227
        %v1271 = vunpack.c.l.b16 %v1228
        %v1272 = vpack.c.b16 %v1257, %v1256
        %v1273 = vpack.c.b16 %v1259, %v1258
        %v1274 = vpack.c.b16 %v1261, %v1260
        %v1275 = vpack.c.b16 %v1263, %v1262
        %v1276 = vpack.c.b16 %v1265, %v1264
        %v1277 = vpack.c.b16 %v1267, %v1266
        %v1278 = vpack.c.b16 %v1269, %v1268
        %v1279 = vpack.c.b16 %v1271, %v1270
        %1288 = vmatprep.subr.bf16.mxu0 0
        %1289 = vmatpush1.bf16.msra.mxu0 %v1272
        %1290 = vmatprep.subr.bf16.mxu0 0
        %1291 = vmatpush1.bf16.msra.mxu0 %v1273
        %1292 = vmatprep.subr.bf16.mxu0 0
        %1293 = vmatpush1.bf16.msra.mxu0 %v1274
        %1294 = vmatprep.subr.bf16.mxu0 0
        %1295 = vmatpush1.bf16.msra.mxu0 %v1275
        %1296 = vmatprep.subr.bf16.mxu0 0
        %1297 = vmatpush1.bf16.msra.mxu0 %v1276
        %1298 = vmatprep.subr.bf16.mxu0 0
        %1299 = vmatpush1.bf16.msra.mxu0 %v1277
        %1300 = vmatprep.subr.bf16.mxu0 0
        %1301 = vmatpush1.bf16.msra.mxu0 %v1278
        %1302 = vmatprep.subr.bf16.mxu0 0
        %1303 = vmatpush1.bf16.msra.mxu0 %v1279
        %1304 = vmatprep.subr.bf16.mxu0 0
        %1305 = vmatpush1.bf16.msra.mxu0 0
        %1306 = vmatprep.subr.bf16.mxu0 0
        %1307 = vmatpush1.bf16.msra.mxu0 0
        %1308 = vmatprep.subr.bf16.mxu0 0
        %1309 = vmatpush1.bf16.msra.mxu0 0
        %1310 = vmatprep.subr.bf16.mxu0 0
        %1311 = vmatpush1.bf16.msra.mxu0 0
        %1312 = vmatprep.subr.bf16.mxu0 0
        %1313 = vmatpush1.bf16.msra.mxu0 0
        %1314 = vmatprep.subr.bf16.mxu0 0
        %1315 = vmatpush1.bf16.msra.mxu0 0
        %1316 = vmatprep.subr.bf16.mxu0 0
        %1317 = vmatpush1.bf16.msra.mxu0 0
        %1318 = vmatprep.subr.bf16.mxu0 0
        %1319 = vmatpush1.bf16.msra.mxu0 0
        %1320 = vmatprep.mubr.bf16.mxu0 0
        %1321 = vmatmul.mubr.bf16.gmra.mrb[0].mxu0 %v1237
        %v1322 = vpop.f32.mrb[0].mxu0
        %v1323 = vadd.f32 0.0, %v1322
        %v1324 = vpop.f32.mrb[0].mxu0
        %v1325 = vpop.f32.mrb[0].mxu0
        %v1326 = vadd.f32 0.0, %v1325
        %v1327 = vpop.f32.mrb[0].mxu0
        %1328 = vmatprep.mubr.bf16.mxu0 0
        %1329 = vmatmul.mubr.bf16.gmra.mrb[0].mxu0 %v1236
        %v1330 = vpop.f32.mrb[0].mxu0
        %v1331 = vadd.f32 0.0, %v1330
        %v1332 = vpop.f32.mrb[0].mxu0
        %v1333 = vpop.f32.mrb[0].mxu0
        %v1334 = vadd.f32 0.0, %v1333
        %v1335 = vpop.f32.mrb[0].mxu0
        %1336 = vdwg.mxu0
        %v1337 = vadd.f32 %v1206, %v1323
        %v1338 = vadd.f32 %v1207, %v1326
        %v1339 = vadd.f32 %v1208, %v1331
        %v1340 = vadd.f32 %v1209, %v1334
        %v1341 = vld [vmem:[#allocation2 + $0x4] sm:$0x8]
        %v1342 = vld [vmem:[#allocation2 + $0x10] sm:$0xf]
        %s1343 = scalar_lea.vmem [#allocation4], 512
        %v1344 = vld [vmem:[%s1343] sm:$0xf]
        %v1345 = vld [vmem:[%s1343 + $0x4] sm:$0xf]
        %v1346 = vld [vmem:[%s1343 + $0x8] sm:$0xf]
        %v1347 = vld [vmem:[%s1343 + $0xc] sm:$0xf]
        %v1348 = vld [vmem:[%s1343 + $0x10] sm:$0xf]
        %v1349 = vld [vmem:[%s1343 + $0x14] sm:$0xf]
        %v1350 = vld [vmem:[%s1343 + $0x18] sm:$0xf]
        %v1351 = vld [vmem:[%s1343 + $0x1c] sm:$0xf]
        %v1352 = vld [vmem:[%s1343 + $0x20] sm:$0xf]
        %v1353 = vld [vmem:[%s1343 + $0x24] sm:$0xf]
        %v1354 = vld [vmem:[%s1343 + $0x28] sm:$0xf]
        %v1355 = vld [vmem:[%s1343 + $0x2c] sm:$0xf]
        %v1356 = vld [vmem:[%s1343 + $0x30] sm:$0xf]
        %v1357 = vld [vmem:[%s1343 + $0x34] sm:$0xf]
        %v1358 = vld [vmem:[%s1343 + $0x38] sm:$0xf]
        %v1359 = vld [vmem:[%s1343 + $0x3c] sm:$0xf]
        %v1362 = vunpack.c.l.b16 %v1341
        %v1363 = vunpack.c.l.b16 %v1342
        %v1364 = vpack.c.b16 %v967, %v1362
        %v1365 = vpack.c.b16 %v1363, %v968
        %vm1366 = vcmask 1044480
        %v1367 = vrot.slane %v1364, 3
        %v1368 = vrot.slane %v1365, 3
        %v1369 = vsel %vm1366, %v1367, %v1368
        %v1388 = vunpack.c.l.b16 %v1344
        %v1389 = vunpack.c.l.b16 %v1345
        %v1390 = vunpack.c.l.b16 %v1346
        %v1391 = vunpack.c.l.b16 %v1347
        %v1392 = vunpack.c.l.b16 %v1348
        %v1393 = vunpack.c.l.b16 %v1349
        %v1394 = vunpack.c.l.b16 %v1350
        %v1395 = vunpack.c.l.b16 %v1351
        %v1396 = vunpack.c.l.b16 %v1352
        %v1397 = vunpack.c.l.b16 %v1353
        %v1398 = vunpack.c.l.b16 %v1354
        %v1399 = vunpack.c.l.b16 %v1355
        %v1400 = vunpack.c.l.b16 %v1356
        %v1401 = vunpack.c.l.b16 %v1357
        %v1402 = vunpack.c.l.b16 %v1358
        %v1403 = vunpack.c.l.b16 %v1359
        %v1404 = vpack.c.b16 %v1389, %v1388
        %v1405 = vpack.c.b16 %v1391, %v1390
        %v1406 = vpack.c.b16 %v1393, %v1392
        %v1407 = vpack.c.b16 %v1395, %v1394
        %v1408 = vpack.c.b16 %v1397, %v1396
        %v1409 = vpack.c.b16 %v1399, %v1398
        %v1410 = vpack.c.b16 %v1401, %v1400
        %v1411 = vpack.c.b16 %v1403, %v1402
        %1420 = vmatprep.subr.bf16.mxu0 0
        %1421 = vmatpush1.bf16.msra.mxu0 %v1404
        %1422 = vmatprep.subr.bf16.mxu0 0
        %1423 = vmatpush1.bf16.msra.mxu0 %v1405
        %1424 = vmatprep.subr.bf16.mxu0 0
        %1425 = vmatpush1.bf16.msra.mxu0 %v1406
        %1426 = vmatprep.subr.bf16.mxu0 0
        %1427 = vmatpush1.bf16.msra.mxu0 %v1407
        %1428 = vmatprep.subr.bf16.mxu0 0
        %1429 = vmatpush1.bf16.msra.mxu0 %v1408
        %1430 = vmatprep.subr.bf16.mxu0 0
        %1431 = vmatpush1.bf16.msra.mxu0 %v1409
        %1432 = vmatprep.subr.bf16.mxu0 0
        %1433 = vmatpush1.bf16.msra.mxu0 %v1410
        %1434 = vmatprep.subr.bf16.mxu0 0
        %1435 = vmatpush1.bf16.msra.mxu0 %v1411
        %1436 = vmatprep.subr.bf16.mxu0 0
        %1437 = vmatpush1.bf16.msra.mxu0 0
        %1438 = vmatprep.subr.bf16.mxu0 0
        %1439 = vmatpush1.bf16.msra.mxu0 0
        %1440 = vmatprep.subr.bf16.mxu0 0
        %1441 = vmatpush1.bf16.msra.mxu0 0
        %1442 = vmatprep.subr.bf16.mxu0 0
        %1443 = vmatpush1.bf16.msra.mxu0 0
        %1444 = vmatprep.subr.bf16.mxu0 0
        %1445 = vmatpush1.bf16.msra.mxu0 0
        %1446 = vmatprep.subr.bf16.mxu0 0
        %1447 = vmatpush1.bf16.msra.mxu0 0
        %1448 = vmatprep.subr.bf16.mxu0 0
        %1449 = vmatpush1.bf16.msra.mxu0 0
        %1450 = vmatprep.subr.bf16.mxu0 0
        %1451 = vmatpush1.bf16.msra.mxu0 0
        %1452 = vmatprep.mubr.bf16.mxu0 0
        %1453 = vmatmul.mubr.bf16.gmra.mrb[0].mxu0 %v1369
        %v1454 = vpop.f32.mrb[0].mxu0
        %v1455 = vadd.f32 0.0, %v1454
        %v1456 = vpop.f32.mrb[0].mxu0
        %v1457 = vpop.f32.mrb[0].mxu0
        %v1458 = vadd.f32 0.0, %v1457
        %v1459 = vpop.f32.mrb[0].mxu0
        %1460 = vmatprep.mubr.bf16.mxu0 0
        %1461 = vmatmul.mubr.bf16.gmra.mrb[0].mxu0 %v1368
        %v1462 = vpop.f32.mrb[0].mxu0
        %v1463 = vadd.f32 0.0, %v1462
        %v1464 = vpop.f32.mrb[0].mxu0
        %v1465 = vpop.f32.mrb[0].mxu0
        %v1466 = vadd.f32 0.0, %v1465
        %v1467 = vpop.f32.mrb[0].mxu0
        %1468 = vdwg.mxu0
        %v1469 = vadd.f32 %v1337, %v1455
        %v1470 = vadd.f32 %v1338, %v1458
        %v1471 = vadd.f32 %v1339, %v1463
        %v1472 = vadd.f32 %v1340, %v1466
        %s1473 = scalar_lea.vmem [#allocation4], 576
        %v1474 = vld [vmem:[%s1473] sm:$0xf]
        %v1475 = vld [vmem:[%s1473 + $0x4] sm:$0xf]
        %v1476 = vld [vmem:[%s1473 + $0x8] sm:$0xf]
        %v1477 = vld [vmem:[%s1473 + $0xc] sm:$0xf]
        %v1478 = vld [vmem:[%s1473 + $0x10] sm:$0xf]
        %v1479 = vld [vmem:[%s1473 + $0x14] sm:$0xf]
        %v1480 = vld [vmem:[%s1473 + $0x18] sm:$0xf]
        %v1481 = vld [vmem:[%s1473 + $0x1c] sm:$0xf]
        %v1482 = vld [vmem:[%s1473 + $0x20] sm:$0xf]
        %v1483 = vld [vmem:[%s1473 + $0x24] sm:$0xf]
        %v1484 = vld [vmem:[%s1473 + $0x28] sm:$0xf]
        %v1485 = vld [vmem:[%s1473 + $0x2c] sm:$0xf]
        %v1486 = vld [vmem:[%s1473 + $0x30] sm:$0xf]
        %v1487 = vld [vmem:[%s1473 + $0x34] sm:$0xf]
        %v1488 = vld [vmem:[%s1473 + $0x38] sm:$0xf]
        %v1489 = vld [vmem:[%s1473 + $0x3c] sm:$0xf]
        %v1491 = vshrl.u32 %v1364, 16
        %v1493 = vrot.slane %v1491, 3
        %v1494 = vshll.u32 %v1364, 16
        %v1496 = vrot.slane %v1494, 4
        %v1497 = vor.u32 %v1493, %v1496
        %v1499 = vshrl.u32 %v1365, 16
        %v1501 = vrot.slane %v1499, 3
        %v1502 = vshll.u32 %v1365, 16
        %v1504 = vrot.slane %v1502, 4
        %v1505 = vor.u32 %v1501, %v1504
        %v1506 = vsel %vm820, %v1497, %v1505
        %v1525 = vunpack.c.l.b16 %v1474
        %v1526 = vunpack.c.l.b16 %v1475
        %v1527 = vunpack.c.l.b16 %v1476
        %v1528 = vunpack.c.l.b16 %v1477
        %v1529 = vunpack.c.l.b16 %v1478
        %v1530 = vunpack.c.l.b16 %v1479
        %v1531 = vunpack.c.l.b16 %v1480
        %v1532 = vunpack.c.l.b16 %v1481
        %v1533 = vunpack.c.l.b16 %v1482
        %v1534 = vunpack.c.l.b16 %v1483
        %v1535 = vunpack.c.l.b16 %v1484
        %v1536 = vunpack.c.l.b16 %v1485
        %v1537 = vunpack.c.l.b16 %v1486
        %v1538 = vunpack.c.l.b16 %v1487
        %v1539 = vunpack.c.l.b16 %v1488
        %v1540 = vunpack.c.l.b16 %v1489
        %v1541 = vpack.c.b16 %v1526, %v1525
        %v1542 = vpack.c.b16 %v1528, %v1527
        %v1543 = vpack.c.b16 %v1530, %v1529
        %v1544 = vpack.c.b16 %v1532, %v1531
        %v1545 = vpack.c.b16 %v1534, %v1533
        %v1546 = vpack.c.b16 %v1536, %v1535
        %v1547 = vpack.c.b16 %v1538, %v1537
        %v1548 = vpack.c.b16 %v1540, %v1539
        %1557 = vmatprep.subr.bf16.mxu0 0
        %1558 = vmatpush1.bf16.msra.mxu0 %v1541
        %1559 = vmatprep.subr.bf16.mxu0 0
        %1560 = vmatpush1.bf16.msra.mxu0 %v1542
        %1561 = vmatprep.subr.bf16.mxu0 0
        %1562 = vmatpush1.bf16.msra.mxu0 %v1543
        %1563 = vmatprep.subr.bf16.mxu0 0
        %1564 = vmatpush1.bf16.msra.mxu0 %v1544
        %1565 = vmatprep.subr.bf16.mxu0 0
        %1566 = vmatpush1.bf16.msra.mxu0 %v1545
        %1567 = vmatprep.subr.bf16.mxu0 0
        %1568 = vmatpush1.bf16.msra.mxu0 %v1546
        %1569 = vmatprep.subr.bf16.mxu0 0
        %1570 = vmatpush1.bf16.msra.mxu0 %v1547
        %1571 = vmatprep.subr.bf16.mxu0 0
        %1572 = vmatpush1.bf16.msra.mxu0 %v1548
        %1573 = vmatprep.subr.bf16.mxu0 0
        %1574 = vmatpush1.bf16.msra.mxu0 0
        %1575 = vmatprep.subr.bf16.mxu0 0
        %1576 = vmatpush1.bf16.msra.mxu0 0
        %1577 = vmatprep.subr.bf16.mxu0 0
        %1578 = vmatpush1.bf16.msra.mxu0 0
        %1579 = vmatprep.subr.bf16.mxu0 0
        %1580 = vmatpush1.bf16.msra.mxu0 0
        %1581 = vmatprep.subr.bf16.mxu0 0
        %1582 = vmatpush1.bf16.msra.mxu0 0
        %1583 = vmatprep.subr.bf16.mxu0 0
        %1584 = vmatpush1.bf16.msra.mxu0 0
        %1585 = vmatprep.subr.bf16.mxu0 0
        %1586 = vmatpush1.bf16.msra.mxu0 0
        %1587 = vmatprep.subr.bf16.mxu0 0
        %1588 = vmatpush1.bf16.msra.mxu0 0
        %1589 = vmatprep.mubr.bf16.mxu0 0
        %1590 = vmatmul.mubr.bf16.gmra.mrb[0].mxu0 %v1506
        %v1591 = vpop.f32.mrb[0].mxu0
        %v1592 = vadd.f32 0.0, %v1591
        %v1593 = vpop.f32.mrb[0].mxu0
        %v1594 = vpop.f32.mrb[0].mxu0
        %v1595 = vadd.f32 0.0, %v1594
        %v1596 = vpop.f32.mrb[0].mxu0
        %1597 = vmatprep.mubr.bf16.mxu0 0
        %1598 = vmatmul.mubr.bf16.gmra.mrb[0].mxu0 %v1505
        %v1599 = vpop.f32.mrb[0].mxu0
        %v1600 = vadd.f32 0.0, %v1599
        %v1601 = vpop.f32.mrb[0].mxu0
        %v1602 = vpop.f32.mrb[0].mxu0
        %v1603 = vadd.f32 0.0, %v1602
        %v1604 = vpop.f32.mrb[0].mxu0
        %1605 = vdwg.mxu0
        %v1606 = vadd.f32 %v1469, %v1592
        %v1607 = vadd.f32 %v1470, %v1595
        %v1608 = vadd.f32 %v1471, %v1600
        %v1609 = vadd.f32 %v1472, %v1603
        %v1610 = vld [vmem:[#allocation2 + $0x8] sm:$0xf]
        %v1611 = vld [vmem:[#allocation2 + $0xc] sm:$0xf]
        %v1612 = vld [vmem:[#allocation2 + $0x10] sm:$0xf]
        %v1613 = vld [vmem:[#allocation2 + $0x14] sm:$0x1]
        %s1614 = scalar_lea.vmem [#allocation4], 640
        %v1615 = vld [vmem:[%s1614] sm:$0xf]
        %v1616 = vld [vmem:[%s1614 + $0x4] sm:$0xf]
        %v1617 = vld [vmem:[%s1614 + $0x8] sm:$0xf]
        %v1618 = vld [vmem:[%s1614 + $0xc] sm:$0xf]
        %v1619 = vld [vmem:[%s1614 + $0x10] sm:$0xf]
        %v1620 = vld [vmem:[%s1614 + $0x14] sm:$0xf]
        %v1621 = vld [vmem:[%s1614 + $0x18] sm:$0xf]
        %v1622 = vld [vmem:[%s1614 + $0x1c] sm:$0xf]
        %v1623 = vld [vmem:[%s1614 + $0x20] sm:$0xf]
        %v1624 = vld [vmem:[%s1614 + $0x24] sm:$0xf]
        %v1625 = vld [vmem:[%s1614 + $0x28] sm:$0xf]
        %v1626 = vld [vmem:[%s1614 + $0x2c] sm:$0xf]
        %v1627 = vld [vmem:[%s1614 + $0x30] sm:$0xf]
        %v1628 = vld [vmem:[%s1614 + $0x34] sm:$0xf]
        %v1629 = vld [vmem:[%s1614 + $0x38] sm:$0xf]
        %v1630 = vld [vmem:[%s1614 + $0x3c] sm:$0xf]
        %v1635 = vunpack.c.l.b16 %v1610
        %v1636 = vunpack.c.l.b16 %v1611
        %v1637 = vunpack.c.l.b16 %v1612
        %v1638 = vunpack.c.l.b16 %v1613
        %v1639 = vpack.c.b16 %v1636, %v1635
        %v1640 = vpack.c.b16 %v1638, %v1637
        %v1659 = vunpack.c.l.b16 %v1615
        %v1660 = vunpack.c.l.b16 %v1616
        %v1661 = vunpack.c.l.b16 %v1617
        %v1662 = vunpack.c.l.b16 %v1618
        %v1663 = vunpack.c.l.b16 %v1619
        %v1664 = vunpack.c.l.b16 %v1620
        %v1665 = vunpack.c.l.b16 %v1621
        %v1666 = vunpack.c.l.b16 %v1622
        %v1667 = vunpack.c.l.b16 %v1623
        %v1668 = vunpack.c.l.b16 %v1624
        %v1669 = vunpack.c.l.b16 %v1625
        %v1670 = vunpack.c.l.b16 %v1626
        %v1671 = vunpack.c.l.b16 %v1627
        %v1672 = vunpack.c.l.b16 %v1628
        %v1673 = vunpack.c.l.b16 %v1629
        %v1674 = vunpack.c.l.b16 %v1630
        %v1675 = vpack.c.b16 %v1660, %v1659
        %v1676 = vpack.c.b16 %v1662, %v1661
        %v1677 = vpack.c.b16 %v1664, %v1663
        %v1678 = vpack.c.b16 %v1666, %v1665
        %v1679 = vpack.c.b16 %v1668, %v1667
        %v1680 = vpack.c.b16 %v1670, %v1669
        %v1681 = vpack.c.b16 %v1672, %v1671
        %v1682 = vpack.c.b16 %v1674, %v1673
        %1691 = vmatprep.subr.bf16.mxu0 0
        %1692 = vmatpush1.bf16.msra.mxu0 %v1675
        %1693 = vmatprep.subr.bf16.mxu0 0
        %1694 = vmatpush1.bf16.msra.mxu0 %v1676
        %1695 = vmatprep.subr.bf16.mxu0 0
        %1696 = vmatpush1.bf16.msra.mxu0 %v1677
        %1697 = vmatprep.subr.bf16.mxu0 0
        %1698 = vmatpush1.bf16.msra.mxu0 %v1678
        %1699 = vmatprep.subr.bf16.mxu0 0
        %1700 = vmatpush1.bf16.msra.mxu0 %v1679
        %1701 = vmatprep.subr.bf16.mxu0 0
        %1702 = vmatpush1.bf16.msra.mxu0 %v1680
        %1703 = vmatprep.subr.bf16.mxu0 0
        %1704 = vmatpush1.bf16.msra.mxu0 %v1681
        %1705 = vmatprep.subr.bf16.mxu0 0
        %1706 = vmatpush1.bf16.msra.mxu0 %v1682
        %1707 = vmatprep.subr.bf16.mxu0 0
        %1708 = vmatpush1.bf16.msra.mxu0 0
        %1709 = vmatprep.subr.bf16.mxu0 0
        %1710 = vmatpush1.bf16.msra.mxu0 0
        %1711 = vmatprep.subr.bf16.mxu0 0
        %1712 = vmatpush1.bf16.msra.mxu0 0
        %1713 = vmatprep.subr.bf16.mxu0 0
        %1714 = vmatpush1.bf16.msra.mxu0 0
        %1715 = vmatprep.subr.bf16.mxu0 0
        %1716 = vmatpush1.bf16.msra.mxu0 0
        %1717 = vmatprep.subr.bf16.mxu0 0
        %1718 = vmatpush1.bf16.msra.mxu0 0
        %1719 = vmatprep.subr.bf16.mxu0 0
        %1720 = vmatpush1.bf16.msra.mxu0 0
        %1721 = vmatprep.subr.bf16.mxu0 0
        %1722 = vmatpush1.bf16.msra.mxu0 0
        %1723 = vmatprep.mubr.bf16.mxu0 0
        %1724 = vmatmul.mubr.bf16.gmra.mrb[0].mxu0 %v1639
        %v1725 = vpop.f32.mrb[0].mxu0
        %v1726 = vadd.f32 0.0, %v1725
        %v1727 = vpop.f32.mrb[0].mxu0
        %v1728 = vpop.f32.mrb[0].mxu0
        %v1729 = vadd.f32 0.0, %v1728
        %v1730 = vpop.f32.mrb[0].mxu0
        %1731 = vmatprep.mubr.bf16.mxu0 0
        %1732 = vmatmul.mubr.bf16.gmra.mrb[0].mxu0 %v1640
        %v1733 = vpop.f32.mrb[0].mxu0
        %v1734 = vadd.f32 0.0, %v1733
        %v1735 = vpop.f32.mrb[0].mxu0
        %v1736 = vpop.f32.mrb[0].mxu0
        %v1737 = vadd.f32 0.0, %v1736
        %v1738 = vpop.f32.mrb[0].mxu0
        %1739 = vdwg.mxu0
        %v1740 = vadd.f32 %v1606, %v1726
        %v1741 = vadd.f32 %v1607, %v1729
        %v1742 = vadd.f32 %v1608, %v1734
        %v1743 = vadd.f32 %v1609, %v1737
        %s1744 = scalar_lea.vmem [#allocation4], 704
        %v1745 = vld [vmem:[%s1744] sm:$0xf]
        %v1746 = vld [vmem:[%s1744 + $0x4] sm:$0xf]
        %v1747 = vld [vmem:[%s1744 + $0x8] sm:$0xf]
        %v1748 = vld [vmem:[%s1744 + $0xc] sm:$0xf]
        %v1749 = vld [vmem:[%s1744 + $0x10] sm:$0xf]
        %v1750 = vld [vmem:[%s1744 + $0x14] sm:$0xf]
        %v1751 = vld [vmem:[%s1744 + $0x18] sm:$0xf]
        %v1752 = vld [vmem:[%s1744 + $0x1c] sm:$0xf]
        %v1753 = vld [vmem:[%s1744 + $0x20] sm:$0xf]
        %v1754 = vld [vmem:[%s1744 + $0x24] sm:$0xf]
        %v1755 = vld [vmem:[%s1744 + $0x28] sm:$0xf]
        %v1756 = vld [vmem:[%s1744 + $0x2c] sm:$0xf]
        %v1757 = vld [vmem:[%s1744 + $0x30] sm:$0xf]
        %v1758 = vld [vmem:[%s1744 + $0x34] sm:$0xf]
        %v1759 = vld [vmem:[%s1744 + $0x38] sm:$0xf]
        %v1760 = vld [vmem:[%s1744 + $0x3c] sm:$0xf]
        %v1762 = vshrl.u32 %v1639, 16
        %v1764 = vshll.u32 %v1639, 16
        %v1766 = vrot.slane %v1764, 1
        %v1767 = vor.u32 %v1762, %v1766
        %v1769 = vshll.u32 %v1640, 16
        %v1771 = vrot.slane %v1769, 1
        %v1772 = vsel %vm311, %v1767, %v1771
        %v1773 = vshrl.u32 %v1640, 16
        %v1775 = vor.u32 %v1773, %v1771
        %v1794 = vunpack.c.l.b16 %v1745
        %v1795 = vunpack.c.l.b16 %v1746
        %v1796 = vunpack.c.l.b16 %v1747
        %v1797 = vunpack.c.l.b16 %v1748
        %v1798 = vunpack.c.l.b16 %v1749
        %v1799 = vunpack.c.l.b16 %v1750
        %v1800 = vunpack.c.l.b16 %v1751
        %v1801 = vunpack.c.l.b16 %v1752
        %v1802 = vunpack.c.l.b16 %v1753
        %v1803 = vunpack.c.l.b16 %v1754
        %v1804 = vunpack.c.l.b16 %v1755
        %v1805 = vunpack.c.l.b16 %v1756
        %v1806 = vunpack.c.l.b16 %v1757
        %v1807 = vunpack.c.l.b16 %v1758
        %v1808 = vunpack.c.l.b16 %v1759
        %v1809 = vunpack.c.l.b16 %v1760
        %v1810 = vpack.c.b16 %v1795, %v1794
        %v1811 = vpack.c.b16 %v1797, %v1796
        %v1812 = vpack.c.b16 %v1799, %v1798
        %v1813 = vpack.c.b16 %v1801, %v1800
        %v1814 = vpack.c.b16 %v1803, %v1802
        %v1815 = vpack.c.b16 %v1805, %v1804
        %v1816 = vpack.c.b16 %v1807, %v1806
        %v1817 = vpack.c.b16 %v1809, %v1808
        %1826 = vmatprep.subr.bf16.mxu0 0
        %1827 = vmatpush1.bf16.msra.mxu0 %v1810
        %1828 = vmatprep.subr.bf16.mxu0 0
        %1829 = vmatpush1.bf16.msra.mxu0 %v1811
        %1830 = vmatprep.subr.bf16.mxu0 0
        %1831 = vmatpush1.bf16.msra.mxu0 %v1812
        %1832 = vmatprep.subr.bf16.mxu0 0
        %1833 = vmatpush1.bf16.msra.mxu0 %v1813
        %1834 = vmatprep.subr.bf16.mxu0 0
        %1835 = vmatpush1.bf16.msra.mxu0 %v1814
        %1836 = vmatprep.subr.bf16.mxu0 0
        %1837 = vmatpush1.bf16.msra.mxu0 %v1815
        %1838 = vmatprep.subr.bf16.mxu0 0
        %1839 = vmatpush1.bf16.msra.mxu0 %v1816
        %1840 = vmatprep.subr.bf16.mxu0 0
        %1841 = vmatpush1.bf16.msra.mxu0 %v1817
        %1842 = vmatprep.subr.bf16.mxu0 0
        %1843 = vmatpush1.bf16.msra.mxu0 0
        %1844 = vmatprep.subr.bf16.mxu0 0
        %1845 = vmatpush1.bf16.msra.mxu0 0
        %1846 = vmatprep.subr.bf16.mxu0 0
        %1847 = vmatpush1.bf16.msra.mxu0 0
        %1848 = vmatprep.subr.bf16.mxu0 0
        %1849 = vmatpush1.bf16.msra.mxu0 0
        %1850 = vmatprep.subr.bf16.mxu0 0
        %1851 = vmatpush1.bf16.msra.mxu0 0
        %1852 = vmatprep.subr.bf16.mxu0 0
        %1853 = vmatpush1.bf16.msra.mxu0 0
        %1854 = vmatprep.subr.bf16.mxu0 0
        %1855 = vmatpush1.bf16.msra.mxu0 0
        %1856 = vmatprep.subr.bf16.mxu0 0
        %1857 = vmatpush1.bf16.msra.mxu0 0
        %1858 = vmatprep.mubr.bf16.mxu0 0
        %1859 = vmatmul.mubr.bf16.gmra.mrb[0].mxu0 %v1772
        %v1860 = vpop.f32.mrb[0].mxu0
        %v1861 = vadd.f32 0.0, %v1860
        %v1862 = vpop.f32.mrb[0].mxu0
        %v1863 = vpop.f32.mrb[0].mxu0
        %v1864 = vadd.f32 0.0, %v1863
        %v1865 = vpop.f32.mrb[0].mxu0
        %1866 = vmatprep.mubr.bf16.mxu0 0
        %1867 = vmatmul.mubr.bf16.gmra.mrb[0].mxu0 %v1775
        %v1868 = vpop.f32.mrb[0].mxu0
        %v1869 = vadd.f32 0.0, %v1868
        %v1870 = vpop.f32.mrb[0].mxu0
        %v1871 = vpop.f32.mrb[0].mxu0
        %v1872 = vadd.f32 0.0, %v1871
        %v1873 = vpop.f32.mrb[0].mxu0
        %1874 = vdwg.mxu0
        %v1875 = vadd.f32 %v1740, %v1861
        %v1876 = vadd.f32 %v1741, %v1864
        %v1877 = vadd.f32 %v1742, %v1869
        %v1878 = vadd.f32 %v1743, %v1872
        %v1879 = vld [vmem:[#allocation2 + $0x8] sm:$0xc]
        %v1880 = vld [vmem:[#allocation2 + $0x14] sm:$0x7]
        %s1881 = scalar_lea.vmem [#allocation4], 768
        %v1882 = vld [vmem:[%s1881] sm:$0xf]
        %v1883 = vld [vmem:[%s1881 + $0x4] sm:$0xf]
        %v1884 = vld [vmem:[%s1881 + $0x8] sm:$0xf]
        %v1885 = vld [vmem:[%s1881 + $0xc] sm:$0xf]
        %v1886 = vld [vmem:[%s1881 + $0x10] sm:$0xf]
        %v1887 = vld [vmem:[%s1881 + $0x14] sm:$0xf]
        %v1888 = vld [vmem:[%s1881 + $0x18] sm:$0xf]
        %v1889 = vld [vmem:[%s1881 + $0x1c] sm:$0xf]
        %v1890 = vld [vmem:[%s1881 + $0x20] sm:$0xf]
        %v1891 = vld [vmem:[%s1881 + $0x24] sm:$0xf]
        %v1892 = vld [vmem:[%s1881 + $0x28] sm:$0xf]
        %v1893 = vld [vmem:[%s1881 + $0x2c] sm:$0xf]
        %v1894 = vld [vmem:[%s1881 + $0x30] sm:$0xf]
        %v1895 = vld [vmem:[%s1881 + $0x34] sm:$0xf]
        %v1896 = vld [vmem:[%s1881 + $0x38] sm:$0xf]
        %v1897 = vld [vmem:[%s1881 + $0x3c] sm:$0xf]
        %v1900 = vunpack.c.l.b16 %v1879
        %v1901 = vunpack.c.l.b16 %v1880
        %v1902 = vpack.c.b16 %v1636, %v1900
        %v1903 = vpack.c.b16 %v1901, %v1637
        %vm1904 = vsmask.f32 5376
        %v1906 = vshrl.u32 %v1902, 16
        %v1908 = vrot.slane %v1906, 2
        %v1909 = vshll.u32 %v1902, 16
        %v1911 = vrot.slane %v1909, 3
        %v1912 = vor.u32 %v1908, %v1911
        %v1914 = vshrl.u32 %v1903, 16
        %v1916 = vrot.slane %v1914, 2
        %v1917 = vshll.u32 %v1903, 16
        %v1919 = vrot.slane %v1917, 3
        %v1920 = vor.u32 %v1916, %v1919
        %v1921 = vsel %vm1904, %v1912, %v1920
        %v1940 = vunpack.c.l.b16 %v1882
        %v1941 = vunpack.c.l.b16 %v1883
        %v1942 = vunpack.c.l.b16 %v1884
        %v1943 = vunpack.c.l.b16 %v1885
        %v1944 = vunpack.c.l.b16 %v1886
        %v1945 = vunpack.c.l.b16 %v1887
        %v1946 = vunpack.c.l.b16 %v1888
        %v1947 = vunpack.c.l.b16 %v1889
        %v1948 = vunpack.c.l.b16 %v1890
        %v1949 = vunpack.c.l.b16 %v1891
        %v1950 = vunpack.c.l.b16 %v1892
        %v1951 = vunpack.c.l.b16 %v1893
        %v1952 = vunpack.c.l.b16 %v1894
        %v1953 = vunpack.c.l.b16 %v1895
        %v1954 = vunpack.c.l.b16 %v1896
        %v1955 = vunpack.c.l.b16 %v1897
        %v1956 = vpack.c.b16 %v1941, %v1940
        %v1957 = vpack.c.b16 %v1943, %v1942
        %v1958 = vpack.c.b16 %v1945, %v1944
        %v1959 = vpack.c.b16 %v1947, %v1946
        %v1960 = vpack.c.b16 %v1949, %v1948
        %v1961 = vpack.c.b16 %v1951, %v1950
        %v1962 = vpack.c.b16 %v1953, %v1952
        %v1963 = vpack.c.b16 %v1955, %v1954
        %1972 = vmatprep.subr.bf16.mxu0 0
        %1973 = vmatpush1.bf16.msra.mxu0 %v1956
        %1974 = vmatprep.subr.bf16.mxu0 0
        %1975 = vmatpush1.bf16.msra.mxu0 %v1957
        %1976 = vmatprep.subr.bf16.mxu0 0
        %1977 = vmatpush1.bf16.msra.mxu0 %v1958
        %1978 = vmatprep.subr.bf16.mxu0 0
        %1979 = vmatpush1.bf16.msra.mxu0 %v1959
        %1980 = vmatprep.subr.bf16.mxu0 0
        %1981 = vmatpush1.bf16.msra.mxu0 %v1960
        %1982 = vmatprep.subr.bf16.mxu0 0
        %1983 = vmatpush1.bf16.msra.mxu0 %v1961
        %1984 = vmatprep.subr.bf16.mxu0 0
        %1985 = vmatpush1.bf16.msra.mxu0 %v1962
        %1986 = vmatprep.subr.bf16.mxu0 0
        %1987 = vmatpush1.bf16.msra.mxu0 %v1963
        %1988 = vmatprep.subr.bf16.mxu0 0
        %1989 = vmatpush1.bf16.msra.mxu0 0
        %1990 = vmatprep.subr.bf16.mxu0 0
        %1991 = vmatpush1.bf16.msra.mxu0 0
        %1992 = vmatprep.subr.bf16.mxu0 0
        %1993 = vmatpush1.bf16.msra.mxu0 0
        %1994 = vmatprep.subr.bf16.mxu0 0
        %1995 = vmatpush1.bf16.msra.mxu0 0
        %1996 = vmatprep.subr.bf16.mxu0 0
        %1997 = vmatpush1.bf16.msra.mxu0 0
        %1998 = vmatprep.subr.bf16.mxu0 0
        %1999 = vmatpush1.bf16.msra.mxu0 0
        %2000 = vmatprep.subr.bf16.mxu0 0
        %2001 = vmatpush1.bf16.msra.mxu0 0
        %2002 = vmatprep.subr.bf16.mxu0 0
        %2003 = vmatpush1.bf16.msra.mxu0 0
        %2004 = vmatprep.mubr.bf16.mxu0 0
        %2005 = vmatmul.mubr.bf16.gmra.mrb[0].mxu0 %v1921
        %v2006 = vpop.f32.mrb[0].mxu0
        %v2007 = vadd.f32 0.0, %v2006
        %v2008 = vpop.f32.mrb[0].mxu0
        %v2009 = vpop.f32.mrb[0].mxu0
        %v2010 = vadd.f32 0.0, %v2009
        %v2011 = vpop.f32.mrb[0].mxu0
        %2012 = vmatprep.mubr.bf16.mxu0 0
        %2013 = vmatmul.mubr.bf16.gmra.mrb[0].mxu0 %v1920
        %v2014 = vpop.f32.mrb[0].mxu0
        %v2015 = vadd.f32 0.0, %v2014
        %v2016 = vpop.f32.mrb[0].mxu0
        %v2017 = vpop.f32.mrb[0].mxu0
        %v2018 = vadd.f32 0.0, %v2017
        %v2019 = vpop.f32.mrb[0].mxu0
        %2020 = vdwg.mxu0
        %v2021 = vadd.f32 %v1875, %v2007
        %v2022 = vadd.f32 %v1876, %v2010
        %v2023 = vadd.f32 %v1877, %v2015
        %v2024 = vadd.f32 %v1878, %v2018
        %v2025 = vld [vmem:[#allocation2 + $0x8] sm:$0x8]
        %v2026 = vld [vmem:[#allocation2 + $0x14] sm:$0xf]
        %s2027 = scalar_lea.vmem [#allocation4], 832
        %v2028 = vld [vmem:[%s2027] sm:$0xf]
        %v2029 = vld [vmem:[%s2027 + $0x4] sm:$0xf]
        %v2030 = vld [vmem:[%s2027 + $0x8] sm:$0xf]
        %v2031 = vld [vmem:[%s2027 + $0xc] sm:$0xf]
        %v2032 = vld [vmem:[%s2027 + $0x10] sm:$0xf]
        %v2033 = vld [vmem:[%s2027 + $0x14] sm:$0xf]
        %v2034 = vld [vmem:[%s2027 + $0x18] sm:$0xf]
        %v2035 = vld [vmem:[%s2027 + $0x1c] sm:$0xf]
        %v2036 = vld [vmem:[%s2027 + $0x20] sm:$0xf]
        %v2037 = vld [vmem:[%s2027 + $0x24] sm:$0xf]
        %v2038 = vld [vmem:[%s2027 + $0x28] sm:$0xf]
        %v2039 = vld [vmem:[%s2027 + $0x2c] sm:$0xf]
        %v2040 = vld [vmem:[%s2027 + $0x30] sm:$0xf]
        %v2041 = vld [vmem:[%s2027 + $0x34] sm:$0xf]
        %v2042 = vld [vmem:[%s2027 + $0x38] sm:$0xf]
        %v2043 = vld [vmem:[%s2027 + $0x3c] sm:$0xf]
        %v2046 = vunpack.c.l.b16 %v2025
        %v2047 = vunpack.c.l.b16 %v2026
        %v2048 = vpack.c.b16 %v1636, %v2046
        %v2049 = vpack.c.b16 %v2047, %v1637
        %v2050 = vrot.slane %v2048, 3
        %v2051 = vrot.slane %v2049, 3
        %v2052 = vsel %vm1366, %v2050, %v2051
        %v2071 = vunpack.c.l.b16 %v2028
        %v2072 = vunpack.c.l.b16 %v2029
        %v2073 = vunpack.c.l.b16 %v2030
        %v2074 = vunpack.c.l.b16 %v2031
        %v2075 = vunpack.c.l.b16 %v2032
        %v2076 = vunpack.c.l.b16 %v2033
        %v2077 = vunpack.c.l.b16 %v2034
        %v2078 = vunpack.c.l.b16 %v2035
        %v2079 = vunpack.c.l.b16 %v2036
        %v2080 = vunpack.c.l.b16 %v2037
        %v2081 = vunpack.c.l.b16 %v2038
        %v2082 = vunpack.c.l.b16 %v2039
        %v2083 = vunpack.c.l.b16 %v2040
        %v2084 = vunpack.c.l.b16 %v2041
        %v2085 = vunpack.c.l.b16 %v2042
        %v2086 = vunpack.c.l.b16 %v2043
        %v2087 = vpack.c.b16 %v2072, %v2071
        %v2088 = vpack.c.b16 %v2074, %v2073
        %v2089 = vpack.c.b16 %v2076, %v2075
        %v2090 = vpack.c.b16 %v2078, %v2077
        %v2091 = vpack.c.b16 %v2080, %v2079
        %v2092 = vpack.c.b16 %v2082, %v2081
        %v2093 = vpack.c.b16 %v2084, %v2083
        %v2094 = vpack.c.b16 %v2086, %v2085
        %2103 = vmatprep.subr.bf16.mxu0 0
        %2104 = vmatpush1.bf16.msra.mxu0 %v2087
        %2105 = vmatprep.subr.bf16.mxu0 0
        %2106 = vmatpush1.bf16.msra.mxu0 %v2088
        %2107 = vmatprep.subr.bf16.mxu0 0
        %2108 = vmatpush1.bf16.msra.mxu0 %v2089
        %2109 = vmatprep.subr.bf16.mxu0 0
        %2110 = vmatpush1.bf16.msra.mxu0 %v2090
        %2111 = vmatprep.subr.bf16.mxu0 0
        %2112 = vmatpush1.bf16.msra.mxu0 %v2091
        %2113 = vmatprep.subr.bf16.mxu0 0
        %2114 = vmatpush1.bf16.msra.mxu0 %v2092
        %2115 = vmatprep.subr.bf16.mxu0 0
        %2116 = vmatpush1.bf16.msra.mxu0 %v2093
        %2117 = vmatprep.subr.bf16.mxu0 0
        %2118 = vmatpush1.bf16.msra.mxu0 %v2094
        %2119 = vmatprep.subr.bf16.mxu0 0
        %2120 = vmatpush1.bf16.msra.mxu0 0
        %2121 = vmatprep.subr.bf16.mxu0 0
        %2122 = vmatpush1.bf16.msra.mxu0 0
        %2123 = vmatprep.subr.bf16.mxu0 0
        %2124 = vmatpush1.bf16.msra.mxu0 0
        %2125 = vmatprep.subr.bf16.mxu0 0
        %2126 = vmatpush1.bf16.msra.mxu0 0
        %2127 = vmatprep.subr.bf16.mxu0 0
        %2128 = vmatpush1.bf16.msra.mxu0 0
        %2129 = vmatprep.subr.bf16.mxu0 0
        %2130 = vmatpush1.bf16.msra.mxu0 0
        %2131 = vmatprep.subr.bf16.mxu0 0
        %2132 = vmatpush1.bf16.msra.mxu0 0
        %2133 = vmatprep.subr.bf16.mxu0 0
        %2134 = vmatpush1.bf16.msra.mxu0 0
        %2135 = vmatprep.mubr.bf16.mxu0 0
        %2136 = vmatmul.mubr.bf16.gmra.mrb[0].mxu0 %v2052
        %v2137 = vpop.f32.mrb[0].mxu0
        %v2138 = vadd.f32 0.0, %v2137
        %v2139 = vpop.f32.mrb[0].mxu0
        %v2140 = vpop.f32.mrb[0].mxu0
        %v2141 = vadd.f32 0.0, %v2140
        %v2142 = vpop.f32.mrb[0].mxu0
        %2143 = vmatprep.mubr.bf16.mxu0 0
        %2144 = vmatmul.mubr.bf16.gmra.mrb[0].mxu0 %v2051
        %v2145 = vpop.f32.mrb[0].mxu0
        %v2146 = vadd.f32 0.0, %v2145
        %v2147 = vpop.f32.mrb[0].mxu0
        %v2148 = vpop.f32.mrb[0].mxu0
        %v2149 = vadd.f32 0.0, %v2148
        %v2150 = vpop.f32.mrb[0].mxu0
        %2151 = vdwg.mxu0
        %v2152 = vadd.f32 %v2021, %v2138
        %v2153 = vadd.f32 %v2022, %v2141
        %v2154 = vadd.f32 %v2023, %v2146
        %v2155 = vadd.f32 %v2024, %v2149
        %s2156 = scalar_lea.vmem [#allocation4], 896
        %v2157 = vld [vmem:[%s2156] sm:$0xf]
        %v2158 = vld [vmem:[%s2156 + $0x4] sm:$0xf]
        %v2159 = vld [vmem:[%s2156 + $0x8] sm:$0xf]
        %v2160 = vld [vmem:[%s2156 + $0xc] sm:$0xf]
        %v2161 = vld [vmem:[%s2156 + $0x10] sm:$0xf]
        %v2162 = vld [vmem:[%s2156 + $0x14] sm:$0xf]
        %v2163 = vld [vmem:[%s2156 + $0x18] sm:$0xf]
        %v2164 = vld [vmem:[%s2156 + $0x1c] sm:$0xf]
        %v2165 = vld [vmem:[%s2156 + $0x20] sm:$0xf]
        %v2166 = vld [vmem:[%s2156 + $0x24] sm:$0xf]
        %v2167 = vld [vmem:[%s2156 + $0x28] sm:$0xf]
        %v2168 = vld [vmem:[%s2156 + $0x2c] sm:$0xf]
        %v2169 = vld [vmem:[%s2156 + $0x30] sm:$0xf]
        %v2170 = vld [vmem:[%s2156 + $0x34] sm:$0xf]
        %v2171 = vld [vmem:[%s2156 + $0x38] sm:$0xf]
        %v2172 = vld [vmem:[%s2156 + $0x3c] sm:$0xf]
        %v2174 = vshrl.u32 %v2048, 16
        %v2176 = vrot.slane %v2174, 3
        %v2177 = vshll.u32 %v2048, 16
        %v2179 = vrot.slane %v2177, 4
        %v2180 = vor.u32 %v2176, %v2179
        %v2182 = vshrl.u32 %v2049, 16
        %v2184 = vrot.slane %v2182, 3
        %v2185 = vshll.u32 %v2049, 16
        %v2187 = vrot.slane %v2185, 4
        %v2188 = vor.u32 %v2184, %v2187
        %v2189 = vsel %vm820, %v2180, %v2188
        %v2208 = vunpack.c.l.b16 %v2157
        %v2209 = vunpack.c.l.b16 %v2158
        %v2210 = vunpack.c.l.b16 %v2159
        %v2211 = vunpack.c.l.b16 %v2160
        %v2212 = vunpack.c.l.b16 %v2161
        %v2213 = vunpack.c.l.b16 %v2162
        %v2214 = vunpack.c.l.b16 %v2163
        %v2215 = vunpack.c.l.b16 %v2164
        %v2216 = vunpack.c.l.b16 %v2165
        %v2217 = vunpack.c.l.b16 %v2166
        %v2218 = vunpack.c.l.b16 %v2167
        %v2219 = vunpack.c.l.b16 %v2168
        %v2220 = vunpack.c.l.b16 %v2169
        %v2221 = vunpack.c.l.b16 %v2170
        %v2222 = vunpack.c.l.b16 %v2171
        %v2223 = vunpack.c.l.b16 %v2172
        %v2224 = vpack.c.b16 %v2209, %v2208
        %v2225 = vpack.c.b16 %v2211, %v2210
        %v2226 = vpack.c.b16 %v2213, %v2212
        %v2227 = vpack.c.b16 %v2215, %v2214
        %v2228 = vpack.c.b16 %v2217, %v2216
        %v2229 = vpack.c.b16 %v2219, %v2218
        %v2230 = vpack.c.b16 %v2221, %v2220
        %v2231 = vpack.c.b16 %v2223, %v2222
        %2240 = vmatprep.subr.bf16.mxu0 0
        %2241 = vmatpush1.bf16.msra.mxu0 %v2224
        %2242 = vmatprep.subr.bf16.mxu0 0
        %2243 = vmatpush1.bf16.msra.mxu0 %v2225
        %2244 = vmatprep.subr.bf16.mxu0 0
        %2245 = vmatpush1.bf16.msra.mxu0 %v2226
        %2246 = vmatprep.subr.bf16.mxu0 0
        %2247 = vmatpush1.bf16.msra.mxu0 %v2227
        %2248 = vmatprep.subr.bf16.mxu0 0
        %2249 = vmatpush1.bf16.msra.mxu0 %v2228
        %2250 = vmatprep.subr.bf16.mxu0 0
        %2251 = vmatpush1.bf16.msra.mxu0 %v2229
        %2252 = vmatprep.subr.bf16.mxu0 0
        %2253 = vmatpush1.bf16.msra.mxu0 %v2230
        %2254 = vmatprep.subr.bf16.mxu0 0
        %2255 = vmatpush1.bf16.msra.mxu0 %v2231
        %2256 = vmatprep.subr.bf16.mxu0 0
        %2257 = vmatpush1.bf16.msra.mxu0 0
        %2258 = vmatprep.subr.bf16.mxu0 0
        %2259 = vmatpush1.bf16.msra.mxu0 0
        %2260 = vmatprep.subr.bf16.mxu0 0
        %2261 = vmatpush1.bf16.msra.mxu0 0
        %2262 = vmatprep.subr.bf16.mxu0 0
        %2263 = vmatpush1.bf16.msra.mxu0 0
        %2264 = vmatprep.subr.bf16.mxu0 0
        %2265 = vmatpush1.bf16.msra.mxu0 0
        %2266 = vmatprep.subr.bf16.mxu0 0
        %2267 = vmatpush1.bf16.msra.mxu0 0
        %2268 = vmatprep.subr.bf16.mxu0 0
        %2269 = vmatpush1.bf16.msra.mxu0 0
        %2270 = vmatprep.subr.bf16.mxu0 0
        %2271 = vmatpush1.bf16.msra.mxu0 0
        %2272 = vmatprep.mubr.bf16.mxu0 0
        %2273 = vmatmul.mubr.bf16.gmra.mrb[0].mxu0 %v2189
        %v2274 = vpop.f32.mrb[0].mxu0
        %v2275 = vadd.f32 0.0, %v2274
        %v2276 = vpop.f32.mrb[0].mxu0
        %v2277 = vpop.f32.mrb[0].mxu0
        %v2278 = vadd.f32 0.0, %v2277
        %v2279 = vpop.f32.mrb[0].mxu0
        %2280 = vmatprep.mubr.bf16.mxu0 0
        %2281 = vmatmul.mubr.bf16.gmra.mrb[0].mxu0 %v2188
        %v2282 = vpop.f32.mrb[0].mxu0
        %v2283 = vadd.f32 0.0, %v2282
        %v2284 = vpop.f32.mrb[0].mxu0
        %v2285 = vpop.f32.mrb[0].mxu0
        %v2286 = vadd.f32 0.0, %v2285
        %v2287 = vpop.f32.mrb[0].mxu0
        %2288 = vdwg.mxu0
        %v2289 = vadd.f32 %v2152, %v2275
        %v2290 = vadd.f32 %v2153, %v2278
        %v2291 = vadd.f32 %v2154, %v2283
        %v2292 = vadd.f32 %v2155, %v2286
        %v2293 = vld [vmem:[#allocation2 + $0xc] sm:$0xf]
        %v2294 = vld [vmem:[#allocation2 + $0x10] sm:$0xf]
        %v2295 = vld [vmem:[#allocation2 + $0x14] sm:$0xf]
        %v2296 = vld [vmem:[#allocation2 + $0x18] sm:$0x1]
        %s2297 = scalar_lea.vmem [#allocation4], 960
        %v2298 = vld [vmem:[%s2297] sm:$0xf]
        %v2299 = vld [vmem:[%s2297 + $0x4] sm:$0xf]
        %v2300 = vld [vmem:[%s2297 + $0x8] sm:$0xf]
        %v2301 = vld [vmem:[%s2297 + $0xc] sm:$0xf]
        %v2302 = vld [vmem:[%s2297 + $0x10] sm:$0xf]
        %v2303 = vld [vmem:[%s2297 + $0x14] sm:$0xf]
        %v2304 = vld [vmem:[%s2297 + $0x18] sm:$0xf]
        %v2305 = vld [vmem:[%s2297 + $0x1c] sm:$0xf]
        %v2306 = vld [vmem:[%s2297 + $0x20] sm:$0xf]
        %v2307 = vld [vmem:[%s2297 + $0x24] sm:$0xf]
        %v2308 = vld [vmem:[%s2297 + $0x28] sm:$0xf]
        %v2309 = vld [vmem:[%s2297 + $0x2c] sm:$0xf]
        %v2310 = vld [vmem:[%s2297 + $0x30] sm:$0xf]
        %v2311 = vld [vmem:[%s2297 + $0x34] sm:$0xf]
        %v2312 = vld [vmem:[%s2297 + $0x38] sm:$0xf]
        %v2313 = vld [vmem:[%s2297 + $0x3c] sm:$0xf]
        %v2318 = vunpack.c.l.b16 %v2293
        %v2319 = vunpack.c.l.b16 %v2294
        %v2320 = vunpack.c.l.b16 %v2295
        %v2321 = vunpack.c.l.b16 %v2296
        %v2322 = vpack.c.b16 %v2319, %v2318
        %v2323 = vpack.c.b16 %v2321, %v2320
        %v2342 = vunpack.c.l.b16 %v2298
        %v2343 = vunpack.c.l.b16 %v2299
        %v2344 = vunpack.c.l.b16 %v2300
        %v2345 = vunpack.c.l.b16 %v2301
        %v2346 = vunpack.c.l.b16 %v2302
        %v2347 = vunpack.c.l.b16 %v2303
        %v2348 = vunpack.c.l.b16 %v2304
        %v2349 = vunpack.c.l.b16 %v2305
        %v2350 = vunpack.c.l.b16 %v2306
        %v2351 = vunpack.c.l.b16 %v2307
        %v2352 = vunpack.c.l.b16 %v2308
        %v2353 = vunpack.c.l.b16 %v2309
        %v2354 = vunpack.c.l.b16 %v2310
        %v2355 = vunpack.c.l.b16 %v2311
        %v2356 = vunpack.c.l.b16 %v2312
        %v2357 = vunpack.c.l.b16 %v2313
        %v2358 = vpack.c.b16 %v2343, %v2342
        %v2359 = vpack.c.b16 %v2345, %v2344
        %v2360 = vpack.c.b16 %v2347, %v2346
        %v2361 = vpack.c.b16 %v2349, %v2348
        %v2362 = vpack.c.b16 %v2351, %v2350
        %v2363 = vpack.c.b16 %v2353, %v2352
        %v2364 = vpack.c.b16 %v2355, %v2354
        %v2365 = vpack.c.b16 %v2357, %v2356
        %2374 = vmatprep.subr.bf16.mxu0 0
        %2375 = vmatpush1.bf16.msra.mxu0 %v2358
        %2376 = vmatprep.subr.bf16.mxu0 0
        %2377 = vmatpush1.bf16.msra.mxu0 %v2359
        %2378 = vmatprep.subr.bf16.mxu0 0
        %2379 = vmatpush1.bf16.msra.mxu0 %v2360
        %2380 = vmatprep.subr.bf16.mxu0 0
        %2381 = vmatpush1.bf16.msra.mxu0 %v2361
        %2382 = vmatprep.subr.bf16.mxu0 0
        %2383 = vmatpush1.bf16.msra.mxu0 %v2362
        %2384 = vmatprep.subr.bf16.mxu0 0
        %2385 = vmatpush1.bf16.msra.mxu0 %v2363
        %2386 = vmatprep.subr.bf16.mxu0 0
        %2387 = vmatpush1.bf16.msra.mxu0 %v2364
        %2388 = vmatprep.subr.bf16.mxu0 0
        %2389 = vmatpush1.bf16.msra.mxu0 %v2365
        %2390 = vmatprep.subr.bf16.mxu0 0
        %2391 = vmatpush1.bf16.msra.mxu0 0
        %2392 = vmatprep.subr.bf16.mxu0 0
        %2393 = vmatpush1.bf16.msra.mxu0 0
        %2394 = vmatprep.subr.bf16.mxu0 0
        %2395 = vmatpush1.bf16.msra.mxu0 0
        %2396 = vmatprep.subr.bf16.mxu0 0
        %2397 = vmatpush1.bf16.msra.mxu0 0
        %2398 = vmatprep.subr.bf16.mxu0 0
        %2399 = vmatpush1.bf16.msra.mxu0 0
        %2400 = vmatprep.subr.bf16.mxu0 0
        %2401 = vmatpush1.bf16.msra.mxu0 0
        %2402 = vmatprep.subr.bf16.mxu0 0
        %2403 = vmatpush1.bf16.msra.mxu0 0
        %2404 = vmatprep.subr.bf16.mxu0 0
        %2405 = vmatpush1.bf16.msra.mxu0 0
        %2406 = vmatprep.mubr.bf16.mxu0 0
        %2407 = vmatmul.mubr.bf16.gmra.mrb[0].mxu0 %v2322
        %v2408 = vpop.f32.mrb[0].mxu0
        %v2409 = vadd.f32 0.0, %v2408
        %v2410 = vpop.f32.mrb[0].mxu0
        %v2411 = vpop.f32.mrb[0].mxu0
        %v2412 = vadd.f32 0.0, %v2411
        %v2413 = vpop.f32.mrb[0].mxu0
        %2414 = vmatprep.mubr.bf16.mxu0 0
        %2415 = vmatmul.mubr.bf16.gmra.mrb[0].mxu0 %v2323
        %v2416 = vpop.f32.mrb[0].mxu0
        %v2417 = vadd.f32 0.0, %v2416
        %v2418 = vpop.f32.mrb[0].mxu0
        %v2419 = vpop.f32.mrb[0].mxu0
        %v2420 = vadd.f32 0.0, %v2419
        %v2421 = vpop.f32.mrb[0].mxu0
        %2422 = vdwg.mxu0
        %v2423 = vadd.f32 %v2289, %v2409
        %v2424 = vadd.f32 %v2290, %v2412
        %v2425 = vadd.f32 %v2291, %v2417
        %v2426 = vadd.f32 %v2292, %v2420
        %v2427 = vld [vmem:[%s2] sm:$0x1]
        %v2429 = vlaneseq
        %v2430 = vshrl.u32 %v2429, 7
        %v2431 = vsub.s32 0, %v2430
        %v2432 = vrot.slane %v2427, %v2431
        %v2434 = vadd.f32 %v2423, %v2432
        %v2435 = vadd.f32 %v2424, %v2432
        %v2436 = vadd.f32 %v2425, %v2432
        %v2437 = vadd.f32 %v2426, %v2432
        %v2438 = vmul.f32 %v2434, %v2434
        %v2439 = vmul.f32 %v2435, %v2435
        %v2440 = vmul.f32 %v2436, %v2436
        %v2441 = vmul.f32 %v2437, %v2437
        %2442 = vadd.xlane.f32.xlu0 %v2438
        %v2443 = vpop.xlane.xlu0 %2442
        %2444 = vadd.xlane.f32.xlu0 %v2439
        %v2445 = vpop.xlane.xlu0 %2444
        %2446 = vadd.xlane.f32.xlu0 %v2440
        %v2447 = vpop.xlane.xlu0 %2446
        %vm2448 = vcmask 1040384
        %v2449 = vsel %vm2448, %v2441, 0.0
        %2450 = vadd.xlane.f32.xlu0 %v2449
        %v2451 = vpop.xlane.xlu0 %2450
        %v2452 = vmul.f32 %v2443, 0.015625
        %v2453 = vmul.f32 %v2445, 0.015625
        %v2454 = vmul.f32 %v2447, 0.015625
        %v2455 = vmul.f32 %v2451, 0.015625
        %v2456 = vadd.f32 %v2452, 1e-08
        %v2457 = vadd.f32 %v2453, 1e-08
        %v2458 = vadd.f32 %v2454, 1e-08
        %v2459 = vadd.f32 %v2455, 1e-08
        %v2460 = vrsqrt.pop %v2456
        %v2461 = vrsqrt.pop %v2457
        %v2462 = vrsqrt.pop %v2458
        %v2463 = vrsqrt.pop %v2459
        %v2464 = vmul.f32 %v2434, %v2460
        %v2465 = vmul.f32 %v2435, %v2461
        %v2466 = vmul.f32 %v2436, %v2462
        %v2467 = vmul.f32 %v2437, %v2463
        %v2468 = vmul.f32 %v2464, 0.2
        %v2469 = vmul.f32 %v2465, 0.2
        %v2470 = vmul.f32 %v2466, 0.2
        %v2471 = vmul.f32 %v2467, 0.2
        %v2472 = vmax.f32 %v2464, %v2468
        %v2473 = vmax.f32 %v2465, %v2469
        %v2474 = vmax.f32 %v2466, %v2470
        %v2475 = vmax.f32 %v2467, %v2471
        %2476 = vst [vmem:[#allocation3] sm:$0xf] 0
        %2477 = vst [vmem:[#allocation3 + $0x4] sm:$0xf] 0
        %2478 = vst [vmem:[#allocation3 + $0x8] sm:$0xf] 0
        %2479 = vst [vmem:[#allocation3 + $0xc] sm:$0xf] 0
        %2480 = vst [vmem:[#allocation3 + $0x10] sm:$0x3] 0
        %v2481 = vpack.c.bf16 %v2472, %v2472
        %v2483 = vunpack.c.l.b16 %v2481
        %v2484 = vpack.c.b16 %v2483, %v2483
        %v2486 = vshll.u32 %v2484, 16
        %v2488 = vrot.slane %v2486, 5
        %v2489 = vshrl.u32 %v2484, 16
        %v2491 = vrot.slane %v2489, 4
        %v2492 = vor.u32 %v2491, %v2488
        %v2493 = vrot.slane %v2492, 4
        %vm2496 = vcmask 1043459
        %vm2497 = vsmask.f32 7950
        %vm2498 = vmand %vm2496, %vm2497
        %v2499 = vld [vmem:[#allocation3] sm:$0x8]
        %v2500 = vsel %vm2498, %v2488, %v2499
        %2501 = vst [vmem:[#allocation3] sm:$0x8] %v2500
        %vm2502 = vcmask 1041408
        %vm2503 = vsmask.f32 1280
        %vm2504 = vmand %vm2502, %vm2503
        %v2505 = vld [vmem:[#allocation3 + $0x4] sm:$0x3]
        %v2506 = vsel %vm2504, %v2493, %v2505
        %2507 = vst [vmem:[#allocation3 + $0x4] sm:$0x3] %v2506
        %v2508 = vpack.c.bf16 %v2473, %v2472
        %v2510 = vunpack.c.l.b16 %v2508
        %v2511 = vunpack.c.h.b16 %v2508
        %v2512 = vpack.c.b16 %v2510, %v2510
        %v2513 = vpack.c.b16 %v2511, %v2511
        %vm2514 = vcmask 1042432
        %vm2515 = vcmask 1046532
        %vm2516 = vmor %vm2514, %vm2515
        %v2517 = vrot.slane %v2512, 5
        %v2518 = vrot.slane %v2517, 4
        %v2519 = vrot.slane %v2513, 5
        %v2520 = vsel %vm2516, %v2518, %v2519
        %v2521 = vrot.slane %v2519, 4
        %vm2524 = vcmask 1043458
        %vm2525 = vsmask.f32 7946
        %vm2526 = vmand %vm2524, %vm2525
        %v2527 = vld [vmem:[#allocation3 + $0x4] sm:$0xc]
        %v2528 = vsel %vm2526, %v2520, %v2527
        %2529 = vst [vmem:[#allocation3 + $0x4] sm:$0xc] %v2528
        %v2530 = vld [vmem:[#allocation3 + $0x8] sm:$0x1]
        %v2531 = vsel %vm256, %v2521, %v2530
        %2532 = vst [vmem:[#allocation3 + $0x8] sm:$0x1] %v2531
        %v2533 = vpack.c.bf16 %v2474, %v2473
        %v2535 = vunpack.c.l.b16 %v2533
        %v2536 = vunpack.c.h.b16 %v2533
        %v2537 = vpack.c.b16 %v2535, %v2535
        %v2538 = vpack.c.b16 %v2536, %v2536
        %vm2539 = vsmask.f32 2304
        %vm2540 = vsmask.f32 6416
        %vm2541 = vmor %vm2539, %vm2540
        %v2543 = vshrl.u32 %v2537, 16
        %v2545 = vrot.slane %v2543, 5
        %v2546 = vshll.u32 %v2537, 16
        %v2548 = vrot.slane %v2546, 6
        %v2549 = vor.u32 %v2545, %v2548
        %v2550 = vrot.slane %v2549, 4
        %v2552 = vshrl.u32 %v2538, 16
        %v2554 = vrot.slane %v2552, 5
        %v2555 = vshll.u32 %v2538, 16
        %v2557 = vrot.slane %v2555, 6
        %v2558 = vor.u32 %v2554, %v2557
        %v2559 = vsel %vm2541, %v2550, %v2558
        %vm2561 = vcmask 1043457
        %vm2562 = vsmask.f32 3334
        %vm2563 = vmand %vm2561, %vm2562
        %v2564 = vld [vmem:[#allocation3 + $0x8] sm:$0xe]
        %v2565 = vsel %vm2563, %v2559, %v2564
        %2566 = vst [vmem:[#allocation3 + $0x8] sm:$0xe] %v2565
        %v2567 = vpack.c.bf16 %v2475, %v2474
        %v2569 = vunpack.c.l.b16 %v2567
        %v2570 = vunpack.c.h.b16 %v2567
        %v2571 = vpack.c.b16 %v2569, %v2569
        %v2572 = vpack.c.b16 %v2570, %v2570
        %vm2573 = vcmask 1045508
        %vm2574 = vmor %vm2502, %vm2573
        %v2575 = vrot.slane %v2571, 6
        %v2576 = vrot.slane %v2575, 4
        %v2577 = vrot.slane %v2572, 6
        %v2578 = vsel %vm2574, %v2576, %v2577
        %vm2580 = vsmask.f32 2306
        %vm2581 = vmand %vm2514, %vm2580
        %v2582 = vld [vmem:[#allocation3 + $0xc] sm:$0x7]
        %v2583 = vsel %vm2581, %v2578, %v2582
        %2584 = vst [vmem:[#allocation3 + $0xc] sm:$0x7] %v2583
        %v2585 = vld [vmem:[#allocation3] sm:$0xf]
        %v2586 = vld [vmem:[#allocation3 + $0x4] sm:$0xf]
        %v2587 = vld [vmem:[#allocation3 + $0x8] sm:$0x7]
        %v2588 = vld [vmem:[#allocation7] sm:$0xf]
        %v2589 = vld [vmem:[#allocation7 + $0x4] sm:$0xf]
        %v2590 = vld [vmem:[#allocation7 + $0x8] sm:$0xf]
        %v2591 = vld [vmem:[#allocation7 + $0xc] sm:$0xf]
        %v2592 = vld [vmem:[#allocation7 + $0x10] sm:$0xf]
        %v2593 = vld [vmem:[#allocation7 + $0x14] sm:$0xf]
        %v2594 = vld [vmem:[#allocation7 + $0x18] sm:$0xf]
        %v2595 = vld [vmem:[#allocation7 + $0x1c] sm:$0xf]
        %v2596 = vld [vmem:[#allocation7 + $0x20] sm:$0xf]
        %v2597 = vld [vmem:[#allocation7 + $0x24] sm:$0xf]
        %v2598 = vld [vmem:[#allocation7 + $0x28] sm:$0xf]
        %v2599 = vld [vmem:[#allocation7 + $0x2c] sm:$0xf]
        %v2600 = vld [vmem:[#allocation7 + $0x30] sm:$0xf]
        %v2601 = vld [vmem:[#allocation7 + $0x34] sm:$0xf]
        %v2602 = vld [vmem:[#allocation7 + $0x38] sm:$0xf]
        %v2603 = vld [vmem:[#allocation7 + $0x3c] sm:$0xf]
        %v2604 = vld [vmem:[#allocation3 + $0x8] sm:$0xf]
        %s2605 = scalar_lea.vmem [#allocation7], 64
        %v2606 = vld [vmem:[%s2605] sm:$0xf]
        %v2607 = vld [vmem:[%s2605 + $0x4] sm:$0xf]
        %v2608 = vld [vmem:[%s2605 + $0x8] sm:$0xf]
        %v2609 = vld [vmem:[%s2605 + $0xc] sm:$0xf]
        %v2610 = vld [vmem:[%s2605 + $0x10] sm:$0xf]
        %v2611 = vld [vmem:[%s2605 + $0x14] sm:$0xf]
        %v2612 = vld [vmem:[%s2605 + $0x18] sm:$0xf]
        %v2613 = vld [vmem:[%s2605 + $0x1c] sm:$0xf]
        %v2614 = vld [vmem:[%s2605 + $0x20] sm:$0xf]
        %v2615 = vld [vmem:[%s2605 + $0x24] sm:$0xf]
        %v2616 = vld [vmem:[%s2605 + $0x28] sm:$0xf]
        %v2617 = vld [vmem:[%s2605 + $0x2c] sm:$0xf]
        %v2618 = vld [vmem:[%s2605 + $0x30] sm:$0xf]
        %v2619 = vld [vmem:[%s2605 + $0x34] sm:$0xf]
        %v2620 = vld [vmem:[%s2605 + $0x38] sm:$0xf]
        %v2621 = vld [vmem:[%s2605 + $0x3c] sm:$0xf]
        %v2625 = vunpack.c.l.b16 %v2585
        %v2626 = vunpack.c.l.b16 %v2586
        %v2627 = vunpack.c.l.b16 %v2604
        %v2628 = vpack.c.b16 %v2626, %v2625
        %v2629 = vpack.c.b16 %v2627, %v2627
        %v2631 = vshrl.u32 %v2628, 16
        %v2633 = vshll.u32 %v2628, 16
        %v2635 = vrot.slane %v2633, 1
        %v2636 = vor.u32 %v2631, %v2635
        %v2638 = vshll.u32 %v2629, 16
        %v2640 = vrot.slane %v2638, 1
        %v2641 = vsel %vm311, %v2636, %v2640
        %v2642 = vshrl.u32 %v2629, 16
        %v2644 = vor.u32 %v2642, %v2640
        %v2663 = vunpack.c.l.b16 %v2606
        %v2664 = vunpack.c.l.b16 %v2607
        %v2665 = vunpack.c.l.b16 %v2608
        %v2666 = vunpack.c.l.b16 %v2609
        %v2667 = vunpack.c.l.b16 %v2610
        %v2668 = vunpack.c.l.b16 %v2611
        %v2669 = vunpack.c.l.b16 %v2612
        %v2670 = vunpack.c.l.b16 %v2613
        %v2671 = vunpack.c.l.b16 %v2614
        %v2672 = vunpack.c.l.b16 %v2615
        %v2673 = vunpack.c.l.b16 %v2616
        %v2674 = vunpack.c.l.b16 %v2617
        %v2675 = vunpack.c.l.b16 %v2618
        %v2676 = vunpack.c.l.b16 %v2619
        %v2677 = vunpack.c.l.b16 %v2620
        %v2678 = vunpack.c.l.b16 %v2621
        %v2679 = vpack.c.b16 %v2664, %v2663
        %v2680 = vpack.c.b16 %v2666, %v2665
        %v2681 = vpack.c.b16 %v2668, %v2667
        %v2682 = vpack.c.b16 %v2670, %v2669
        %v2683 = vpack.c.b16 %v2672, %v2671
        %v2684 = vpack.c.b16 %v2674, %v2673
        %v2685 = vpack.c.b16 %v2676, %v2675
        %v2686 = vpack.c.b16 %v2678, %v2677
        %2695 = vmatprep.subr.bf16.mxu0 0
        %2696 = vmatpush1.bf16.msra.mxu0 %v2679
        %2697 = vmatprep.subr.bf16.mxu0 0
        %2698 = vmatpush1.bf16.msra.mxu0 %v2680
        %2699 = vmatprep.subr.bf16.mxu0 0
        %2700 = vmatpush1.bf16.msra.mxu0 %v2681
        %2701 = vmatprep.subr.bf16.mxu0 0
        %2702 = vmatpush1.bf16.msra.mxu0 %v2682
        %2703 = vmatprep.subr.bf16.mxu0 0
        %2704 = vmatpush1.bf16.msra.mxu0 %v2683
        %2705 = vmatprep.subr.bf16.mxu0 0
        %2706 = vmatpush1.bf16.msra.mxu0 %v2684
        %2707 = vmatprep.subr.bf16.mxu0 0
        %2708 = vmatpush1.bf16.msra.mxu0 %v2685
        %2709 = vmatprep.subr.bf16.mxu0 0
        %2710 = vmatpush1.bf16.msra.mxu0 %v2686
        %2711 = vmatprep.subr.bf16.mxu0 0
        %2712 = vmatpush1.bf16.msra.mxu0 0
        %2713 = vmatprep.subr.bf16.mxu0 0
        %2714 = vmatpush1.bf16.msra.mxu0 0
        %2715 = vmatprep.subr.bf16.mxu0 0
        %2716 = vmatpush1.bf16.msra.mxu0 0
        %2717 = vmatprep.subr.bf16.mxu0 0
        %2718 = vmatpush1.bf16.msra.mxu0 0
        %2719 = vmatprep.subr.bf16.mxu0 0
        %2720 = vmatpush1.bf16.msra.mxu0 0
        %2721 = vmatprep.subr.bf16.mxu0 0
        %2722 = vmatpush1.bf16.msra.mxu0 0
        %2723 = vmatprep.subr.bf16.mxu0 0
        %2724 = vmatpush1.bf16.msra.mxu0 0
        %2725 = vmatprep.subr.bf16.mxu0 0
        %2726 = vmatpush1.bf16.msra.mxu0 0
        %2727 = vmatprep.mubr.bf16.mxu0 0
        %2728 = vmatmul.mubr.bf16.gmra.mrb[0].mxu0 %v2641
        %v2729 = vpop.f32.mrb[0].mxu0
        %v2730 = vadd.f32 0.0, %v2729
        %v2731 = vpop.f32.mrb[0].mxu0
        %v2732 = vpop.f32.mrb[0].mxu0
        %v2733 = vadd.f32 0.0, %v2732
        %v2734 = vpop.f32.mrb[0].mxu0
        %2735 = vmatprep.mubr.bf16.mxu0 0
        %2736 = vmatmul.mubr.bf16.gmra.mrb[0].mxu0 %v2644
        %v2737 = vpop.f32.mrb[0].mxu0
        %v2738 = vadd.f32 0.0, %v2737
        %v2739 = vpop.f32.mrb[0].mxu0
        %v2740 = vpop.f32.mrb[0].mxu0
        %v2741 = vpop.f32.mrb[0].mxu0
        %2742 = vdwg.mxu0
        %v2744 = vunpack.c.l.b16 %v2587
        %v2745 = vpack.c.b16 %v2744, %v2744
        %v2764 = vunpack.c.l.b16 %v2588
        %v2765 = vunpack.c.l.b16 %v2589
        %v2766 = vunpack.c.l.b16 %v2590
        %v2767 = vunpack.c.l.b16 %v2591
        %v2768 = vunpack.c.l.b16 %v2592
        %v2769 = vunpack.c.l.b16 %v2593
        %v2770 = vunpack.c.l.b16 %v2594
        %v2771 = vunpack.c.l.b16 %v2595
        %v2772 = vunpack.c.l.b16 %v2596
        %v2773 = vunpack.c.l.b16 %v2597
        %v2774 = vunpack.c.l.b16 %v2598
        %v2775 = vunpack.c.l.b16 %v2599
        %v2776 = vunpack.c.l.b16 %v2600
        %v2777 = vunpack.c.l.b16 %v2601
        %v2778 = vunpack.c.l.b16 %v2602
        %v2779 = vunpack.c.l.b16 %v2603
        %v2780 = vpack.c.b16 %v2765, %v2764
        %v2781 = vpack.c.b16 %v2767, %v2766
        %v2782 = vpack.c.b16 %v2769, %v2768
        %v2783 = vpack.c.b16 %v2771, %v2770
        %v2784 = vpack.c.b16 %v2773, %v2772
        %v2785 = vpack.c.b16 %v2775, %v2774
        %v2786 = vpack.c.b16 %v2777, %v2776
        %v2787 = vpack.c.b16 %v2779, %v2778
        %2796 = vmatprep.subr.bf16.mxu0 0
        %2797 = vmatpush1.bf16.msra.mxu0 %v2780
        %2798 = vmatprep.subr.bf16.mxu0 0
        %2799 = vmatpush1.bf16.msra.mxu0 %v2781
        %2800 = vmatprep.subr.bf16.mxu0 0
        %2801 = vmatpush1.bf16.msra.mxu0 %v2782
        %2802 = vmatprep.subr.bf16.mxu0 0
        %2803 = vmatpush1.bf16.msra.mxu0 %v2783
        %2804 = vmatprep.subr.bf16.mxu0 0
        %2805 = vmatpush1.bf16.msra.mxu0 %v2784
        %2806 = vmatprep.subr.bf16.mxu0 0
        %2807 = vmatpush1.bf16.msra.mxu0 %v2785
        %2808 = vmatprep.subr.bf16.mxu0 0
        %2809 = vmatpush1.bf16.msra.mxu0 %v2786
        %2810 = vmatprep.subr.bf16.mxu0 0
        %2811 = vmatpush1.bf16.msra.mxu0 %v2787
        %2812 = vmatprep.subr.bf16.mxu0 0
        %2813 = vmatpush1.bf16.msra.mxu0 0
        %2814 = vmatprep.subr.bf16.mxu0 0
        %2815 = vmatpush1.bf16.msra.mxu0 0
        %2816 = vmatprep.subr.bf16.mxu0 0
        %2817 = vmatpush1.bf16.msra.mxu0 0
        %2818 = vmatprep.subr.bf16.mxu0 0
        %2819 = vmatpush1.bf16.msra.mxu0 0
        %2820 = vmatprep.subr.bf16.mxu0 0
        %2821 = vmatpush1.bf16.msra.mxu0 0
        %2822 = vmatprep.subr.bf16.mxu0 0
        %2823 = vmatpush1.bf16.msra.mxu0 0
        %2824 = vmatprep.subr.bf16.mxu0 0
        %2825 = vmatpush1.bf16.msra.mxu0 0
        %2826 = vmatprep.subr.bf16.mxu0 0
        %2827 = vmatpush1.bf16.msra.mxu0 0
        %2828 = vmatprep.mubr.bf16.mxu0 0
        %2829 = vmatmul.mubr.bf16.gmra.mrb[0].mxu0 %v2628
        %v2830 = vpop.f32.mrb[0].mxu0
        %v2831 = vadd.f32 %v2730, %v2830
        %v2832 = vpop.f32.mrb[0].mxu0
        %v2833 = vpop.f32.mrb[0].mxu0
        %v2834 = vadd.f32 %v2733, %v2833
        %v2835 = vpop.f32.mrb[0].mxu0
        %2836 = vmatprep.mubr.bf16.mxu0 0
        %2837 = vmatmul.mubr.bf16.gmra.mrb[0].mxu0 %v2745
        %v2838 = vpop.f32.mrb[0].mxu0
        %v2839 = vadd.f32 %v2738, %v2838
        %v2840 = vpop.f32.mrb[0].mxu0
        %v2841 = vpop.f32.mrb[0].mxu0
        %v2842 = vpop.f32.mrb[0].mxu0
        %2843 = vdwg.mxu0
        %v2844 = vld [vmem:[#allocation3] sm:$0xe]
        %s2845 = scalar_lea.vmem [#allocation7], 128
        %v2846 = vld [vmem:[%s2845] sm:$0xf]
        %v2847 = vld [vmem:[%s2845 + $0x4] sm:$0xf]
        %v2848 = vld [vmem:[%s2845 + $0x8] sm:$0xf]
        %v2849 = vld [vmem:[%s2845 + $0xc] sm:$0xf]
        %v2850 = vld [vmem:[%s2845 + $0x10] sm:$0xf]
        %v2851 = vld [vmem:[%s2845 + $0x14] sm:$0xf]
        %v2852 = vld [vmem:[%s2845 + $0x18] sm:$0xf]
        %v2853 = vld [vmem:[%s2845 + $0x1c] sm:$0xf]
        %v2854 = vld [vmem:[%s2845 + $0x20] sm:$0xf]
        %v2855 = vld [vmem:[%s2845 + $0x24] sm:$0xf]
        %v2856 = vld [vmem:[%s2845 + $0x28] sm:$0xf]
        %v2857 = vld [vmem:[%s2845 + $0x2c] sm:$0xf]
        %v2858 = vld [vmem:[%s2845 + $0x30] sm:$0xf]
        %v2859 = vld [vmem:[%s2845 + $0x34] sm:$0xf]
        %v2860 = vld [vmem:[%s2845 + $0x38] sm:$0xf]
        %v2861 = vld [vmem:[%s2845 + $0x3c] sm:$0xf]
        %v2863 = vunpack.c.l.b16 %v2844
        %v2864 = vpack.c.b16 %v2626, %v2863
        %v2865 = vrot.slane %v2864, 1
        %v2866 = vrot.slane %v2629, 1
        %v2867 = vsel %vm550, %v2865, %v2866
        %v2886 = vunpack.c.l.b16 %v2846
        %v2887 = vunpack.c.l.b16 %v2847
        %v2888 = vunpack.c.l.b16 %v2848
        %v2889 = vunpack.c.l.b16 %v2849
        %v2890 = vunpack.c.l.b16 %v2850
        %v2891 = vunpack.c.l.b16 %v2851
        %v2892 = vunpack.c.l.b16 %v2852
        %v2893 = vunpack.c.l.b16 %v2853
        %v2894 = vunpack.c.l.b16 %v2854
        %v2895 = vunpack.c.l.b16 %v2855
        %v2896 = vunpack.c.l.b16 %v2856
        %v2897 = vunpack.c.l.b16 %v2857
        %v2898 = vunpack.c.l.b16 %v2858
        %v2899 = vunpack.c.l.b16 %v2859
        %v2900 = vunpack.c.l.b16 %v2860
        %v2901 = vunpack.c.l.b16 %v2861
        %v2902 = vpack.c.b16 %v2887, %v2886
        %v2903 = vpack.c.b16 %v2889, %v2888
        %v2904 = vpack.c.b16 %v2891, %v2890
        %v2905 = vpack.c.b16 %v2893, %v2892
        %v2906 = vpack.c.b16 %v2895, %v2894
        %v2907 = vpack.c.b16 %v2897, %v2896
        %v2908 = vpack.c.b16 %v2899, %v2898
        %v2909 = vpack.c.b16 %v2901, %v2900
        %2918 = vmatprep.subr.bf16.mxu0 0
        %2919 = vmatpush1.bf16.msra.mxu0 %v2902
        %2920 = vmatprep.subr.bf16.mxu0 0
        %2921 = vmatpush1.bf16.msra.mxu0 %v2903
        %2922 = vmatprep.subr.bf16.mxu0 0
        %2923 = vmatpush1.bf16.msra.mxu0 %v2904
        %2924 = vmatprep.subr.bf16.mxu0 0
        %2925 = vmatpush1.bf16.msra.mxu0 %v2905
        %2926 = vmatprep.subr.bf16.mxu0 0
        %2927 = vmatpush1.bf16.msra.mxu0 %v2906
        %2928 = vmatprep.subr.bf16.mxu0 0
        %2929 = vmatpush1.bf16.msra.mxu0 %v2907
        %2930 = vmatprep.subr.bf16.mxu0 0
        %2931 = vmatpush1.bf16.msra.mxu0 %v2908
        %2932 = vmatprep.subr.bf16.mxu0 0
        %2933 = vmatpush1.bf16.msra.mxu0 %v2909
        %2934 = vmatprep.subr.bf16.mxu0 0
        %2935 = vmatpush1.bf16.msra.mxu0 0
        %2936 = vmatprep.subr.bf16.mxu0 0
        %2937 = vmatpush1.bf16.msra.mxu0 0
        %2938 = vmatprep.subr.bf16.mxu0 0
        %2939 = vmatpush1.bf16.msra.mxu0 0
        %2940 = vmatprep.subr.bf16.mxu0 0
        %2941 = vmatpush1.bf16.msra.mxu0 0
        %2942 = vmatprep.subr.bf16.mxu0 0
        %2943 = vmatpush1.bf16.msra.mxu0 0
        %2944 = vmatprep.subr.bf16.mxu0 0
        %2945 = vmatpush1.bf16.msra.mxu0 0
        %2946 = vmatprep.subr.bf16.mxu0 0
        %2947 = vmatpush1.bf16.msra.mxu0 0
        %2948 = vmatprep.subr.bf16.mxu0 0
        %2949 = vmatpush1.bf16.msra.mxu0 0
        %2950 = vmatprep.mubr.bf16.mxu0 0
        %2951 = vmatmul.mubr.bf16.gmra.mrb[0].mxu0 %v2867
        %v2952 = vpop.f32.mrb[0].mxu0
        %v2953 = vadd.f32 0.0, %v2952
        %v2954 = vpop.f32.mrb[0].mxu0
        %v2955 = vpop.f32.mrb[0].mxu0
        %v2956 = vadd.f32 0.0, %v2955
        %v2957 = vpop.f32.mrb[0].mxu0
        %2958 = vmatprep.mubr.bf16.mxu0 0
        %2959 = vmatmul.mubr.bf16.gmra.mrb[0].mxu0 %v2866
        %v2960 = vpop.f32.mrb[0].mxu0
        %v2961 = vadd.f32 0.0, %v2960
        %v2962 = vpop.f32.mrb[0].mxu0
        %v2963 = vpop.f32.mrb[0].mxu0
        %v2964 = vpop.f32.mrb[0].mxu0
        %2965 = vdwg.mxu0
        %v2966 = vadd.f32 %v2831, %v2953
        %v2967 = vadd.f32 %v2834, %v2956
        %v2968 = vadd.f32 %v2839, %v2961
        %v2969 = vld [vmem:[#allocation3] sm:$0x8]
        %v2970 = vld [vmem:[#allocation3 + $0x4] sm:$0xf]
        %v2971 = vld [vmem:[#allocation3 + $0x8] sm:$0xf]
        %v2972 = vld [vmem:[#allocation3 + $0xc] sm:$0x3]
        %s2973 = scalar_lea.vmem [#allocation7], 192
        %v2974 = vld [vmem:[%s2973] sm:$0xf]
        %v2975 = vld [vmem:[%s2973 + $0x4] sm:$0xf]
        %v2976 = vld [vmem:[%s2973 + $0x8] sm:$0xf]
        %v2977 = vld [vmem:[%s2973 + $0xc] sm:$0xf]
        %v2978 = vld [vmem:[%s2973 + $0x10] sm:$0xf]
        %v2979 = vld [vmem:[%s2973 + $0x14] sm:$0xf]
        %v2980 = vld [vmem:[%s2973 + $0x18] sm:$0xf]
        %v2981 = vld [vmem:[%s2973 + $0x1c] sm:$0xf]
        %v2982 = vld [vmem:[%s2973 + $0x20] sm:$0xf]
        %v2983 = vld [vmem:[%s2973 + $0x24] sm:$0xf]
        %v2984 = vld [vmem:[%s2973 + $0x28] sm:$0xf]
        %v2985 = vld [vmem:[%s2973 + $0x2c] sm:$0xf]
        %v2986 = vld [vmem:[%s2973 + $0x30] sm:$0xf]
        %v2987 = vld [vmem:[%s2973 + $0x34] sm:$0xf]
        %v2988 = vld [vmem:[%s2973 + $0x38] sm:$0xf]
        %v2989 = vld [vmem:[%s2973 + $0x3c] sm:$0xf]
        %v2994 = vunpack.c.l.b16 %v2969
        %v2995 = vunpack.c.l.b16 %v2970
        %v2996 = vunpack.c.l.b16 %v2971
        %v2997 = vunpack.c.l.b16 %v2972
        %v2998 = vpack.c.b16 %v2995, %v2994
        %v2999 = vpack.c.b16 %v2997, %v2996
        %v3000 = vrot.slane %v2998, 3
        %v3001 = vrot.slane %v2999, 3
        %v3002 = vsel %vm1366, %v3000, %v3001
        %v3021 = vunpack.c.l.b16 %v2974
        %v3022 = vunpack.c.l.b16 %v2975
        %v3023 = vunpack.c.l.b16 %v2976
        %v3024 = vunpack.c.l.b16 %v2977
        %v3025 = vunpack.c.l.b16 %v2978
        %v3026 = vunpack.c.l.b16 %v2979
        %v3027 = vunpack.c.l.b16 %v2980
        %v3028 = vunpack.c.l.b16 %v2981
        %v3029 = vunpack.c.l.b16 %v2982
        %v3030 = vunpack.c.l.b16 %v2983
        %v3031 = vunpack.c.l.b16 %v2984
        %v3032 = vunpack.c.l.b16 %v2985
        %v3033 = vunpack.c.l.b16 %v2986
        %v3034 = vunpack.c.l.b16 %v2987
        %v3035 = vunpack.c.l.b16 %v2988
        %v3036 = vunpack.c.l.b16 %v2989
        %v3037 = vpack.c.b16 %v3022, %v3021
        %v3038 = vpack.c.b16 %v3024, %v3023
        %v3039 = vpack.c.b16 %v3026, %v3025
        %v3040 = vpack.c.b16 %v3028, %v3027
        %v3041 = vpack.c.b16 %v3030, %v3029
        %v3042 = vpack.c.b16 %v3032, %v3031
        %v3043 = vpack.c.b16 %v3034, %v3033
        %v3044 = vpack.c.b16 %v3036, %v3035
        %3053 = vmatprep.subr.bf16.mxu0 0
        %3054 = vmatpush1.bf16.msra.mxu0 %v3037
        %3055 = vmatprep.subr.bf16.mxu0 0
        %3056 = vmatpush1.bf16.msra.mxu0 %v3038
        %3057 = vmatprep.subr.bf16.mxu0 0
        %3058 = vmatpush1.bf16.msra.mxu0 %v3039
        %3059 = vmatprep.subr.bf16.mxu0 0
        %3060 = vmatpush1.bf16.msra.mxu0 %v3040
        %3061 = vmatprep.subr.bf16.mxu0 0
        %3062 = vmatpush1.bf16.msra.mxu0 %v3041
        %3063 = vmatprep.subr.bf16.mxu0 0
        %3064 = vmatpush1.bf16.msra.mxu0 %v3042
        %3065 = vmatprep.subr.bf16.mxu0 0
        %3066 = vmatpush1.bf16.msra.mxu0 %v3043
        %3067 = vmatprep.subr.bf16.mxu0 0
        %3068 = vmatpush1.bf16.msra.mxu0 %v3044
        %3069 = vmatprep.subr.bf16.mxu0 0
        %3070 = vmatpush1.bf16.msra.mxu0 0
        %3071 = vmatprep.subr.bf16.mxu0 0
        %3072 = vmatpush1.bf16.msra.mxu0 0
        %3073 = vmatprep.subr.bf16.mxu0 0
        %3074 = vmatpush1.bf16.msra.mxu0 0
        %3075 = vmatprep.subr.bf16.mxu0 0
        %3076 = vmatpush1.bf16.msra.mxu0 0
        %3077 = vmatprep.subr.bf16.mxu0 0
        %3078 = vmatpush1.bf16.msra.mxu0 0
        %3079 = vmatprep.subr.bf16.mxu0 0
        %3080 = vmatpush1.bf16.msra.mxu0 0
        %3081 = vmatprep.subr.bf16.mxu0 0
        %3082 = vmatpush1.bf16.msra.mxu0 0
        %3083 = vmatprep.subr.bf16.mxu0 0
        %3084 = vmatpush1.bf16.msra.mxu0 0
        %3085 = vmatprep.mubr.bf16.mxu0 0
        %3086 = vmatmul.mubr.bf16.gmra.mrb[0].mxu0 %v3002
        %v3087 = vpop.f32.mrb[0].mxu0
        %v3088 = vadd.f32 0.0, %v3087
        %v3089 = vpop.f32.mrb[0].mxu0
        %v3090 = vpop.f32.mrb[0].mxu0
        %v3091 = vadd.f32 0.0, %v3090
        %v3092 = vpop.f32.mrb[0].mxu0
        %3093 = vmatprep.mubr.bf16.mxu0 0
        %3094 = vmatmul.mubr.bf16.gmra.mrb[0].mxu0 %v3001
        %v3095 = vpop.f32.mrb[0].mxu0
        %v3096 = vadd.f32 0.0, %v3095
        %v3097 = vpop.f32.mrb[0].mxu0
        %v3098 = vpop.f32.mrb[0].mxu0
        %v3099 = vpop.f32.mrb[0].mxu0
        %3100 = vdwg.mxu0
        %v3101 = vadd.f32 %v2966, %v3088
        %v3102 = vadd.f32 %v2967, %v3091
        %v3103 = vadd.f32 %v2968, %v3096
        %v3104 = vld [vmem:[#allocation3 + $0xc] sm:$0x7]
        %s3105 = scalar_lea.vmem [#allocation7], 256
        %v3106 = vld [vmem:[%s3105] sm:$0xf]
        %v3107 = vld [vmem:[%s3105 + $0x4] sm:$0xf]
        %v3108 = vld [vmem:[%s3105 + $0x8] sm:$0xf]
        %v3109 = vld [vmem:[%s3105 + $0xc] sm:$0xf]
        %v3110 = vld [vmem:[%s3105 + $0x10] sm:$0xf]
        %v3111 = vld [vmem:[%s3105 + $0x14] sm:$0xf]
        %v3112 = vld [vmem:[%s3105 + $0x18] sm:$0xf]
        %v3113 = vld [vmem:[%s3105 + $0x1c] sm:$0xf]
        %v3114 = vld [vmem:[%s3105 + $0x20] sm:$0xf]
        %v3115 = vld [vmem:[%s3105 + $0x24] sm:$0xf]
        %v3116 = vld [vmem:[%s3105 + $0x28] sm:$0xf]
        %v3117 = vld [vmem:[%s3105 + $0x2c] sm:$0xf]
        %v3118 = vld [vmem:[%s3105 + $0x30] sm:$0xf]
        %v3119 = vld [vmem:[%s3105 + $0x34] sm:$0xf]
        %v3120 = vld [vmem:[%s3105 + $0x38] sm:$0xf]
        %v3121 = vld [vmem:[%s3105 + $0x3c] sm:$0xf]
        %v3123 = vunpack.c.l.b16 %v3104
        %v3124 = vpack.c.b16 %v3123, %v2996
        %v3126 = vshrl.u32 %v2998, 16
        %v3128 = vrot.slane %v3126, 3
        %v3129 = vshll.u32 %v2998, 16
        %v3131 = vrot.slane %v3129, 4
        %v3132 = vor.u32 %v3128, %v3131
        %v3134 = vshrl.u32 %v3124, 16
        %v3136 = vrot.slane %v3134, 3
        %v3137 = vshll.u32 %v3124, 16
        %v3139 = vrot.slane %v3137, 4
        %v3140 = vor.u32 %v3136, %v3139
        %v3141 = vsel %vm820, %v3132, %v3140
        %v3160 = vunpack.c.l.b16 %v3106
        %v3161 = vunpack.c.l.b16 %v3107
        %v3162 = vunpack.c.l.b16 %v3108
        %v3163 = vunpack.c.l.b16 %v3109
        %v3164 = vunpack.c.l.b16 %v3110
        %v3165 = vunpack.c.l.b16 %v3111
        %v3166 = vunpack.c.l.b16 %v3112
        %v3167 = vunpack.c.l.b16 %v3113
        %v3168 = vunpack.c.l.b16 %v3114
        %v3169 = vunpack.c.l.b16 %v3115
        %v3170 = vunpack.c.l.b16 %v3116
        %v3171 = vunpack.c.l.b16 %v3117
        %v3172 = vunpack.c.l.b16 %v3118
        %v3173 = vunpack.c.l.b16 %v3119
        %v3174 = vunpack.c.l.b16 %v3120
        %v3175 = vunpack.c.l.b16 %v3121
        %v3176 = vpack.c.b16 %v3161, %v3160
        %v3177 = vpack.c.b16 %v3163, %v3162
        %v3178 = vpack.c.b16 %v3165, %v3164
        %v3179 = vpack.c.b16 %v3167, %v3166
        %v3180 = vpack.c.b16 %v3169, %v3168
        %v3181 = vpack.c.b16 %v3171, %v3170
        %v3182 = vpack.c.b16 %v3173, %v3172
        %v3183 = vpack.c.b16 %v3175, %v3174
        %3192 = vmatprep.subr.bf16.mxu0 0
        %3193 = vmatpush1.bf16.msra.mxu0 %v3176
        %3194 = vmatprep.subr.bf16.mxu0 0
        %3195 = vmatpush1.bf16.msra.mxu0 %v3177
        %3196 = vmatprep.subr.bf16.mxu0 0
        %3197 = vmatpush1.bf16.msra.mxu0 %v3178
        %3198 = vmatprep.subr.bf16.mxu0 0
        %3199 = vmatpush1.bf16.msra.mxu0 %v3179
        %3200 = vmatprep.subr.bf16.mxu0 0
        %3201 = vmatpush1.bf16.msra.mxu0 %v3180
        %3202 = vmatprep.subr.bf16.mxu0 0
        %3203 = vmatpush1.bf16.msra.mxu0 %v3181
        %3204 = vmatprep.subr.bf16.mxu0 0
        %3205 = vmatpush1.bf16.msra.mxu0 %v3182
        %3206 = vmatprep.subr.bf16.mxu0 0
        %3207 = vmatpush1.bf16.msra.mxu0 %v3183
        %3208 = vmatprep.subr.bf16.mxu0 0
        %3209 = vmatpush1.bf16.msra.mxu0 0
        %3210 = vmatprep.subr.bf16.mxu0 0
        %3211 = vmatpush1.bf16.msra.mxu0 0
        %3212 = vmatprep.subr.bf16.mxu0 0
        %3213 = vmatpush1.bf16.msra.mxu0 0
        %3214 = vmatprep.subr.bf16.mxu0 0
        %3215 = vmatpush1.bf16.msra.mxu0 0
        %3216 = vmatprep.subr.bf16.mxu0 0
        %3217 = vmatpush1.bf16.msra.mxu0 0
        %3218 = vmatprep.subr.bf16.mxu0 0
        %3219 = vmatpush1.bf16.msra.mxu0 0
        %3220 = vmatprep.subr.bf16.mxu0 0
        %3221 = vmatpush1.bf16.msra.mxu0 0
        %3222 = vmatprep.subr.bf16.mxu0 0
        %3223 = vmatpush1.bf16.msra.mxu0 0
        %3224 = vmatprep.mubr.bf16.mxu0 0
        %3225 = vmatmul.mubr.bf16.gmra.mrb[0].mxu0 %v3141
        %v3226 = vpop.f32.mrb[0].mxu0
        %v3227 = vadd.f32 0.0, %v3226
        %v3228 = vpop.f32.mrb[0].mxu0
        %v3229 = vpop.f32.mrb[0].mxu0
        %v3230 = vadd.f32 0.0, %v3229
        %v3231 = vpop.f32.mrb[0].mxu0
        %3232 = vmatprep.mubr.bf16.mxu0 0
        %3233 = vmatmul.mubr.bf16.gmra.mrb[0].mxu0 %v3140
        %v3234 = vpop.f32.mrb[0].mxu0
        %v3235 = vadd.f32 0.0, %v3234
        %v3236 = vpop.f32.mrb[0].mxu0
        %v3237 = vpop.f32.mrb[0].mxu0
        %v3238 = vpop.f32.mrb[0].mxu0
        %3239 = vdwg.mxu0
        %v3240 = vadd.f32 %v3101, %v3227
        %v3241 = vadd.f32 %v3102, %v3230
        %v3242 = vadd.f32 %v3103, %v3235
        %s3243 = scalar_lea.vmem [#allocation7], 320
        %v3244 = vld [vmem:[%s3243] sm:$0xf]
        %v3245 = vld [vmem:[%s3243 + $0x4] sm:$0xf]
        %v3246 = vld [vmem:[%s3243 + $0x8] sm:$0xf]
        %v3247 = vld [vmem:[%s3243 + $0xc] sm:$0xf]
        %v3248 = vld [vmem:[%s3243 + $0x10] sm:$0xf]
        %v3249 = vld [vmem:[%s3243 + $0x14] sm:$0xf]
        %v3250 = vld [vmem:[%s3243 + $0x18] sm:$0xf]
        %v3251 = vld [vmem:[%s3243 + $0x1c] sm:$0xf]
        %v3252 = vld [vmem:[%s3243 + $0x20] sm:$0xf]
        %v3253 = vld [vmem:[%s3243 + $0x24] sm:$0xf]
        %v3254 = vld [vmem:[%s3243 + $0x28] sm:$0xf]
        %v3255 = vld [vmem:[%s3243 + $0x2c] sm:$0xf]
        %v3256 = vld [vmem:[%s3243 + $0x30] sm:$0xf]
        %v3257 = vld [vmem:[%s3243 + $0x34] sm:$0xf]
        %v3258 = vld [vmem:[%s3243 + $0x38] sm:$0xf]
        %v3259 = vld [vmem:[%s3243 + $0x3c] sm:$0xf]
        %v3260 = vpack.c.b16 %v2996, %v2995
        %v3261 = vpack.c.b16 %v3123, %v3123
        %v3280 = vunpack.c.l.b16 %v3244
        %v3281 = vunpack.c.l.b16 %v3245
        %v3282 = vunpack.c.l.b16 %v3246
        %v3283 = vunpack.c.l.b16 %v3247
        %v3284 = vunpack.c.l.b16 %v3248
        %v3285 = vunpack.c.l.b16 %v3249
        %v3286 = vunpack.c.l.b16 %v3250
        %v3287 = vunpack.c.l.b16 %v3251
        %v3288 = vunpack.c.l.b16 %v3252
        %v3289 = vunpack.c.l.b16 %v3253
        %v3290 = vunpack.c.l.b16 %v3254
        %v3291 = vunpack.c.l.b16 %v3255
        %v3292 = vunpack.c.l.b16 %v3256
        %v3293 = vunpack.c.l.b16 %v3257
        %v3294 = vunpack.c.l.b16 %v3258
        %v3295 = vunpack.c.l.b16 %v3259
        %v3296 = vpack.c.b16 %v3281, %v3280
        %v3297 = vpack.c.b16 %v3283, %v3282
        %v3298 = vpack.c.b16 %v3285, %v3284
        %v3299 = vpack.c.b16 %v3287, %v3286
        %v3300 = vpack.c.b16 %v3289, %v3288
        %v3301 = vpack.c.b16 %v3291, %v3290
        %v3302 = vpack.c.b16 %v3293, %v3292
        %v3303 = vpack.c.b16 %v3295, %v3294
        %3312 = vmatprep.subr.bf16.mxu0 0
        %3313 = vmatpush1.bf16.msra.mxu0 %v3296
        %3314 = vmatprep.subr.bf16.mxu0 0
        %3315 = vmatpush1.bf16.msra.mxu0 %v3297
        %3316 = vmatprep.subr.bf16.mxu0 0
        %3317 = vmatpush1.bf16.msra.mxu0 %v3298
        %3318 = vmatprep.subr.bf16.mxu0 0
        %3319 = vmatpush1.bf16.msra.mxu0 %v3299
        %3320 = vmatprep.subr.bf16.mxu0 0
        %3321 = vmatpush1.bf16.msra.mxu0 %v3300
        %3322 = vmatprep.subr.bf16.mxu0 0
        %3323 = vmatpush1.bf16.msra.mxu0 %v3301
        %3324 = vmatprep.subr.bf16.mxu0 0
        %3325 = vmatpush1.bf16.msra.mxu0 %v3302
        %3326 = vmatprep.subr.bf16.mxu0 0
        %3327 = vmatpush1.bf16.msra.mxu0 %v3303
        %3328 = vmatprep.subr.bf16.mxu0 0
        %3329 = vmatpush1.bf16.msra.mxu0 0
        %3330 = vmatprep.subr.bf16.mxu0 0
        %3331 = vmatpush1.bf16.msra.mxu0 0
        %3332 = vmatprep.subr.bf16.mxu0 0
        %3333 = vmatpush1.bf16.msra.mxu0 0
        %3334 = vmatprep.subr.bf16.mxu0 0
        %3335 = vmatpush1.bf16.msra.mxu0 0
        %3336 = vmatprep.subr.bf16.mxu0 0
        %3337 = vmatpush1.bf16.msra.mxu0 0
        %3338 = vmatprep.subr.bf16.mxu0 0
        %3339 = vmatpush1.bf16.msra.mxu0 0
        %3340 = vmatprep.subr.bf16.mxu0 0
        %3341 = vmatpush1.bf16.msra.mxu0 0
        %3342 = vmatprep.subr.bf16.mxu0 0
        %3343 = vmatpush1.bf16.msra.mxu0 0
        %3344 = vmatprep.mubr.bf16.mxu0 0
        %3345 = vmatmul.mubr.bf16.gmra.mrb[0].mxu0 %v3260
        %v3346 = vpop.f32.mrb[0].mxu0
        %v3347 = vadd.f32 0.0, %v3346
        %v3348 = vpop.f32.mrb[0].mxu0
        %v3349 = vpop.f32.mrb[0].mxu0
        %v3350 = vadd.f32 0.0, %v3349
        %v3351 = vpop.f32.mrb[0].mxu0
        %3352 = vmatprep.mubr.bf16.mxu0 0
        %3353 = vmatmul.mubr.bf16.gmra.mrb[0].mxu0 %v3261
        %v3354 = vpop.f32.mrb[0].mxu0
        %v3355 = vadd.f32 0.0, %v3354
        %v3356 = vpop.f32.mrb[0].mxu0
        %v3357 = vpop.f32.mrb[0].mxu0
        %v3358 = vpop.f32.mrb[0].mxu0
        %3359 = vdwg.mxu0
        %v3360 = vadd.f32 %v3240, %v3347
        %v3361 = vadd.f32 %v3241, %v3350
        %v3362 = vadd.f32 %v3242, %v3355
        %v3363 = vld [vmem:[#allocation3 + $0x4] sm:$0xc]
        %v3364 = vld [vmem:[#allocation3 + $0x8] sm:$0xf]
        %v3365 = vld [vmem:[#allocation3 + $0xc] sm:$0xf]
        %v3366 = vld [vmem:[#allocation3 + $0x10] sm:$0x1]
        %s3367 = scalar_lea.vmem [#allocation7], 384
        %v3368 = vld [vmem:[%s3367] sm:$0xf]
        %v3369 = vld [vmem:[%s3367 + $0x4] sm:$0xf]
        %v3370 = vld [vmem:[%s3367 + $0x8] sm:$0xf]
        %v3371 = vld [vmem:[%s3367 + $0xc] sm:$0xf]
        %v3372 = vld [vmem:[%s3367 + $0x10] sm:$0xf]
        %v3373 = vld [vmem:[%s3367 + $0x14] sm:$0xf]
        %v3374 = vld [vmem:[%s3367 + $0x18] sm:$0xf]
        %v3375 = vld [vmem:[%s3367 + $0x1c] sm:$0xf]
        %v3376 = vld [vmem:[%s3367 + $0x20] sm:$0xf]
        %v3377 = vld [vmem:[%s3367 + $0x24] sm:$0xf]
        %v3378 = vld [vmem:[%s3367 + $0x28] sm:$0xf]
        %v3379 = vld [vmem:[%s3367 + $0x2c] sm:$0xf]
        %v3380 = vld [vmem:[%s3367 + $0x30] sm:$0xf]
        %v3381 = vld [vmem:[%s3367 + $0x34] sm:$0xf]
        %v3382 = vld [vmem:[%s3367 + $0x38] sm:$0xf]
        %v3383 = vld [vmem:[%s3367 + $0x3c] sm:$0xf]
        %v3388 = vunpack.c.l.b16 %v3363
        %v3389 = vunpack.c.l.b16 %v3364
        %v3390 = vunpack.c.l.b16 %v3365
        %v3391 = vunpack.c.l.b16 %v3366
        %v3392 = vpack.c.b16 %v3389, %v3388
        %v3393 = vpack.c.b16 %v3391, %v3390
        %vm3394 = vcmask 1045504
        %v3395 = vrot.slane %v3392, 2
        %v3396 = vrot.slane %v3393, 2
        %v3397 = vsel %vm3394, %v3395, %v3396
        %v3416 = vunpack.c.l.b16 %v3368
        %v3417 = vunpack.c.l.b16 %v3369
        %v3418 = vunpack.c.l.b16 %v3370
        %v3419 = vunpack.c.l.b16 %v3371
        %v3420 = vunpack.c.l.b16 %v3372
        %v3421 = vunpack.c.l.b16 %v3373
        %v3422 = vunpack.c.l.b16 %v3374
        %v3423 = vunpack.c.l.b16 %v3375
        %v3424 = vunpack.c.l.b16 %v3376
        %v3425 = vunpack.c.l.b16 %v3377
        %v3426 = vunpack.c.l.b16 %v3378
        %v3427 = vunpack.c.l.b16 %v3379
        %v3428 = vunpack.c.l.b16 %v3380
        %v3429 = vunpack.c.l.b16 %v3381
        %v3430 = vunpack.c.l.b16 %v3382
        %v3431 = vunpack.c.l.b16 %v3383
        %v3432 = vpack.c.b16 %v3417, %v3416
        %v3433 = vpack.c.b16 %v3419, %v3418
        %v3434 = vpack.c.b16 %v3421, %v3420
        %v3435 = vpack.c.b16 %v3423, %v3422
        %v3436 = vpack.c.b16 %v3425, %v3424
        %v3437 = vpack.c.b16 %v3427, %v3426
        %v3438 = vpack.c.b16 %v3429, %v3428
        %v3439 = vpack.c.b16 %v3431, %v3430
        %3448 = vmatprep.subr.bf16.mxu0 0
        %3449 = vmatpush1.bf16.msra.mxu0 %v3432
        %3450 = vmatprep.subr.bf16.mxu0 0
        %3451 = vmatpush1.bf16.msra.mxu0 %v3433
        %3452 = vmatprep.subr.bf16.mxu0 0
        %3453 = vmatpush1.bf16.msra.mxu0 %v3434
        %3454 = vmatprep.subr.bf16.mxu0 0
        %3455 = vmatpush1.bf16.msra.mxu0 %v3435
        %3456 = vmatprep.subr.bf16.mxu0 0
        %3457 = vmatpush1.bf16.msra.mxu0 %v3436
        %3458 = vmatprep.subr.bf16.mxu0 0
        %3459 = vmatpush1.bf16.msra.mxu0 %v3437
        %3460 = vmatprep.subr.bf16.mxu0 0
        %3461 = vmatpush1.bf16.msra.mxu0 %v3438
        %3462 = vmatprep.subr.bf16.mxu0 0
        %3463 = vmatpush1.bf16.msra.mxu0 %v3439
        %3464 = vmatprep.subr.bf16.mxu0 0
        %3465 = vmatpush1.bf16.msra.mxu0 0
        %3466 = vmatprep.subr.bf16.mxu0 0
        %3467 = vmatpush1.bf16.msra.mxu0 0
        %3468 = vmatprep.subr.bf16.mxu0 0
        %3469 = vmatpush1.bf16.msra.mxu0 0
        %3470 = vmatprep.subr.bf16.mxu0 0
        %3471 = vmatpush1.bf16.msra.mxu0 0
        %3472 = vmatprep.subr.bf16.mxu0 0
        %3473 = vmatpush1.bf16.msra.mxu0 0
        %3474 = vmatprep.subr.bf16.mxu0 0
        %3475 = vmatpush1.bf16.msra.mxu0 0
        %3476 = vmatprep.subr.bf16.mxu0 0
        %3477 = vmatpush1.bf16.msra.mxu0 0
        %3478 = vmatprep.subr.bf16.mxu0 0
        %3479 = vmatpush1.bf16.msra.mxu0 0
        %3480 = vmatprep.mubr.bf16.mxu0 0
        %3481 = vmatmul.mubr.bf16.gmra.mrb[0].mxu0 %v3397
        %v3482 = vpop.f32.mrb[0].mxu0
        %v3483 = vadd.f32 0.0, %v3482
        %v3484 = vpop.f32.mrb[0].mxu0
        %v3485 = vpop.f32.mrb[0].mxu0
        %v3486 = vadd.f32 0.0, %v3485
        %v3487 = vpop.f32.mrb[0].mxu0
        %3488 = vmatprep.mubr.bf16.mxu0 0
        %3489 = vmatmul.mubr.bf16.gmra.mrb[0].mxu0 %v3396
        %v3490 = vpop.f32.mrb[0].mxu0
        %v3491 = vadd.f32 0.0, %v3490
        %v3492 = vpop.f32.mrb[0].mxu0
        %v3493 = vpop.f32.mrb[0].mxu0
        %v3494 = vpop.f32.mrb[0].mxu0
        %3495 = vdwg.mxu0
        %v3496 = vadd.f32 %v3360, %v3483
        %v3497 = vadd.f32 %v3361, %v3486
        %v3498 = vadd.f32 %v3362, %v3491
        %v3499 = vld [vmem:[#allocation3 + $0x10] sm:$0x3]
        %s3500 = scalar_lea.vmem [#allocation7], 448
        %v3501 = vld [vmem:[%s3500] sm:$0xf]
        %v3502 = vld [vmem:[%s3500 + $0x4] sm:$0xf]
        %v3503 = vld [vmem:[%s3500 + $0x8] sm:$0xf]
        %v3504 = vld [vmem:[%s3500 + $0xc] sm:$0xf]
        %v3505 = vld [vmem:[%s3500 + $0x10] sm:$0xf]
        %v3506 = vld [vmem:[%s3500 + $0x14] sm:$0xf]
        %v3507 = vld [vmem:[%s3500 + $0x18] sm:$0xf]
        %v3508 = vld [vmem:[%s3500 + $0x1c] sm:$0xf]
        %v3509 = vld [vmem:[%s3500 + $0x20] sm:$0xf]
        %v3510 = vld [vmem:[%s3500 + $0x24] sm:$0xf]
        %v3511 = vld [vmem:[%s3500 + $0x28] sm:$0xf]
        %v3512 = vld [vmem:[%s3500 + $0x2c] sm:$0xf]
        %v3513 = vld [vmem:[%s3500 + $0x30] sm:$0xf]
        %v3514 = vld [vmem:[%s3500 + $0x34] sm:$0xf]
        %v3515 = vld [vmem:[%s3500 + $0x38] sm:$0xf]
        %v3516 = vld [vmem:[%s3500 + $0x3c] sm:$0xf]
        %v3518 = vunpack.c.l.b16 %v3499
        %v3519 = vpack.c.b16 %v3518, %v3390
        %v3521 = vshrl.u32 %v3392, 16
        %v3523 = vrot.slane %v3521, 2
        %v3524 = vshll.u32 %v3392, 16
        %v3526 = vrot.slane %v3524, 3
        %v3527 = vor.u32 %v3523, %v3526
        %v3529 = vshrl.u32 %v3519, 16
        %v3531 = vrot.slane %v3529, 2
        %v3532 = vshll.u32 %v3519, 16
        %v3534 = vrot.slane %v3532, 3
        %v3535 = vor.u32 %v3531, %v3534
        %v3536 = vsel %vm1904, %v3527, %v3535
        %v3555 = vunpack.c.l.b16 %v3501
        %v3556 = vunpack.c.l.b16 %v3502
        %v3557 = vunpack.c.l.b16 %v3503
        %v3558 = vunpack.c.l.b16 %v3504
        %v3559 = vunpack.c.l.b16 %v3505
        %v3560 = vunpack.c.l.b16 %v3506
        %v3561 = vunpack.c.l.b16 %v3507
        %v3562 = vunpack.c.l.b16 %v3508
        %v3563 = vunpack.c.l.b16 %v3509
        %v3564 = vunpack.c.l.b16 %v3510
        %v3565 = vunpack.c.l.b16 %v3511
        %v3566 = vunpack.c.l.b16 %v3512
        %v3567 = vunpack.c.l.b16 %v3513
        %v3568 = vunpack.c.l.b16 %v3514
        %v3569 = vunpack.c.l.b16 %v3515
        %v3570 = vunpack.c.l.b16 %v3516
        %v3571 = vpack.c.b16 %v3556, %v3555
        %v3572 = vpack.c.b16 %v3558, %v3557
        %v3573 = vpack.c.b16 %v3560, %v3559
        %v3574 = vpack.c.b16 %v3562, %v3561
        %v3575 = vpack.c.b16 %v3564, %v3563
        %v3576 = vpack.c.b16 %v3566, %v3565
        %v3577 = vpack.c.b16 %v3568, %v3567
        %v3578 = vpack.c.b16 %v3570, %v3569
        %3587 = vmatprep.subr.bf16.mxu0 0
        %3588 = vmatpush1.bf16.msra.mxu0 %v3571
        %3589 = vmatprep.subr.bf16.mxu0 0
        %3590 = vmatpush1.bf16.msra.mxu0 %v3572
        %3591 = vmatprep.subr.bf16.mxu0 0
        %3592 = vmatpush1.bf16.msra.mxu0 %v3573
        %3593 = vmatprep.subr.bf16.mxu0 0
        %3594 = vmatpush1.bf16.msra.mxu0 %v3574
        %3595 = vmatprep.subr.bf16.mxu0 0
        %3596 = vmatpush1.bf16.msra.mxu0 %v3575
        %3597 = vmatprep.subr.bf16.mxu0 0
        %3598 = vmatpush1.bf16.msra.mxu0 %v3576
        %3599 = vmatprep.subr.bf16.mxu0 0
        %3600 = vmatpush1.bf16.msra.mxu0 %v3577
        %3601 = vmatprep.subr.bf16.mxu0 0
        %3602 = vmatpush1.bf16.msra.mxu0 %v3578
        %3603 = vmatprep.subr.bf16.mxu0 0
        %3604 = vmatpush1.bf16.msra.mxu0 0
        %3605 = vmatprep.subr.bf16.mxu0 0
        %3606 = vmatpush1.bf16.msra.mxu0 0
        %3607 = vmatprep.subr.bf16.mxu0 0
        %3608 = vmatpush1.bf16.msra.mxu0 0
        %3609 = vmatprep.subr.bf16.mxu0 0
        %3610 = vmatpush1.bf16.msra.mxu0 0
        %3611 = vmatprep.subr.bf16.mxu0 0
        %3612 = vmatpush1.bf16.msra.mxu0 0
        %3613 = vmatprep.subr.bf16.mxu0 0
        %3614 = vmatpush1.bf16.msra.mxu0 0
        %3615 = vmatprep.subr.bf16.mxu0 0
        %3616 = vmatpush1.bf16.msra.mxu0 0
        %3617 = vmatprep.subr.bf16.mxu0 0
        %3618 = vmatpush1.bf16.msra.mxu0 0
        %3619 = vmatprep.mubr.bf16.mxu0 0
        %3620 = vmatmul.mubr.bf16.gmra.mrb[0].mxu0 %v3536
        %v3621 = vpop.f32.mrb[0].mxu0
        %v3622 = vadd.f32 0.0, %v3621
        %v3623 = vpop.f32.mrb[0].mxu0
        %v3624 = vpop.f32.mrb[0].mxu0
        %v3625 = vadd.f32 0.0, %v3624
        %v3626 = vpop.f32.mrb[0].mxu0
        %3627 = vmatprep.mubr.bf16.mxu0 0
        %3628 = vmatmul.mubr.bf16.gmra.mrb[0].mxu0 %v3535
        %v3629 = vpop.f32.mrb[0].mxu0
        %v3630 = vadd.f32 0.0, %v3629
        %v3631 = vpop.f32.mrb[0].mxu0
        %v3632 = vpop.f32.mrb[0].mxu0
        %v3633 = vpop.f32.mrb[0].mxu0
        %3634 = vdwg.mxu0
        %v3635 = vadd.f32 %v3496, %v3622
        %v3636 = vadd.f32 %v3497, %v3625
        %v3637 = vadd.f32 %v3498, %v3630
        %v3638 = vld [vmem:[#allocation3 + $0x4] sm:$0x8]
        %s3639 = scalar_lea.vmem [#allocation7], 512
        %v3640 = vld [vmem:[%s3639] sm:$0xf]
        %v3641 = vld [vmem:[%s3639 + $0x4] sm:$0xf]
        %v3642 = vld [vmem:[%s3639 + $0x8] sm:$0xf]
        %v3643 = vld [vmem:[%s3639 + $0xc] sm:$0xf]
        %v3644 = vld [vmem:[%s3639 + $0x10] sm:$0xf]
        %v3645 = vld [vmem:[%s3639 + $0x14] sm:$0xf]
        %v3646 = vld [vmem:[%s3639 + $0x18] sm:$0xf]
        %v3647 = vld [vmem:[%s3639 + $0x1c] sm:$0xf]
        %v3648 = vld [vmem:[%s3639 + $0x20] sm:$0xf]
        %v3649 = vld [vmem:[%s3639 + $0x24] sm:$0xf]
        %v3650 = vld [vmem:[%s3639 + $0x28] sm:$0xf]
        %v3651 = vld [vmem:[%s3639 + $0x2c] sm:$0xf]
        %v3652 = vld [vmem:[%s3639 + $0x30] sm:$0xf]
        %v3653 = vld [vmem:[%s3639 + $0x34] sm:$0xf]
        %v3654 = vld [vmem:[%s3639 + $0x38] sm:$0xf]
        %v3655 = vld [vmem:[%s3639 + $0x3c] sm:$0xf]
        %v3657 = vunpack.c.l.b16 %v3638
        %v3658 = vpack.c.b16 %v3389, %v3657
        %v3659 = vrot.slane %v3658, 3
        %v3660 = vrot.slane %v3519, 3
        %v3661 = vsel %vm1366, %v3659, %v3660
        %v3680 = vunpack.c.l.b16 %v3640
        %v3681 = vunpack.c.l.b16 %v3641
        %v3682 = vunpack.c.l.b16 %v3642
        %v3683 = vunpack.c.l.b16 %v3643
        %v3684 = vunpack.c.l.b16 %v3644
        %v3685 = vunpack.c.l.b16 %v3645
        %v3686 = vunpack.c.l.b16 %v3646
        %v3687 = vunpack.c.l.b16 %v3647
        %v3688 = vunpack.c.l.b16 %v3648
        %v3689 = vunpack.c.l.b16 %v3649
        %v3690 = vunpack.c.l.b16 %v3650
        %v3691 = vunpack.c.l.b16 %v3651
        %v3692 = vunpack.c.l.b16 %v3652
        %v3693 = vunpack.c.l.b16 %v3653
        %v3694 = vunpack.c.l.b16 %v3654
        %v3695 = vunpack.c.l.b16 %v3655
        %v3696 = vpack.c.b16 %v3681, %v3680
        %v3697 = vpack.c.b16 %v3683, %v3682
        %v3698 = vpack.c.b16 %v3685, %v3684
        %v3699 = vpack.c.b16 %v3687, %v3686
        %v3700 = vpack.c.b16 %v3689, %v3688
        %v3701 = vpack.c.b16 %v3691, %v3690
        %v3702 = vpack.c.b16 %v3693, %v3692
        %v3703 = vpack.c.b16 %v3695, %v3694
        %3712 = vmatprep.subr.bf16.mxu0 0
        %3713 = vmatpush1.bf16.msra.mxu0 %v3696
        %3714 = vmatprep.subr.bf16.mxu0 0
        %3715 = vmatpush1.bf16.msra.mxu0 %v3697
        %3716 = vmatprep.subr.bf16.mxu0 0
        %3717 = vmatpush1.bf16.msra.mxu0 %v3698
        %3718 = vmatprep.subr.bf16.mxu0 0
        %3719 = vmatpush1.bf16.msra.mxu0 %v3699
        %3720 = vmatprep.subr.bf16.mxu0 0
        %3721 = vmatpush1.bf16.msra.mxu0 %v3700
        %3722 = vmatprep.subr.bf16.mxu0 0
        %3723 = vmatpush1.bf16.msra.mxu0 %v3701
        %3724 = vmatprep.subr.bf16.mxu0 0
        %3725 = vmatpush1.bf16.msra.mxu0 %v3702
        %3726 = vmatprep.subr.bf16.mxu0 0
        %3727 = vmatpush1.bf16.msra.mxu0 %v3703
        %3728 = vmatprep.subr.bf16.mxu0 0
        %3729 = vmatpush1.bf16.msra.mxu0 0
        %3730 = vmatprep.subr.bf16.mxu0 0
        %3731 = vmatpush1.bf16.msra.mxu0 0
        %3732 = vmatprep.subr.bf16.mxu0 0
        %3733 = vmatpush1.bf16.msra.mxu0 0
        %3734 = vmatprep.subr.bf16.mxu0 0
        %3735 = vmatpush1.bf16.msra.mxu0 0
        %3736 = vmatprep.subr.bf16.mxu0 0
        %3737 = vmatpush1.bf16.msra.mxu0 0
        %3738 = vmatprep.subr.bf16.mxu0 0
        %3739 = vmatpush1.bf16.msra.mxu0 0
        %3740 = vmatprep.subr.bf16.mxu0 0
        %3741 = vmatpush1.bf16.msra.mxu0 0
        %3742 = vmatprep.subr.bf16.mxu0 0
        %3743 = vmatpush1.bf16.msra.mxu0 0
        %3744 = vmatprep.mubr.bf16.mxu0 0
        %3745 = vmatmul.mubr.bf16.gmra.mrb[0].mxu0 %v3661
        %v3746 = vpop.f32.mrb[0].mxu0
        %v3747 = vadd.f32 0.0, %v3746
        %v3748 = vpop.f32.mrb[0].mxu0
        %v3749 = vpop.f32.mrb[0].mxu0
        %v3750 = vadd.f32 0.0, %v3749
        %v3751 = vpop.f32.mrb[0].mxu0
        %3752 = vmatprep.mubr.bf16.mxu0 0
        %3753 = vmatmul.mubr.bf16.gmra.mrb[0].mxu0 %v3660
        %v3754 = vpop.f32.mrb[0].mxu0
        %v3755 = vadd.f32 0.0, %v3754
        %v3756 = vpop.f32.mrb[0].mxu0
        %v3757 = vpop.f32.mrb[0].mxu0
        %v3758 = vpop.f32.mrb[0].mxu0
        %3759 = vdwg.mxu0
        %v3760 = vadd.f32 %v3635, %v3747
        %v3761 = vadd.f32 %v3636, %v3750
        %v3762 = vadd.f32 %v3637, %v3755
        %v3763 = vld [vmem:[%s4] sm:$0x1]
        %v3765 = vlaneseq
        %v3766 = vshrl.u32 %v3765, 7
        %v3767 = vsub.s32 0, %v3766
        %v3768 = vrot.slane %v3763, %v3767
        %v3770 = vadd.f32 %v3760, %v3768
        %v3771 = vadd.f32 %v3761, %v3768
        %v3772 = vadd.f32 %v3762, %v3768
        %v3773 = vmul.f32 %v3770, %v3770
        %v3774 = vmul.f32 %v3771, %v3771
        %v3775 = vmul.f32 %v3772, %v3772
        %3776 = vadd.xlane.f32.xlu0 %v3773
        %v3777 = vpop.xlane.xlu0 %3776
        %3778 = vadd.xlane.f32.xlu0 %v3774
        %v3779 = vpop.xlane.xlu0 %3778
        %vm3780 = vcmask 1045504
        %v3781 = vsel %vm3780, %v3775, 0.0
        %3782 = vadd.xlane.f32.xlu0 %v3781
        %v3783 = vpop.xlane.xlu0 %3782
        %v3784 = vmul.f32 %v3777, 0.015625
        %v3785 = vmul.f32 %v3779, 0.015625
        %v3786 = vmul.f32 %v3783, 0.015625
        %v3787 = vadd.f32 %v3784, 1e-08
        %v3788 = vadd.f32 %v3785, 1e-08
        %v3789 = vadd.f32 %v3786, 1e-08
        %v3790 = vrsqrt.pop %v3787
        %v3791 = vrsqrt.pop %v3788
        %v3792 = vrsqrt.pop %v3789
        %v3793 = vmul.f32 %v3770, %v3790
        %v3794 = vmul.f32 %v3771, %v3791
        %v3795 = vmul.f32 %v3772, %v3792
        %v3796 = vmul.f32 %v3793, 0.2
        %v3797 = vmul.f32 %v3794, 0.2
        %v3798 = vmul.f32 %v3795, 0.2
        %v3799 = vmax.f32 %v3793, %v3796
        %v3800 = vmax.f32 %v3794, %v3797
        %v3801 = vmax.f32 %v3795, %v3798
        %v3802 = vpack.c.bf16 %v3799, %v3799
        %3803 = vst [vmem:[%s243] sm:$0x3] %v3802
        %v3804 = vpack.c.bf16 %v3800, %v3799
        %v3806 = vunpack.c.l.b16 %v3804
        %v3807 = vunpack.c.h.b16 %v3804
        %v3808 = vpack.c.b16 %v3806, %v3806
        %v3809 = vpack.c.b16 %v3807, %v3807
        %v3810 = vrot.slane %v3808, 5
        %v3811 = vrot.slane %v3810, 4
        %v3812 = vrot.slane %v3809, 5
        %v3813 = vsel %vm2516, %v3811, %v3812
        %3815 = vst [vmem:[%s243] sm:$0xc] %v3813
        %v3816 = vpack.c.bf16 %v3800, %v3800
        %v3818 = vunpack.c.l.b16 %v3816
        %v3819 = vpack.c.b16 %v3818, %v3818
        %v3820 = vrot.slane %v3819, 6
        %v3821 = vrot.slane %v3820, 4
        %3823 = vst [vmem:[%s243 + $0x4] sm:$0x3] %v3821
        %v3824 = vpack.c.bf16 %v3801, %v3801
        %v3826 = vunpack.c.l.b16 %v3824
        %v3827 = vpack.c.b16 %v3826, %v3826
        %v3828 = vrot.slane %v3827, 7
        %3830 = vst [vmem:[%s243 + $0x4] sm:$0xc] %v3828
        %s3831 = sand.u32 %s139, 1
        %s3832 = scalar_lea.sflag [#allocation6], %s3831
        %s3833 = sand.u32 %s139, 1
        %s3834 = smul.addr %s3833, 8
        %s3835 = scalar_lea.vmem [#allocation9], %s3834
        // Predicated region
        $region49: #{tpu_custom_call.1} parent=39 // pred_check
          %p3836 = pneg %p149
        $region50: #{tpu_custom_call.1} parent=39 // pred_check_branch
          %3838 = sbr.rel (%p3836) target = $region52
        $region51: #{tpu_custom_call.1} parent=39 // pred_region
          %s3840 = ssub.s32 128, 128
          %3841 = vsyncadd %s3832, %s3840
          %s3842 = smul.addr %s21, 2
          %s3843 = smul.addr %s3842, 64
          %s3844 = scalar_lea.hbm %s5, %s3843
          %s3845 = sshll.u32 %s3835, 4
          %s3846 = int_to_ptr.vmem [resolvable:$true] %s3845
          %3851 = dma.vmem_to_hbm [thread:$0]  %s3846, 128, %s3844, %s3832, 64, 64, 4
        $region52: #{tpu_custom_call.1} parent=39 // pred_fallthru
          _
      $region40: #{tpu_custom_call.1} parent=5 // pred_fallthru
        _
      %p3852 = scmp.le.s32.totalorder 2, %s16
      // Predicated region
      $region53: #{tpu_custom_call.1} parent=5 // pred_check
        %p3853 = pneg %p3852
      $region54: #{tpu_custom_call.1} parent=5 // pred_check_branch
        %3855 = sbr.rel (%p3853) target = $region56
      $region55: #{tpu_custom_call.1} parent=5 // pred_region
        %s3856 = ssub.s32 %s16, 2
        // Predicated region
        $region57: #{tpu_custom_call.1} parent=55 // pred_check
          %p3857 = pneg %p155
        $region58: #{tpu_custom_call.1} parent=55 // pred_check_branch
          %3859 = sbr.rel (%p3857) target = $region60
        $region59: #{tpu_custom_call.1} parent=55 // pred_region
          %s3860 = sand.u32 %s140, 1
          %s3861 = scalar_lea.sflag [#allocation6], %s3860
          %s3862 = sand.u32 %s140, 1
          %s3863 = smul.addr %s3862, 8
          %s3864 = scalar_lea.vmem [#allocation9], %s3863
          %3865 = dma.done %s3861, 128
        $region60: #{tpu_custom_call.1} parent=55 // pred_fallthru
          _
      $region56: #{tpu_custom_call.1} parent=5 // pred_fallthru
        _
    $region6: #{tpu_custom_call.1} parent=1 // loop_footer
      %s20 = sadd.s32 1, %s16
    $region7: #{tpu_custom_call.1} parent=1 // loop_footer_branch
      %15 = sbr.rel target = $region3
    $region8: #{tpu_custom_call.1} parent=1 // loop_exit
      _
    %3866 = vsyncpa [#allocation5], 1
    %s3867 = scalar_lea.sflag [#allocation5], 1
    %3868 = vsyncpa %s3867, 1
    %3869 = vsyncpa [#allocation8], 1
    %3870 = vsyncpa [#allocation6], 1
    %s3871 = scalar_lea.sflag [#allocation6], 1
    %3872 = vsyncpa %s3871, 1

</llo_original>
